<compile_context>
chip_gen: v7x
topology: tpu7x:2x2x1
jax: 0.10.0
libtpu: 0.0.40
codegen_flags: <defaults>
</compile_context>

<pallas_src>
import functools

import jax
import jax.numpy as jnp
from jax import lax
from jax.experimental import pallas as pl
from jax.experimental.pallas import tpu as pltpu

# --- module constants (from the PyTorch source) -----------------------------
BLOCK_SIZE = 128          # max context length
N_EMBD = 192              # embedding dim C
NUM_HEADS = 6
HEAD_SIZE = N_EMBD // NUM_HEADS   # 32


def mha_kernel(x_ref, wqkv_ref, wp_ref, b_ref, o_ref, *, b_blk, t):
    """Fused multi-head causal self-attention + output projection for one batch tile.

    x_ref    : (b_blk*t, C)   bf16   rows of the current batch tile
    wqkv_ref : (C, 3*C)       bf16   [Wq | Wk | Wv], head-major columns, 1/sqrt(H) folded into Wq
    wp_ref   : (C, C)         bf16   output projection (pre-transposed), rows head-major
    b_ref    : (1, C)         f32    output projection bias
    o_ref    : (b_blk*t, C)   f32
    """
    c = N_EMBD
    h = HEAD_SIZE
    m_rows = b_blk * t

    x2 = x_ref[...]                                                       # (M, C) bf16

    # One lane-dense projection matmul for all heads and all of q/k/v: N = 576.
    qkv = jnp.dot(x2, wqkv_ref[...], preferred_element_type=jnp.float32)  # (M, 3C) f32
    qkv = qkv.astype(jnp.bfloat16)

    # causal mask, shared across heads and batch elements
    row = lax.broadcasted_iota(jnp.int32, (t, t), 0)
    col = lax.broadcasted_iota(jnp.int32, (t, t), 1)
    causal = col <= row

    head_outs = []
    for hd in range(NUM_HEADS):   # static unroll; only this head's score tiles are live per iter
        q3 = qkv[:, hd * h:(hd + 1) * h].reshape(b_blk, t, h)                     # pre-scaled
        k3 = qkv[:, c + hd * h: c + (hd + 1) * h].reshape(b_blk, t, h)
        v3 = qkv[:, 2 * c + hd * h: 2 * c + (hd + 1) * h].reshape(b_blk, t, h)

        # q @ k^T without materializing a transpose (contract the last axes)
        s = jnp.einsum('bqd,bkd->bqk', q3, k3,
                       preferred_element_type=jnp.float32)                        # (B, T, T)

        # causal softmax: mask BEFORE exp (each row has >=1 valid entry -> max is finite)
        s = jnp.where(causal, s, -jnp.inf)
        m = jnp.max(s, axis=-1, keepdims=True)
        p = jnp.exp(s - m)                                                        # masked -> 0
        denom = jnp.sum(p, axis=-1, keepdims=True)                                # (B, T, 1)

        att = jnp.einsum('bqk,bkd->bqd', p.astype(jnp.bfloat16), v3,
                         preferred_element_type=jnp.float32)                      # (B, T, H)
        att = att * pl.reciprocal(denom, approx=False)                            # exact 1/denom
        head_outs.append(att.reshape(m_rows, h).astype(jnp.bfloat16))

    # concat over heads, then ONE K=192 output-projection matmul (+ bias)
    att_cat = jnp.concatenate(head_outs, axis=-1)                                 # (M, C) bf16
    out = jnp.dot(att_cat, wp_ref[...], preferred_element_type=jnp.float32)       # (M, C) f32
    out = out + b_ref[...]
    o_ref[...] = out.astype(o_ref.dtype)


def _pick_b_blk(batch, seq_len):
    """Batch tile so M = b_blk*seq_len lands around 512-1024 MXU rows (whole batch if smaller).

    Per-step working set is a few MiB at most -- far below VMEM on v5e/v6e/v7x -- so the
    biggest block that divides B is free and minimizes per-grid-step overhead (the grid is a
    serial loop on 1-TC chips).  dimension_semantics=("parallel",) still lets a 2-TC chip
    (v7x) split a multi-step grid across cores.
    """
    target = max(1, 1024 // max(seq_len, 1))
    if batch <= target:
        return batch
    for cand in range(target, 0, -1):
        if batch % cand == 0 and (cand * seq_len) % 8 == 0:
            return cand
    return batch


def multi_head_attention_forward(x, w_key, w_query, w_value, w_proj, b_proj):
    """x: (B, T, C) f32.
    w_key/w_query/w_value: (NH, H, C)  stacked PyTorch nn.Linear weights (bias=False).
    w_proj: (C, NH*H), b_proj: (C,)    PyTorch nn.Linear(NH*H, C) weight / bias."""
    B, T, C = x.shape
    NH, H, _ = w_key.shape
    assert C == N_EMBD and NH == NUM_HEADS and H == HEAD_SIZE and T <= BLOCK_SIZE

    # One-time weight prep in plain JAX:
    #   per-head (H, C) -> (C, H), concatenated head-major; q/k/v fused side by side into a
    #   single (C, 576) matrix; 1/sqrt(H) folded into the q columns; bf16 for the MXU.
    scale = jnp.float32(H) ** jnp.float32(-0.5)
    wq_cat = jnp.transpose(w_query, (2, 0, 1)).reshape(C, NH * H) * scale     # (C, 192)
    wk_cat = jnp.transpose(w_key, (2, 0, 1)).reshape(C, NH * H)               # (C, 192)
    wv_cat = jnp.transpose(w_value, (2, 0, 1)).reshape(C, NH * H)             # (C, 192)
    w_qkv = jnp.concatenate([wq_cat, wk_cat, wv_cat], axis=1).astype(jnp.bfloat16)  # (C, 576)
    wp_t = jnp.transpose(w_proj).astype(jnp.bfloat16)                         # (NH*H, C)
    b2 = b_proj.reshape(1, C).astype(jnp.float32)

    x2d = x.reshape(B * T, C).astype(jnp.bfloat16)                            # flat (B*T, C)

    b_blk = _pick_b_blk(B, T)
    m_blk = b_blk * T
    grid = (B // b_blk,)

    kernel = functools.partial(mha_kernel, b_blk=b_blk, t=T)

    out2d = pl.pallas_call(
        kernel,
        out_shape=jax.ShapeDtypeStruct((B * T, C), jnp.float32),
        grid_spec=pltpu.PrefetchScalarGridSpec(
            num_scalar_prefetch=0,
            grid=grid,
            in_specs=[
                pl.BlockSpec((m_blk, C), lambda i: (i, 0)),       # x rows for this tile
                pl.BlockSpec((C, 3 * C), lambda i: (0, 0)),       # fused qkv weights
                pl.BlockSpec((C, C), lambda i: (0, 0)),           # output projection
                pl.BlockSpec((1, C), lambda i: (0, 0)),           # bias
            ],
            out_specs=pl.BlockSpec((m_blk, C), lambda i: (i, 0)),
        ),
        compiler_params=pltpu.CompilerParams(
            dimension_semantics=("parallel",)),
    )(x2d, w_qkv, wp_t, b2)

    return out2d.reshape(B, T, C)


def multi_head_attention_ref(x, w_key, w_query, w_value, w_proj, b_proj):
    """Pure-JAX f32 reference matching the PyTorch MultiHeadAttention forward (eval mode)."""
    B, T, C = x.shape
    mask = jnp.tril(jnp.ones((T, T), dtype=bool))
    outs = []
    for h in range(w_key.shape[0]):
        k = x @ w_key[h].T
        q = x @ w_query[h].T
        v = x @ w_value[h].T
        wei = (q @ jnp.swapaxes(k, -2, -1)) * (k.shape[-1] ** -0.5)
        wei = jnp.where(mask, wei, -jnp.inf)
        wei = jax.nn.softmax(wei, axis=-1)
        outs.append(wei @ v)
    cat = jnp.concatenate(outs, axis=-1)
    return cat @ w_proj.T + b_proj


if __name__ == "__main__":
    key = jax.random.PRNGKey(0)
    k_x, k_wk, k_wq, k_wv, k_wp, k_bp = jax.random.split(key, 6)

    B, T = 4, 16
    x = jax.random.normal(k_x, (B, T, N_EMBD), dtype=jnp.float32)

    # nn.Linear-style uniform init
    bound_in = 1.0 / (N_EMBD ** 0.5)
    w_key_p = jax.random.uniform(k_wk, (NUM_HEADS, HEAD_SIZE, N_EMBD), jnp.float32, -bound_in, bound_in)
    w_query_p = jax.random.uniform(k_wq, (NUM_HEADS, HEAD_SIZE, N_EMBD), jnp.float32, -bound_in, bound_in)
    w_value_p = jax.random.uniform(k_wv, (NUM_HEADS, HEAD_SIZE, N_EMBD), jnp.float32, -bound_in, bound_in)
    bound_p = 1.0 / ((NUM_HEADS * HEAD_SIZE) ** 0.5)
    w_proj_p = jax.random.uniform(k_wp, (N_EMBD, NUM_HEADS * HEAD_SIZE), jnp.float32, -bound_p, bound_p)
    b_proj_p = jax.random.uniform(k_bp, (N_EMBD,), jnp.float32, -bound_p, bound_p)

    out = multi_head_attention_forward(x, w_key_p, w_query_p, w_value_p, w_proj_p, b_proj_p)
    out = jax.block_until_ready(out)

    ref = multi_head_attention_ref(x, w_key_p, w_query_p, w_value_p, w_proj_p, b_proj_p)
    assert out.shape == (B, T, N_EMBD)
    # bf16 matmul inputs with f32 accumulation => relaxed tolerance vs the f32 reference
    max_err = jnp.max(jnp.abs(out - ref))
    assert jnp.allclose(out, ref, atol=5e-2, rtol=5e-2), f"mismatch vs reference (max abs err {max_err})"

    print("KERNEL_OK")
</pallas_src>

<mosaic_0001>
module attributes {stable_mosaic.version = 11 : i64} {
  func.func @mha_kernel(%arg0: i32, %arg1: memref<64x192xbf16, #tpu.memory_space<vmem>>, %arg2: memref<192x576xbf16, #tpu.memory_space<vmem>>, %arg3: memref<192x192xbf16, #tpu.memory_space<vmem>>, %arg4: memref<1x192xf32, #tpu.memory_space<vmem>>, %arg5: memref<64x192xf32, #tpu.memory_space<vmem>>) attributes {dimension_semantics = [#tpu.dimension_semantics<parallel>], iteration_bounds = array<i64: 1>, scalar_prefetch = 0 : i64, scratch_operands = 0 : i64, tpu.core_type = #tpu.core_type<tc>, window_params = [{transform_indices = @transform_0, window_bounds = array<i64: 64, 192>}, {pipeline_mode = #tpu.pipeline_mode<synchronous>, transform_indices = @transform_1, window_bounds = array<i64: 192, 576>}, {pipeline_mode = #tpu.pipeline_mode<synchronous>, transform_indices = @transform_2, window_bounds = array<i64: 192, 192>}, {pipeline_mode = #tpu.pipeline_mode<synchronous>, transform_indices = @transform_3, window_bounds = array<i64: 1, 192>}, {transform_indices = @transform_4, window_bounds = array<i64: 64, 192>}]} {
    %c0 = arith.constant 0 : index
    %c0_0 = arith.constant 0 : index
    %0 = vector.load %arg1[%c0, %c0_0] : memref<64x192xbf16, #tpu.memory_space<vmem>>, vector<64x192xbf16>
    %c0_1 = arith.constant 0 : index
    %c0_2 = arith.constant 0 : index
    %1 = vector.load %arg2[%c0_1, %c0_2] : memref<192x576xbf16, #tpu.memory_space<vmem>>, vector<192x576xbf16>
    %cst = arith.constant dense<0.000000e+00> : vector<64x576xf32>
    %2 = tpu.matmul %0, %1, %cst {dimension_numbers = #tpu.dot_dimension_numbers<[1], [0], [0], [1], [0, 0, 1, 1], [], []>} : vector<64x192xbf16>, vector<192x576xbf16>, vector<64x576xf32> -> vector<64x576xf32>
    %3 = arith.truncf %2 : vector<64x576xf32> to vector<64x576xbf16>
    %4 = tpu.iota {dimensions = array<i32: 0>} : vector<16x16xi32>
    %5 = tpu.iota {dimensions = array<i32: 1>} : vector<16x16xi32>
    %6 = arith.cmpi sle, %5, %4 : vector<16x16xi32>
    %7 = vector.extract_strided_slice %3 {offsets = [0, 0], sizes = [64, 32], strides = [1, 1]} : vector<64x576xbf16> to vector<64x32xbf16>
    %8 = vector.shape_cast %7 : vector<64x32xbf16> to vector<4x16x32xbf16>
    %9 = vector.extract_strided_slice %3 {offsets = [0, 192], sizes = [64, 32], strides = [1, 1]} : vector<64x576xbf16> to vector<64x32xbf16>
    %10 = vector.shape_cast %9 : vector<64x32xbf16> to vector<4x16x32xbf16>
    %11 = vector.extract_strided_slice %3 {offsets = [0, 384], sizes = [64, 32], strides = [1, 1]} : vector<64x576xbf16> to vector<64x32xbf16>
    %12 = vector.shape_cast %11 : vector<64x32xbf16> to vector<4x16x32xbf16>
    "tpu.trace_start"() <{level = 10 : i32, message = "bqd,bkd->bqk"}> : () -> ()
    %cst_3 = arith.constant dense<0.000000e+00> : vector<4x16x16xf32>
    %13 = tpu.matmul %8, %10, %cst_3 {dimension_numbers = #tpu.dot_dimension_numbers<[2], [2], [1], [1], [0, 0, 0, 1, 1, 1], [0], [0]>} : vector<4x16x32xbf16>, vector<4x16x32xbf16>, vector<4x16x16xf32> -> vector<4x16x16xf32>
    %cst_4 = arith.constant 0xFF800000 : f32
    "tpu.trace_stop"() : () -> ()
    %14 = vector.shape_cast %6 : vector<16x16xi1> to vector<1x16x16xi1>
    %15 = vector.broadcast %14 : vector<1x16x16xi1> to vector<4x16x16xi1>
    %16 = vector.broadcast %cst_4 : f32 to vector<4x16x16xf32>
    %17 = arith.select %15, %13, %16 : vector<4x16x16xi1>, vector<4x16x16xf32>
    %cst_5 = arith.constant dense<0xFF800000> : vector<4x16xf32>
    %18 = vector.multi_reduction <maximumf>, %17, %cst_5 [2] : vector<4x16x16xf32> to vector<4x16xf32>
    %19 = vector.shape_cast %18 : vector<4x16xf32> to vector<4x16x1xf32>
    %20 = vector.broadcast %19 : vector<4x16x1xf32> to vector<4x16x16xf32>
    %21 = arith.subf %17, %20 : vector<4x16x16xf32>
    %22 = math.exp %21 : vector<4x16x16xf32>
    %cst_6 = arith.constant dense<0.000000e+00> : vector<4x16xf32>
    %23 = vector.multi_reduction <add>, %22, %cst_6 [2] : vector<4x16x16xf32> to vector<4x16xf32>
    %24 = vector.shape_cast %23 : vector<4x16xf32> to vector<4x16x1xf32>
    %25 = arith.truncf %22 : vector<4x16x16xf32> to vector<4x16x16xbf16>
    "tpu.trace_start"() <{level = 10 : i32, message = "bqk,bkd->bqd"}> : () -> ()
    %cst_7 = arith.constant dense<0.000000e+00> : vector<4x16x32xf32>
    %26 = tpu.matmul %25, %12, %cst_7 {dimension_numbers = #tpu.dot_dimension_numbers<[2], [1], [1], [2], [0, 0, 0, 1, 1, 2], [0], [0]>} : vector<4x16x16xbf16>, vector<4x16x32xbf16>, vector<4x16x32xf32> -> vector<4x16x32xf32>
    "tpu.trace_stop"() : () -> ()
    %27 = tpu.reciprocal %24 : vector<4x16x1xf32> -> vector<4x16x1xf32>
    %28 = vector.broadcast %27 : vector<4x16x1xf32> to vector<4x16x32xf32>
    %29 = arith.mulf %26, %28 : vector<4x16x32xf32>
    %30 = vector.shape_cast %29 : vector<4x16x32xf32> to vector<64x32xf32>
    %31 = arith.truncf %30 : vector<64x32xf32> to vector<64x32xbf16>
    %32 = vector.extract_strided_slice %3 {offsets = [0, 32], sizes = [64, 32], strides = [1, 1]} : vector<64x576xbf16> to vector<64x32xbf16>
    %33 = vector.shape_cast %32 : vector<64x32xbf16> to vector<4x16x32xbf16>
    %34 = vector.extract_strided_slice %3 {offsets = [0, 224], sizes = [64, 32], strides = [1, 1]} : vector<64x576xbf16> to vector<64x32xbf16>
    %35 = vector.shape_cast %34 : vector<64x32xbf16> to vector<4x16x32xbf16>
    %36 = vector.extract_strided_slice %3 {offsets = [0, 416], sizes = [64, 32], strides = [1, 1]} : vector<64x576xbf16> to vector<64x32xbf16>
    %37 = vector.shape_cast %36 : vector<64x32xbf16> to vector<4x16x32xbf16>
    "tpu.trace_start"() <{level = 10 : i32, message = "bqd,bkd->bqk"}> : () -> ()
    %cst_8 = arith.constant dense<0.000000e+00> : vector<4x16x16xf32>
    %38 = tpu.matmul %33, %35, %cst_8 {dimension_numbers = #tpu.dot_dimension_numbers<[2], [2], [1], [1], [0, 0, 0, 1, 1, 1], [0], [0]>} : vector<4x16x32xbf16>, vector<4x16x32xbf16>, vector<4x16x16xf32> -> vector<4x16x16xf32>
    %cst_9 = arith.constant 0xFF800000 : f32
    "tpu.trace_stop"() : () -> ()
    %39 = vector.shape_cast %6 : vector<16x16xi1> to vector<1x16x16xi1>
    %40 = vector.broadcast %39 : vector<1x16x16xi1> to vector<4x16x16xi1>
    %41 = vector.broadcast %cst_9 : f32 to vector<4x16x16xf32>
    %42 = arith.select %40, %38, %41 : vector<4x16x16xi1>, vector<4x16x16xf32>
    %cst_10 = arith.constant dense<0xFF800000> : vector<4x16xf32>
    %43 = vector.multi_reduction <maximumf>, %42, %cst_10 [2] : vector<4x16x16xf32> to vector<4x16xf32>
    %44 = vector.shape_cast %43 : vector<4x16xf32> to vector<4x16x1xf32>
    %45 = vector.broadcast %44 : vector<4x16x1xf32> to vector<4x16x16xf32>
    %46 = arith.subf %42, %45 : vector<4x16x16xf32>
    %47 = math.exp %46 : vector<4x16x16xf32>
    %cst_11 = arith.constant dense<0.000000e+00> : vector<4x16xf32>
    %48 = vector.multi_reduction <add>, %47, %cst_11 [2] : vector<4x16x16xf32> to vector<4x16xf32>
    %49 = vector.shape_cast %48 : vector<4x16xf32> to vector<4x16x1xf32>
    %50 = arith.truncf %47 : vector<4x16x16xf32> to vector<4x16x16xbf16>
    "tpu.trace_start"() <{level = 10 : i32, message = "bqk,bkd->bqd"}> : () -> ()
    %cst_12 = arith.constant dense<0.000000e+00> : vector<4x16x32xf32>
    %51 = tpu.matmul %50, %37, %cst_12 {dimension_numbers = #tpu.dot_dimension_numbers<[2], [1], [1], [2], [0, 0, 0, 1, 1, 2], [0], [0]>} : vector<4x16x16xbf16>, vector<4x16x32xbf16>, vector<4x16x32xf32> -> vector<4x16x32xf32>
    "tpu.trace_stop"() : () -> ()
    %52 = tpu.reciprocal %49 : vector<4x16x1xf32> -> vector<4x16x1xf32>
    %53 = vector.broadcast %52 : vector<4x16x1xf32> to vector<4x16x32xf32>
    %54 = arith.mulf %51, %53 : vector<4x16x32xf32>
    %55 = vector.shape_cast %54 : vector<4x16x32xf32> to vector<64x32xf32>
    %56 = arith.truncf %55 : vector<64x32xf32> to vector<64x32xbf16>
    %57 = vector.extract_strided_slice %3 {offsets = [0, 64], sizes = [64, 32], strides = [1, 1]} : vector<64x576xbf16> to vector<64x32xbf16>
    %58 = vector.shape_cast %57 : vector<64x32xbf16> to vector<4x16x32xbf16>
    %59 = vector.extract_strided_slice %3 {offsets = [0, 256], sizes = [64, 32], strides = [1, 1]} : vector<64x576xbf16> to vector<64x32xbf16>
    %60 = vector.shape_cast %59 : vector<64x32xbf16> to vector<4x16x32xbf16>
    %61 = vector.extract_strided_slice %3 {offsets = [0, 448], sizes = [64, 32], strides = [1, 1]} : vector<64x576xbf16> to vector<64x32xbf16>
    %62 = vector.shape_cast %61 : vector<64x32xbf16> to vector<4x16x32xbf16>
    "tpu.trace_start"() <{level = 10 : i32, message = "bqd,bkd->bqk"}> : () -> ()
    %cst_13 = arith.constant dense<0.000000e+00> : vector<4x16x16xf32>
    %63 = tpu.matmul %58, %60, %cst_13 {dimension_numbers = #tpu.dot_dimension_numbers<[2], [2], [1], [1], [0, 0, 0, 1, 1, 1], [0], [0]>} : vector<4x16x32xbf16>, vector<4x16x32xbf16>, vector<4x16x16xf32> -> vector<4x16x16xf32>
    %cst_14 = arith.constant 0xFF800000 : f32
    "tpu.trace_stop"() : () -> ()
    %64 = vector.shape_cast %6 : vector<16x16xi1> to vector<1x16x16xi1>
    %65 = vector.broadcast %64 : vector<1x16x16xi1> to vector<4x16x16xi1>
    %66 = vector.broadcast %cst_14 : f32 to vector<4x16x16xf32>
    %67 = arith.select %65, %63, %66 : vector<4x16x16xi1>, vector<4x16x16xf32>
    %cst_15 = arith.constant dense<0xFF800000> : vector<4x16xf32>
    %68 = vector.multi_reduction <maximumf>, %67, %cst_15 [2] : vector<4x16x16xf32> to vector<4x16xf32>
    %69 = vector.shape_cast %68 : vector<4x16xf32> to vector<4x16x1xf32>
    %70 = vector.broadcast %69 : vector<4x16x1xf32> to vector<4x16x16xf32>
    %71 = arith.subf %67, %70 : vector<4x16x16xf32>
    %72 = math.exp %71 : vector<4x16x16xf32>
    %cst_16 = arith.constant dense<0.000000e+00> : vector<4x16xf32>
    %73 = vector.multi_reduction <add>, %72, %cst_16 [2] : vector<4x16x16xf32> to vector<4x16xf32>
    %74 = vector.shape_cast %73 : vector<4x16xf32> to vector<4x16x1xf32>
    %75 = arith.truncf %72 : vector<4x16x16xf32> to vector<4x16x16xbf16>
    "tpu.trace_start"() <{level = 10 : i32, message = "bqk,bkd->bqd"}> : () -> ()
    %cst_17 = arith.constant dense<0.000000e+00> : vector<4x16x32xf32>
    %76 = tpu.matmul %75, %62, %cst_17 {dimension_numbers = #tpu.dot_dimension_numbers<[2], [1], [1], [2], [0, 0, 0, 1, 1, 2], [0], [0]>} : vector<4x16x16xbf16>, vector<4x16x32xbf16>, vector<4x16x32xf32> -> vector<4x16x32xf32>
    "tpu.trace_stop"() : () -> ()
    %77 = tpu.reciprocal %74 : vector<4x16x1xf32> -> vector<4x16x1xf32>
    %78 = vector.broadcast %77 : vector<4x16x1xf32> to vector<4x16x32xf32>
    %79 = arith.mulf %76, %78 : vector<4x16x32xf32>
    %80 = vector.shape_cast %79 : vector<4x16x32xf32> to vector<64x32xf32>
    %81 = arith.truncf %80 : vector<64x32xf32> to vector<64x32xbf16>
    %82 = vector.extract_strided_slice %3 {offsets = [0, 96], sizes = [64, 32], strides = [1, 1]} : vector<64x576xbf16> to vector<64x32xbf16>
    %83 = vector.shape_cast %82 : vector<64x32xbf16> to vector<4x16x32xbf16>
    %84 = vector.extract_strided_slice %3 {offsets = [0, 288], sizes = [64, 32], strides = [1, 1]} : vector<64x576xbf16> to vector<64x32xbf16>
    %85 = vector.shape_cast %84 : vector<64x32xbf16> to vector<4x16x32xbf16>
    %86 = vector.extract_strided_slice %3 {offsets = [0, 480], sizes = [64, 32], strides = [1, 1]} : vector<64x576xbf16> to vector<64x32xbf16>
    %87 = vector.shape_cast %86 : vector<64x32xbf16> to vector<4x16x32xbf16>
    "tpu.trace_start"() <{level = 10 : i32, message = "bqd,bkd->bqk"}> : () -> ()
    %cst_18 = arith.constant dense<0.000000e+00> : vector<4x16x16xf32>
    %88 = tpu.matmul %83, %85, %cst_18 {dimension_numbers = #tpu.dot_dimension_numbers<[2], [2], [1], [1], [0, 0, 0, 1, 1, 1], [0], [0]>} : vector<4x16x32xbf16>, vector<4x16x32xbf16>, vector<4x16x16xf32> -> vector<4x16x16xf32>
    %cst_19 = arith.constant 0xFF800000 : f32
    "tpu.trace_stop"() : () -> ()
    %89 = vector.shape_cast %6 : vector<16x16xi1> to vector<1x16x16xi1>
    %90 = vector.broadcast %89 : vector<1x16x16xi1> to vector<4x16x16xi1>
    %91 = vector.broadcast %cst_19 : f32 to vector<4x16x16xf32>
    %92 = arith.select %90, %88, %91 : vector<4x16x16xi1>, vector<4x16x16xf32>
    %cst_20 = arith.constant dense<0xFF800000> : vector<4x16xf32>
    %93 = vector.multi_reduction <maximumf>, %92, %cst_20 [2] : vector<4x16x16xf32> to vector<4x16xf32>
    %94 = vector.shape_cast %93 : vector<4x16xf32> to vector<4x16x1xf32>
    %95 = vector.broadcast %94 : vector<4x16x1xf32> to vector<4x16x16xf32>
    %96 = arith.subf %92, %95 : vector<4x16x16xf32>
    %97 = math.exp %96 : vector<4x16x16xf32>
    %cst_21 = arith.constant dense<0.000000e+00> : vector<4x16xf32>
    %98 = vector.multi_reduction <add>, %97, %cst_21 [2] : vector<4x16x16xf32> to vector<4x16xf32>
    %99 = vector.shape_cast %98 : vector<4x16xf32> to vector<4x16x1xf32>
    %100 = arith.truncf %97 : vector<4x16x16xf32> to vector<4x16x16xbf16>
    "tpu.trace_start"() <{level = 10 : i32, message = "bqk,bkd->bqd"}> : () -> ()
    %cst_22 = arith.constant dense<0.000000e+00> : vector<4x16x32xf32>
    %101 = tpu.matmul %100, %87, %cst_22 {dimension_numbers = #tpu.dot_dimension_numbers<[2], [1], [1], [2], [0, 0, 0, 1, 1, 2], [0], [0]>} : vector<4x16x16xbf16>, vector<4x16x32xbf16>, vector<4x16x32xf32> -> vector<4x16x32xf32>
    "tpu.trace_stop"() : () -> ()
    %102 = tpu.reciprocal %99 : vector<4x16x1xf32> -> vector<4x16x1xf32>
    %103 = vector.broadcast %102 : vector<4x16x1xf32> to vector<4x16x32xf32>
    %104 = arith.mulf %101, %103 : vector<4x16x32xf32>
    %105 = vector.shape_cast %104 : vector<4x16x32xf32> to vector<64x32xf32>
    %106 = arith.truncf %105 : vector<64x32xf32> to vector<64x32xbf16>
    %107 = vector.extract_strided_slice %3 {offsets = [0, 128], sizes = [64, 32], strides = [1, 1]} : vector<64x576xbf16> to vector<64x32xbf16>
    %108 = vector.shape_cast %107 : vector<64x32xbf16> to vector<4x16x32xbf16>
    %109 = vector.extract_strided_slice %3 {offsets = [0, 320], sizes = [64, 32], strides = [1, 1]} : vector<64x576xbf16> to vector<64x32xbf16>
    %110 = vector.shape_cast %109 : vector<64x32xbf16> to vector<4x16x32xbf16>
    %111 = vector.extract_strided_slice %3 {offsets = [0, 512], sizes = [64, 32], strides = [1, 1]} : vector<64x576xbf16> to vector<64x32xbf16>
    %112 = vector.shape_cast %111 : vector<64x32xbf16> to vector<4x16x32xbf16>
    "tpu.trace_start"() <{level = 10 : i32, message = "bqd,bkd->bqk"}> : () -> ()
    %cst_23 = arith.constant dense<0.000000e+00> : vector<4x16x16xf32>
    %113 = tpu.matmul %108, %110, %cst_23 {dimension_numbers = #tpu.dot_dimension_numbers<[2], [2], [1], [1], [0, 0, 0, 1, 1, 1], [0], [0]>} : vector<4x16x32xbf16>, vector<4x16x32xbf16>, vector<4x16x16xf32> -> vector<4x16x16xf32>
    %cst_24 = arith.constant 0xFF800000 : f32
    "tpu.trace_stop"() : () -> ()
    %114 = vector.shape_cast %6 : vector<16x16xi1> to vector<1x16x16xi1>
    %115 = vector.broadcast %114 : vector<1x16x16xi1> to vector<4x16x16xi1>
    %116 = vector.broadcast %cst_24 : f32 to vector<4x16x16xf32>
    %117 = arith.select %115, %113, %116 : vector<4x16x16xi1>, vector<4x16x16xf32>
    %cst_25 = arith.constant dense<0xFF800000> : vector<4x16xf32>
    %118 = vector.multi_reduction <maximumf>, %117, %cst_25 [2] : vector<4x16x16xf32> to vector<4x16xf32>
    %119 = vector.shape_cast %118 : vector<4x16xf32> to vector<4x16x1xf32>
    %120 = vector.broadcast %119 : vector<4x16x1xf32> to vector<4x16x16xf32>
    %121 = arith.subf %117, %120 : vector<4x16x16xf32>
    %122 = math.exp %121 : vector<4x16x16xf32>
    %cst_26 = arith.constant dense<0.000000e+00> : vector<4x16xf32>
    %123 = vector.multi_reduction <add>, %122, %cst_26 [2] : vector<4x16x16xf32> to vector<4x16xf32>
    %124 = vector.shape_cast %123 : vector<4x16xf32> to vector<4x16x1xf32>
    %125 = arith.truncf %122 : vector<4x16x16xf32> to vector<4x16x16xbf16>
    "tpu.trace_start"() <{level = 10 : i32, message = "bqk,bkd->bqd"}> : () -> ()
    %cst_27 = arith.constant dense<0.000000e+00> : vector<4x16x32xf32>
    %126 = tpu.matmul %125, %112, %cst_27 {dimension_numbers = #tpu.dot_dimension_numbers<[2], [1], [1], [2], [0, 0, 0, 1, 1, 2], [0], [0]>} : vector<4x16x16xbf16>, vector<4x16x32xbf16>, vector<4x16x32xf32> -> vector<4x16x32xf32>
    "tpu.trace_stop"() : () -> ()
    %127 = tpu.reciprocal %124 : vector<4x16x1xf32> -> vector<4x16x1xf32>
    %128 = vector.broadcast %127 : vector<4x16x1xf32> to vector<4x16x32xf32>
    %129 = arith.mulf %126, %128 : vector<4x16x32xf32>
    %130 = vector.shape_cast %129 : vector<4x16x32xf32> to vector<64x32xf32>
    %131 = arith.truncf %130 : vector<64x32xf32> to vector<64x32xbf16>
    %132 = vector.extract_strided_slice %3 {offsets = [0, 160], sizes = [64, 32], strides = [1, 1]} : vector<64x576xbf16> to vector<64x32xbf16>
    %133 = vector.shape_cast %132 : vector<64x32xbf16> to vector<4x16x32xbf16>
    %134 = vector.extract_strided_slice %3 {offsets = [0, 352], sizes = [64, 32], strides = [1, 1]} : vector<64x576xbf16> to vector<64x32xbf16>
    %135 = vector.shape_cast %134 : vector<64x32xbf16> to vector<4x16x32xbf16>
    %136 = vector.extract_strided_slice %3 {offsets = [0, 544], sizes = [64, 32], strides = [1, 1]} : vector<64x576xbf16> to vector<64x32xbf16>
    %137 = vector.shape_cast %136 : vector<64x32xbf16> to vector<4x16x32xbf16>
    "tpu.trace_start"() <{level = 10 : i32, message = "bqd,bkd->bqk"}> : () -> ()
    %cst_28 = arith.constant dense<0.000000e+00> : vector<4x16x16xf32>
    %138 = tpu.matmul %133, %135, %cst_28 {dimension_numbers = #tpu.dot_dimension_numbers<[2], [2], [1], [1], [0, 0, 0, 1, 1, 1], [0], [0]>} : vector<4x16x32xbf16>, vector<4x16x32xbf16>, vector<4x16x16xf32> -> vector<4x16x16xf32>
    %cst_29 = arith.constant 0xFF800000 : f32
    "tpu.trace_stop"() : () -> ()
    %139 = vector.shape_cast %6 : vector<16x16xi1> to vector<1x16x16xi1>
    %140 = vector.broadcast %139 : vector<1x16x16xi1> to vector<4x16x16xi1>
    %141 = vector.broadcast %cst_29 : f32 to vector<4x16x16xf32>
    %142 = arith.select %140, %138, %141 : vector<4x16x16xi1>, vector<4x16x16xf32>
    %cst_30 = arith.constant dense<0xFF800000> : vector<4x16xf32>
    %143 = vector.multi_reduction <maximumf>, %142, %cst_30 [2] : vector<4x16x16xf32> to vector<4x16xf32>
    %144 = vector.shape_cast %143 : vector<4x16xf32> to vector<4x16x1xf32>
    %145 = vector.broadcast %144 : vector<4x16x1xf32> to vector<4x16x16xf32>
    %146 = arith.subf %142, %145 : vector<4x16x16xf32>
    %147 = math.exp %146 : vector<4x16x16xf32>
    %cst_31 = arith.constant dense<0.000000e+00> : vector<4x16xf32>
    %148 = vector.multi_reduction <add>, %147, %cst_31 [2] : vector<4x16x16xf32> to vector<4x16xf32>
    %149 = vector.shape_cast %148 : vector<4x16xf32> to vector<4x16x1xf32>
    %150 = arith.truncf %147 : vector<4x16x16xf32> to vector<4x16x16xbf16>
    "tpu.trace_start"() <{level = 10 : i32, message = "bqk,bkd->bqd"}> : () -> ()
    %cst_32 = arith.constant dense<0.000000e+00> : vector<4x16x32xf32>
    %151 = tpu.matmul %150, %137, %cst_32 {dimension_numbers = #tpu.dot_dimension_numbers<[2], [1], [1], [2], [0, 0, 0, 1, 1, 2], [0], [0]>} : vector<4x16x16xbf16>, vector<4x16x32xbf16>, vector<4x16x32xf32> -> vector<4x16x32xf32>
    "tpu.trace_stop"() : () -> ()
    %152 = tpu.reciprocal %149 : vector<4x16x1xf32> -> vector<4x16x1xf32>
    %153 = vector.broadcast %152 : vector<4x16x1xf32> to vector<4x16x32xf32>
    %154 = arith.mulf %151, %153 : vector<4x16x32xf32>
    %155 = vector.shape_cast %154 : vector<4x16x32xf32> to vector<64x32xf32>
    %156 = arith.truncf %155 : vector<64x32xf32> to vector<64x32xbf16>
    %157 = tpu.concatenate %31, %56, %81, %106, %131, %156 in 1 : vector<64x32xbf16>, vector<64x32xbf16>, vector<64x32xbf16>, vector<64x32xbf16>, vector<64x32xbf16>, vector<64x32xbf16> -> vector<64x192xbf16>
    %c0_33 = arith.constant 0 : index
    %c0_34 = arith.constant 0 : index
    %158 = vector.load %arg3[%c0_33, %c0_34] : memref<192x192xbf16, #tpu.memory_space<vmem>>, vector<192x192xbf16>
    %cst_35 = arith.constant dense<0.000000e+00> : vector<64x192xf32>
    %159 = tpu.matmul %157, %158, %cst_35 {dimension_numbers = #tpu.dot_dimension_numbers<[1], [0], [0], [1], [0, 0, 1, 1], [], []>} : vector<64x192xbf16>, vector<192x192xbf16>, vector<64x192xf32> -> vector<64x192xf32>
    %c0_36 = arith.constant 0 : index
    %c0_37 = arith.constant 0 : index
    %160 = vector.load %arg4[%c0_36, %c0_37] : memref<1x192xf32, #tpu.memory_space<vmem>>, vector<1x192xf32>
    %161 = vector.broadcast %160 : vector<1x192xf32> to vector<64x192xf32>
    %162 = arith.addf %159, %161 : vector<64x192xf32>
    %c0_38 = arith.constant 0 : index
    %c0_39 = arith.constant 0 : index
    %163 = vector.load %arg5[%c0_38, %c0_39] : memref<64x192xf32, #tpu.memory_space<vmem>>, vector<64x192xf32>
    tpu.vector_store %arg5[%c0_38, %c0_39], %162 {strides = array<i32>} : memref<64x192xf32, #tpu.memory_space<vmem>>, vector<64x192xf32>,
    return
  }
  func.func @transform_0(%arg0: i32) -> (i32, i32) {
    %c0_i32 = arith.constant 0 : i32
    %c0_i32_0 = arith.constant 0 : i32
    return %arg0, %c0_i32 : i32, i32
  }
  func.func @transform_1(%arg0: i32) -> (i32, i32) {
    %c0_i32 = arith.constant 0 : i32
    %c0_i32_0 = arith.constant 0 : i32
    %c0_i32_1 = arith.constant 0 : i32
    return %c0_i32, %c0_i32_0 : i32, i32
  }
  func.func @transform_2(%arg0: i32) -> (i32, i32) {
    %c0_i32 = arith.constant 0 : i32
    %c0_i32_0 = arith.constant 0 : i32
    %c0_i32_1 = arith.constant 0 : i32
    return %c0_i32, %c0_i32_0 : i32, i32
  }
  func.func @transform_3(%arg0: i32) -> (i32, i32) {
    %c0_i32 = arith.constant 0 : i32
    %c0_i32_0 = arith.constant 0 : i32
    %c0_i32_1 = arith.constant 0 : i32
    return %c0_i32, %c0_i32_0 : i32, i32
  }
  func.func @transform_4(%arg0: i32) -> (i32, i32) {
    %c0_i32 = arith.constant 0 : i32
    %c0_i32_0 = arith.constant 0 : i32
    return %arg0, %c0_i32 : i32, i32
  }
}

</mosaic_0001>

<llo_original>
// kernel: tpu_custom_call.1
$region0: #{tpu_custom_call.1}
  #allocation0 [shape = 'u32[]', space=smem, size = 0x4, offset = 0x4, fixed_abs, tag = 'smem constant byte address 0x4 - core index']
  #allocation1 [shape = 'u32[144,128]{1,0:T(1,128)}', space=vmem, size = 0x12000, scoped, tag = 'internal scratch']
  %s0 = inlined_call_operand.hbm [shape: bf16[64,192], index: 0, kind: input, shape index: {}]
  %s1 = inlined_call_operand.hbm [shape: bf16[192,576], index: 1, kind: input, shape index: {}]
  %s2 = inlined_call_operand.hbm [shape: bf16[192,192], index: 2, kind: input, shape index: {}]
  %s3 = inlined_call_operand.vmem [shape: f32[1,192], index: 3, kind: input, shape index: {}]
  %s4 = inlined_call_operand.hbm [shape: f32[64,192], index: 4, kind: output, shape index: {}]
  %s5 = sld [smem:[#allocation0]]
  $region38: #{tpu_custom_call.1} parent=0
    _
  %s7 = ssub.s32 1, %s5
  %s8 = scalar_select 0, %s7, %s5
  $region1: #{tpu_custom_call.1} parent=0
    #allocation2 [shape = 'u8[32768]{0}', space=vmem, size = 0x8000, scoped, tag = 'input window, operand 0, single buffered']
    #allocation3 [shape = 's32[1]{0}', space=sflag, size = 0x4, scoped, tag = 'scoped memory for tpu_custom_call.1']
    #allocation4 [shape = 's32[1]{0}', space=sflag, size = 0x4, scoped, tag = 'scoped memory for tpu_custom_call.1']
    #allocation5 [shape = 'u8[245760]{0}', space=vmem, size = 0x3c000, scoped, tag = 'input window, operand 1, single buffered']
    #allocation6 [shape = 's32[1]{0}', space=sflag, size = 0x4, scoped, tag = 'scoped memory for tpu_custom_call.1']
    #allocation7 [shape = 'u8[98304]{0}', space=vmem, size = 0x18000, scoped, tag = 'input window, operand 2, single buffered']
    #allocation8 [shape = 'u8[65536]{0}', space=vmem, size = 0x10000, scoped, tag = 'output window, operand 0, single buffered']
    %9 = vsyncpa [#allocation3], 0
    %10 = vsyncpa [#allocation6], 0
    %11 = vsyncpa [#allocation4], 0
    // Predicated region
    $region2: #{tpu_custom_call.1} parent=1 // pred_check
      _
    $region3: #{tpu_custom_call.1} parent=1 // pred_check_branch
      %13 = sbr.rel (0) target = $region5
    $region4: #{tpu_custom_call.1} parent=1 // pred_region
      %s15 = ssub.s32 1024, 1024
      %16 = vsyncadd [#allocation3], %s15
      %s17 = sshll.u32 [#allocation2], 4
      %s18 = int_to_ptr.vmem [resolvable:$true] %s17
      %23 = dma.hbm_to_vmem [thread:$0]  %s0, 1024, %s18, [#allocation3], 128, 128, 8
    $region5: #{tpu_custom_call.1} parent=1 // pred_fallthru
      _
    // Predicated region
    $region6: #{tpu_custom_call.1} parent=1 // pred_check
      _
    $region7: #{tpu_custom_call.1} parent=1 // pred_check_branch
      %25 = sbr.rel (0) target = $region9
    $region8: #{tpu_custom_call.1} parent=1 // pred_region
      %s27 = ssub.s32 7680, 7680
      %28 = vsyncadd [#allocation6], %s27
      %s29 = sshll.u32 [#allocation5], 4
      %s30 = int_to_ptr.vmem [resolvable:$true] %s29
      %35 = dma.hbm_to_vmem [thread:$0]  %s1, 7680, %s30, [#allocation6], 320, 320, 20
    $region9: #{tpu_custom_call.1} parent=1 // pred_fallthru
      _
    // Predicated region
    $region10: #{tpu_custom_call.1} parent=1 // pred_check
      _
    $region11: #{tpu_custom_call.1} parent=1 // pred_check_branch
      %37 = sbr.rel (0) target = $region13
    $region12: #{tpu_custom_call.1} parent=1 // pred_region
      %s39 = ssub.s32 3072, 3072
      %40 = vsyncadd [#allocation6], %s39
      %s41 = sshll.u32 [#allocation7], 4
      %s42 = int_to_ptr.vmem [resolvable:$true] %s41
      %47 = dma.hbm_to_vmem [thread:$0]  %s2, 3072, %s42, [#allocation6], 128, 128, 8
    $region13: #{tpu_custom_call.1} parent=1 // pred_fallthru
      _
    // Predicated region
    $region14: #{tpu_custom_call.1} parent=1 // pred_check
      _
    $region15: #{tpu_custom_call.1} parent=1 // pred_check_branch
      %49 = sbr.rel (0) target = $region17
    $region16: #{tpu_custom_call.1} parent=1 // pred_region
      _
    $region17: #{tpu_custom_call.1} parent=1 // pred_fallthru
      _
    // Predicated region
    $region18: #{tpu_custom_call.1} parent=1 // pred_check
      _
    $region19: #{tpu_custom_call.1} parent=1 // pred_check_branch
      %51 = sbr.rel (0) target = $region21
    $region20: #{tpu_custom_call.1} parent=1 // pred_region
      %52 = dma.done [#allocation3], 1024
    $region21: #{tpu_custom_call.1} parent=1 // pred_fallthru
      _
    // Predicated region
    $region22: #{tpu_custom_call.1} parent=1 // pred_check
      _
    $region23: #{tpu_custom_call.1} parent=1 // pred_check_branch
      %54 = sbr.rel (0) target = $region25
    $region24: #{tpu_custom_call.1} parent=1 // pred_region
      %55 = dma.done [#allocation6], 7680
    $region25: #{tpu_custom_call.1} parent=1 // pred_fallthru
      _
    // Predicated region
    $region26: #{tpu_custom_call.1} parent=1 // pred_check
      _
    $region27: #{tpu_custom_call.1} parent=1 // pred_check_branch
      %57 = sbr.rel (0) target = $region29
    $region28: #{tpu_custom_call.1} parent=1 // pred_region
      %58 = dma.done [#allocation6], 3072
    $region29: #{tpu_custom_call.1} parent=1 // pred_fallthru
      _
    %v60 = vld [vmem:[#allocation2] sm:$0xff]
    %v61 = vld [vmem:[#allocation2 + $0x8] sm:$0xff]
    %v62 = vld [vmem:[#allocation2 + $0x10] sm:$0xff]
    %v63 = vld [vmem:[#allocation2 + $0x18] sm:$0xff]
    %v64 = vld [vmem:[#allocation2 + $0x20] sm:$0xff]
    %v65 = vld [vmem:[#allocation2 + $0x28] sm:$0xff]
    %v66 = vld [vmem:[#allocation2 + $0x30] sm:$0xff]
    %v67 = vld [vmem:[#allocation2 + $0x38] sm:$0xff]
    %v68 = vld [vmem:[#allocation5] sm:$0xff]
    %v69 = vld [vmem:[#allocation5 + $0x8] sm:$0xff]
    %v70 = vld [vmem:[#allocation5 + $0x10] sm:$0xf]
    %v71 = vld [vmem:[#allocation5 + $0x14] sm:$0xff]
    %v72 = vld [vmem:[#allocation5 + $0x1c] sm:$0xff]
    %v73 = vld [vmem:[#allocation5 + $0x24] sm:$0xf]
    %v74 = vld [vmem:[#allocation5 + $0x28] sm:$0xff]
    %v75 = vld [vmem:[#allocation5 + $0x30] sm:$0xff]
    %v76 = vld [vmem:[#allocation5 + $0x38] sm:$0xf]
    %v77 = vld [vmem:[#allocation5 + $0x3c] sm:$0xff]
    %v78 = vld [vmem:[#allocation5 + $0x44] sm:$0xff]
    %v79 = vld [vmem:[#allocation5 + $0x4c] sm:$0xf]
    %v80 = vld [vmem:[#allocation5 + $0x50] sm:$0xff]
    %v81 = vld [vmem:[#allocation5 + $0x58] sm:$0xff]
    %v82 = vld [vmem:[#allocation5 + $0x60] sm:$0xf]
    %v83 = vld [vmem:[#allocation5 + $0x64] sm:$0xff]
    %v84 = vld [vmem:[#allocation5 + $0x6c] sm:$0xff]
    %v85 = vld [vmem:[#allocation5 + $0x74] sm:$0xf]
    %v86 = vld [vmem:[#allocation5 + $0x78] sm:$0xff]
    %v87 = vld [vmem:[#allocation5 + $0x80] sm:$0xff]
    %v88 = vld [vmem:[#allocation5 + $0x88] sm:$0xf]
    %v89 = vld [vmem:[#allocation5 + $0x8c] sm:$0xff]
    %v90 = vld [vmem:[#allocation5 + $0x94] sm:$0xff]
    %v91 = vld [vmem:[#allocation5 + $0x9c] sm:$0xf]
    %v92 = vld [vmem:[#allocation5 + $0xa0] sm:$0xff]
    %v93 = vld [vmem:[#allocation5 + $0xa8] sm:$0xff]
    %v94 = vld [vmem:[#allocation5 + $0xb0] sm:$0xf]
    %v95 = vld [vmem:[#allocation5 + $0xb4] sm:$0xff]
    %v96 = vld [vmem:[#allocation5 + $0xbc] sm:$0xff]
    %v97 = vld [vmem:[#allocation5 + $0xc4] sm:$0xf]
    %v98 = vld [vmem:[#allocation5 + $0xc8] sm:$0xff]
    %v99 = vld [vmem:[#allocation5 + $0xd0] sm:$0xff]
    %v100 = vld [vmem:[#allocation5 + $0xd8] sm:$0xf]
    %v101 = vld [vmem:[#allocation5 + $0xdc] sm:$0xff]
    %v102 = vld [vmem:[#allocation5 + $0xe4] sm:$0xff]
    %v103 = vld [vmem:[#allocation5 + $0xec] sm:$0xf]
    %v104 = vld [vmem:[#allocation5 + $0xf0] sm:$0xff]
    %v105 = vld [vmem:[#allocation5 + $0xf8] sm:$0xff]
    %v106 = vld [vmem:[#allocation5 + $0x100] sm:$0xf]
    %v107 = vld [vmem:[#allocation5 + $0x104] sm:$0xff]
    %v108 = vld [vmem:[#allocation5 + $0x10c] sm:$0xff]
    %v109 = vld [vmem:[#allocation5 + $0x114] sm:$0xf]
    %v110 = vld [vmem:[#allocation5 + $0x118] sm:$0xff]
    %v111 = vld [vmem:[#allocation5 + $0x120] sm:$0xff]
    %v112 = vld [vmem:[#allocation5 + $0x128] sm:$0xf]
    %v113 = vld [vmem:[#allocation5 + $0x12c] sm:$0xff]
    %v114 = vld [vmem:[#allocation5 + $0x134] sm:$0xff]
    %v115 = vld [vmem:[#allocation5 + $0x13c] sm:$0xf]
    %v116 = vld [vmem:[#allocation5 + $0x140] sm:$0xff]
    %v117 = vld [vmem:[#allocation5 + $0x148] sm:$0xff]
    %v118 = vld [vmem:[#allocation5 + $0x150] sm:$0xf]
    %v119 = vld [vmem:[#allocation5 + $0x154] sm:$0xff]
    %v120 = vld [vmem:[#allocation5 + $0x15c] sm:$0xff]
    %v121 = vld [vmem:[#allocation5 + $0x164] sm:$0xf]
    %v122 = vld [vmem:[#allocation5 + $0x168] sm:$0xff]
    %v123 = vld [vmem:[#allocation5 + $0x170] sm:$0xff]
    %v124 = vld [vmem:[#allocation5 + $0x178] sm:$0xf]
    %v125 = vld [vmem:[#allocation5 + $0x17c] sm:$0xff]
    %v126 = vld [vmem:[#allocation5 + $0x184] sm:$0xff]
    %v127 = vld [vmem:[#allocation5 + $0x18c] sm:$0xf]
    %v128 = vld [vmem:[#allocation5 + $0x190] sm:$0xff]
    %v129 = vld [vmem:[#allocation5 + $0x198] sm:$0xff]
    %v130 = vld [vmem:[#allocation5 + $0x1a0] sm:$0xf]
    %v131 = vld [vmem:[#allocation5 + $0x1a4] sm:$0xff]
    %v132 = vld [vmem:[#allocation5 + $0x1ac] sm:$0xff]
    %v133 = vld [vmem:[#allocation5 + $0x1b4] sm:$0xf]
    %v134 = vld [vmem:[#allocation5 + $0x1b8] sm:$0xff]
    %v135 = vld [vmem:[#allocation5 + $0x1c0] sm:$0xff]
    %v136 = vld [vmem:[#allocation5 + $0x1c8] sm:$0xf]
    %v137 = vld [vmem:[#allocation5 + $0x1cc] sm:$0xff]
    %v138 = vld [vmem:[#allocation5 + $0x1d4] sm:$0xff]
    %v139 = vld [vmem:[#allocation5 + $0x1dc] sm:$0xf]
    %v148 = vunpack.c.l.b16 %v60
    %v149 = vunpack.c.h.b16 %v60
    %v150 = vunpack.c.l.b16 %v61
    %v151 = vunpack.c.h.b16 %v61
    %v152 = vunpack.c.l.b16 %v62
    %v153 = vunpack.c.h.b16 %v62
    %v154 = vunpack.c.l.b16 %v63
    %v155 = vunpack.c.h.b16 %v63
    %v156 = vunpack.c.l.b16 %v64
    %v157 = vunpack.c.h.b16 %v64
    %v158 = vunpack.c.l.b16 %v65
    %v159 = vunpack.c.h.b16 %v65
    %v160 = vunpack.c.l.b16 %v66
    %v161 = vunpack.c.h.b16 %v66
    %v162 = vunpack.c.l.b16 %v67
    %v163 = vunpack.c.h.b16 %v67
    %v164 = vpack.c.b16 %v150, %v148
    %v165 = vpack.c.b16 %v151, %v149
    %v166 = vpack.c.b16 %v154, %v152
    %v167 = vpack.c.b16 %v155, %v153
    %v168 = vpack.c.b16 %v158, %v156
    %v169 = vpack.c.b16 %v159, %v157
    %v170 = vpack.c.b16 %v162, %v160
    %v171 = vpack.c.b16 %v163, %v161
    %v248 = vunpack.c.l.b16 %v68
    %v249 = vunpack.c.h.b16 %v68
    %v250 = vunpack.c.l.b16 %v69
    %v251 = vunpack.c.h.b16 %v69
    %v252 = vunpack.c.l.b16 %v70
    %v253 = vunpack.c.l.b16 %v71
    %v254 = vunpack.c.h.b16 %v71
    %v255 = vunpack.c.l.b16 %v72
    %v256 = vunpack.c.h.b16 %v72
    %v257 = vunpack.c.l.b16 %v73
    %v258 = vunpack.c.l.b16 %v74
    %v259 = vunpack.c.h.b16 %v74
    %v260 = vunpack.c.l.b16 %v75
    %v261 = vunpack.c.h.b16 %v75
    %v262 = vunpack.c.l.b16 %v76
    %v263 = vunpack.c.l.b16 %v77
    %v264 = vunpack.c.h.b16 %v77
    %v265 = vunpack.c.l.b16 %v78
    %v266 = vunpack.c.h.b16 %v78
    %v267 = vunpack.c.l.b16 %v79
    %v268 = vunpack.c.l.b16 %v80
    %v269 = vunpack.c.h.b16 %v80
    %v270 = vunpack.c.l.b16 %v81
    %v271 = vunpack.c.h.b16 %v81
    %v272 = vunpack.c.l.b16 %v82
    %v273 = vunpack.c.l.b16 %v83
    %v274 = vunpack.c.h.b16 %v83
    %v275 = vunpack.c.l.b16 %v84
    %v276 = vunpack.c.h.b16 %v84
    %v277 = vunpack.c.l.b16 %v85
    %v278 = vunpack.c.l.b16 %v86
    %v279 = vunpack.c.h.b16 %v86
    %v280 = vunpack.c.l.b16 %v87
    %v281 = vunpack.c.h.b16 %v87
    %v282 = vunpack.c.l.b16 %v88
    %v283 = vunpack.c.l.b16 %v89
    %v284 = vunpack.c.h.b16 %v89
    %v285 = vunpack.c.l.b16 %v90
    %v286 = vunpack.c.h.b16 %v90
    %v287 = vunpack.c.l.b16 %v91
    %v288 = vunpack.c.l.b16 %v92
    %v289 = vunpack.c.h.b16 %v92
    %v290 = vunpack.c.l.b16 %v93
    %v291 = vunpack.c.h.b16 %v93
    %v292 = vunpack.c.l.b16 %v94
    %v293 = vunpack.c.l.b16 %v95
    %v294 = vunpack.c.h.b16 %v95
    %v295 = vunpack.c.l.b16 %v96
    %v296 = vunpack.c.h.b16 %v96
    %v297 = vunpack.c.l.b16 %v97
    %v298 = vunpack.c.l.b16 %v98
    %v299 = vunpack.c.h.b16 %v98
    %v300 = vunpack.c.l.b16 %v99
    %v301 = vunpack.c.h.b16 %v99
    %v302 = vunpack.c.l.b16 %v100
    %v303 = vunpack.c.l.b16 %v101
    %v304 = vunpack.c.h.b16 %v101
    %v305 = vunpack.c.l.b16 %v102
    %v306 = vunpack.c.h.b16 %v102
    %v307 = vunpack.c.l.b16 %v103
    %v308 = vunpack.c.l.b16 %v104
    %v309 = vunpack.c.h.b16 %v104
    %v310 = vunpack.c.l.b16 %v105
    %v311 = vunpack.c.h.b16 %v105
    %v312 = vunpack.c.l.b16 %v106
    %v313 = vunpack.c.l.b16 %v107
    %v314 = vunpack.c.h.b16 %v107
    %v315 = vunpack.c.l.b16 %v108
    %v316 = vunpack.c.h.b16 %v108
    %v317 = vunpack.c.l.b16 %v109
    %v318 = vunpack.c.l.b16 %v110
    %v319 = vunpack.c.h.b16 %v110
    %v320 = vunpack.c.l.b16 %v111
    %v321 = vunpack.c.h.b16 %v111
    %v322 = vunpack.c.l.b16 %v112
    %v323 = vunpack.c.l.b16 %v113
    %v324 = vunpack.c.h.b16 %v113
    %v325 = vunpack.c.l.b16 %v114
    %v326 = vunpack.c.h.b16 %v114
    %v327 = vunpack.c.l.b16 %v115
    %v328 = vunpack.c.l.b16 %v116
    %v329 = vunpack.c.h.b16 %v116
    %v330 = vunpack.c.l.b16 %v117
    %v331 = vunpack.c.h.b16 %v117
    %v332 = vunpack.c.l.b16 %v118
    %v333 = vunpack.c.l.b16 %v119
    %v334 = vunpack.c.h.b16 %v119
    %v335 = vunpack.c.l.b16 %v120
    %v336 = vunpack.c.h.b16 %v120
    %v337 = vunpack.c.l.b16 %v121
    %v338 = vunpack.c.l.b16 %v122
    %v339 = vunpack.c.h.b16 %v122
    %v340 = vunpack.c.l.b16 %v123
    %v341 = vunpack.c.h.b16 %v123
    %v342 = vunpack.c.l.b16 %v124
    %v343 = vunpack.c.l.b16 %v125
    %v344 = vunpack.c.h.b16 %v125
    %v345 = vunpack.c.l.b16 %v126
    %v346 = vunpack.c.h.b16 %v126
    %v347 = vunpack.c.l.b16 %v127
    %v348 = vunpack.c.l.b16 %v128
    %v349 = vunpack.c.h.b16 %v128
    %v350 = vunpack.c.l.b16 %v129
    %v351 = vunpack.c.h.b16 %v129
    %v352 = vunpack.c.l.b16 %v130
    %v353 = vunpack.c.l.b16 %v131
    %v354 = vunpack.c.h.b16 %v131
    %v355 = vunpack.c.l.b16 %v132
    %v356 = vunpack.c.h.b16 %v132
    %v357 = vunpack.c.l.b16 %v133
    %v358 = vunpack.c.l.b16 %v134
    %v359 = vunpack.c.h.b16 %v134
    %v360 = vunpack.c.l.b16 %v135
    %v361 = vunpack.c.h.b16 %v135
    %v362 = vunpack.c.l.b16 %v136
    %v363 = vunpack.c.l.b16 %v137
    %v364 = vunpack.c.h.b16 %v137
    %v365 = vunpack.c.l.b16 %v138
    %v366 = vunpack.c.h.b16 %v138
    %v367 = vunpack.c.l.b16 %v139
    %v368 = vpack.c.b16 %v253, %v248
    %v369 = vpack.c.b16 %v254, %v249
    %v370 = vpack.c.b16 %v255, %v250
    %v371 = vpack.c.b16 %v256, %v251
    %v372 = vpack.c.b16 %v257, %v252
    %v373 = vpack.c.b16 %v263, %v258
    %v374 = vpack.c.b16 %v264, %v259
    %v375 = vpack.c.b16 %v265, %v260
    %v376 = vpack.c.b16 %v266, %v261
    %v377 = vpack.c.b16 %v267, %v262
    %v378 = vpack.c.b16 %v273, %v268
    %v379 = vpack.c.b16 %v274, %v269
    %v380 = vpack.c.b16 %v275, %v270
    %v381 = vpack.c.b16 %v276, %v271
    %v382 = vpack.c.b16 %v277, %v272
    %v383 = vpack.c.b16 %v283, %v278
    %v384 = vpack.c.b16 %v284, %v279
    %v385 = vpack.c.b16 %v285, %v280
    %v386 = vpack.c.b16 %v286, %v281
    %v387 = vpack.c.b16 %v287, %v282
    %v388 = vpack.c.b16 %v293, %v288
    %v389 = vpack.c.b16 %v294, %v289
    %v390 = vpack.c.b16 %v295, %v290
    %v391 = vpack.c.b16 %v296, %v291
    %v392 = vpack.c.b16 %v297, %v292
    %v393 = vpack.c.b16 %v303, %v298
    %v394 = vpack.c.b16 %v304, %v299
    %v395 = vpack.c.b16 %v305, %v300
    %v396 = vpack.c.b16 %v306, %v301
    %v397 = vpack.c.b16 %v307, %v302
    %v398 = vpack.c.b16 %v313, %v308
    %v399 = vpack.c.b16 %v314, %v309
    %v400 = vpack.c.b16 %v315, %v310
    %v401 = vpack.c.b16 %v316, %v311
    %v402 = vpack.c.b16 %v317, %v312
    %v403 = vpack.c.b16 %v323, %v318
    %v404 = vpack.c.b16 %v324, %v319
    %v405 = vpack.c.b16 %v325, %v320
    %v406 = vpack.c.b16 %v326, %v321
    %v407 = vpack.c.b16 %v327, %v322
    %v408 = vpack.c.b16 %v333, %v328
    %v409 = vpack.c.b16 %v334, %v329
    %v410 = vpack.c.b16 %v335, %v330
    %v411 = vpack.c.b16 %v336, %v331
    %v412 = vpack.c.b16 %v337, %v332
    %v413 = vpack.c.b16 %v343, %v338
    %v414 = vpack.c.b16 %v344, %v339
    %v415 = vpack.c.b16 %v345, %v340
    %v416 = vpack.c.b16 %v346, %v341
    %v417 = vpack.c.b16 %v347, %v342
    %v418 = vpack.c.b16 %v353, %v348
    %v419 = vpack.c.b16 %v354, %v349
    %v420 = vpack.c.b16 %v355, %v350
    %v421 = vpack.c.b16 %v356, %v351
    %v422 = vpack.c.b16 %v357, %v352
    %v423 = vpack.c.b16 %v363, %v358
    %v424 = vpack.c.b16 %v364, %v359
    %v425 = vpack.c.b16 %v365, %v360
    %v426 = vpack.c.b16 %v366, %v361
    %v427 = vpack.c.b16 %v367, %v362
    %vm488 = vcmask 523264
    %v490 = vsel %vm488, %v165, 0
    %v493 = vsel %vm488, %v167, 0
    %v496 = vsel %vm488, %v169, 0
    %v499 = vsel %vm488, %v171, 0
    %501 = vmatprep.subr.bf16.mxu0 %v369
    %502 = vmatpush1.bf16.msra.mxu0 %v368
    %503 = vmatprep.subr.bf16.mxu0 %v374
    %504 = vmatpush1.bf16.msra.mxu0 %v373
    %505 = vmatprep.subr.bf16.mxu0 %v379
    %506 = vmatpush1.bf16.msra.mxu0 %v378
    %507 = vmatprep.subr.bf16.mxu0 %v384
    %508 = vmatpush1.bf16.msra.mxu0 %v383
    %509 = vmatprep.subr.bf16.mxu0 %v389
    %510 = vmatpush1.bf16.msra.mxu0 %v388
    %511 = vmatprep.subr.bf16.mxu0 %v394
    %512 = vmatpush1.bf16.msra.mxu0 %v393
    %513 = vmatprep.subr.bf16.mxu0 %v399
    %514 = vmatpush1.bf16.msra.mxu0 %v398
    %515 = vmatprep.subr.bf16.mxu0 %v404
    %516 = vmatpush1.bf16.msra.mxu0 %v403
    %517 = vmatprep.subr.bf16.mxu0 %v409
    %518 = vmatpush1.bf16.msra.mxu0 %v408
    %519 = vmatprep.subr.bf16.mxu0 %v414
    %520 = vmatpush1.bf16.msra.mxu0 %v413
    %521 = vmatprep.subr.bf16.mxu0 %v419
    %522 = vmatpush1.bf16.msra.mxu0 %v418
    %523 = vmatprep.subr.bf16.mxu0 %v424
    %524 = vmatpush1.bf16.msra.mxu0 %v423
    %525 = vmatprep.subr.bf16.mxu0 0
    %526 = vmatpush1.bf16.msra.mxu0 0
    %527 = vmatprep.subr.bf16.mxu0 0
    %528 = vmatpush1.bf16.msra.mxu0 0
    %529 = vmatprep.subr.bf16.mxu0 0
    %530 = vmatpush1.bf16.msra.mxu0 0
    %531 = vmatprep.subr.bf16.mxu0 0
    %532 = vmatpush1.bf16.msra.mxu0 0
    %533 = vmatprep.mubr.bf16.mxu0 %v490
    %534 = vmatmul.mubr.bf16.gmra.mrb[0].mxu0 %v164
    %v535 = vpop.f32.mrb[0].mxu0
    %v536 = vadd.f32 0.0, %v535
    %v537 = vpop.f32.mrb[0].mxu0
    %v538 = vadd.f32 0.0, %v537
    %v539 = vpop.f32.mrb[0].mxu0
    %v540 = vadd.f32 0.0, %v539
    %v541 = vpop.f32.mrb[0].mxu0
    %v542 = vadd.f32 0.0, %v541
    %543 = vmatprep.mubr.bf16.mxu0 %v493
    %544 = vmatmul.mubr.bf16.gmra.mrb[0].mxu0 %v166
    %v545 = vpop.f32.mrb[0].mxu0
    %v546 = vadd.f32 0.0, %v545
    %v547 = vpop.f32.mrb[0].mxu0
    %v548 = vadd.f32 0.0, %v547
    %v549 = vpop.f32.mrb[0].mxu0
    %v550 = vadd.f32 0.0, %v549
    %v551 = vpop.f32.mrb[0].mxu0
    %v552 = vadd.f32 0.0, %v551
    %553 = vmatprep.mubr.bf16.mxu0 %v496
    %554 = vmatmul.mubr.bf16.gmra.mrb[0].mxu0 %v168
    %v555 = vpop.f32.mrb[0].mxu0
    %v556 = vadd.f32 0.0, %v555
    %v557 = vpop.f32.mrb[0].mxu0
    %v558 = vadd.f32 0.0, %v557
    %v559 = vpop.f32.mrb[0].mxu0
    %v560 = vadd.f32 0.0, %v559
    %v561 = vpop.f32.mrb[0].mxu0
    %v562 = vadd.f32 0.0, %v561
    %563 = vmatprep.mubr.bf16.mxu0 %v499
    %564 = vmatmul.mubr.bf16.gmra.mrb[0].mxu0 %v170
    %v565 = vpop.f32.mrb[0].mxu0
    %v566 = vadd.f32 0.0, %v565
    %v567 = vpop.f32.mrb[0].mxu0
    %v568 = vadd.f32 0.0, %v567
    %v569 = vpop.f32.mrb[0].mxu0
    %v570 = vadd.f32 0.0, %v569
    %v571 = vpop.f32.mrb[0].mxu0
    %v572 = vadd.f32 0.0, %v571
    %573 = vdwg.mxu0
    %574 = vmatprep.subr.bf16.mxu0 %v371
    %575 = vmatpush1.bf16.msra.mxu0 %v370
    %576 = vmatprep.subr.bf16.mxu0 %v376
    %577 = vmatpush1.bf16.msra.mxu0 %v375
    %578 = vmatprep.subr.bf16.mxu0 %v381
    %579 = vmatpush1.bf16.msra.mxu0 %v380
    %580 = vmatprep.subr.bf16.mxu0 %v386
    %581 = vmatpush1.bf16.msra.mxu0 %v385
    %582 = vmatprep.subr.bf16.mxu0 %v391
    %583 = vmatpush1.bf16.msra.mxu0 %v390
    %584 = vmatprep.subr.bf16.mxu0 %v396
    %585 = vmatpush1.bf16.msra.mxu0 %v395
    %586 = vmatprep.subr.bf16.mxu0 %v401
    %587 = vmatpush1.bf16.msra.mxu0 %v400
    %588 = vmatprep.subr.bf16.mxu0 %v406
    %589 = vmatpush1.bf16.msra.mxu0 %v405
    %590 = vmatprep.subr.bf16.mxu0 %v411
    %591 = vmatpush1.bf16.msra.mxu0 %v410
    %592 = vmatprep.subr.bf16.mxu0 %v416
    %593 = vmatpush1.bf16.msra.mxu0 %v415
    %594 = vmatprep.subr.bf16.mxu0 %v421
    %595 = vmatpush1.bf16.msra.mxu0 %v420
    %596 = vmatprep.subr.bf16.mxu0 %v426
    %597 = vmatpush1.bf16.msra.mxu0 %v425
    %598 = vmatprep.subr.bf16.mxu0 0
    %599 = vmatpush1.bf16.msra.mxu0 0
    %600 = vmatprep.subr.bf16.mxu0 0
    %601 = vmatpush1.bf16.msra.mxu0 0
    %602 = vmatprep.subr.bf16.mxu0 0
    %603 = vmatpush1.bf16.msra.mxu0 0
    %604 = vmatprep.subr.bf16.mxu0 0
    %605 = vmatpush1.bf16.msra.mxu0 0
    %606 = vmatprep.mubr.bf16.mxu0 %v490
    %607 = vmatmul.mubr.bf16.gmra.mrb[0].mxu0 %v164
    %v608 = vpop.f32.mrb[0].mxu0
    %v609 = vadd.f32 0.0, %v608
    %v610 = vpop.f32.mrb[0].mxu0
    %v611 = vadd.f32 0.0, %v610
    %v612 = vpop.f32.mrb[0].mxu0
    %v613 = vadd.f32 0.0, %v612
    %v614 = vpop.f32.mrb[0].mxu0
    %v615 = vadd.f32 0.0, %v614
    %616 = vmatprep.mubr.bf16.mxu0 %v493
    %617 = vmatmul.mubr.bf16.gmra.mrb[0].mxu0 %v166
    %v618 = vpop.f32.mrb[0].mxu0
    %v619 = vadd.f32 0.0, %v618
    %v620 = vpop.f32.mrb[0].mxu0
    %v621 = vadd.f32 0.0, %v620
    %v622 = vpop.f32.mrb[0].mxu0
    %v623 = vadd.f32 0.0, %v622
    %v624 = vpop.f32.mrb[0].mxu0
    %v625 = vadd.f32 0.0, %v624
    %626 = vmatprep.mubr.bf16.mxu0 %v496
    %627 = vmatmul.mubr.bf16.gmra.mrb[0].mxu0 %v168
    %v628 = vpop.f32.mrb[0].mxu0
    %v629 = vadd.f32 0.0, %v628
    %v630 = vpop.f32.mrb[0].mxu0
    %v631 = vadd.f32 0.0, %v630
    %v632 = vpop.f32.mrb[0].mxu0
    %v633 = vadd.f32 0.0, %v632
    %v634 = vpop.f32.mrb[0].mxu0
    %v635 = vadd.f32 0.0, %v634
    %636 = vmatprep.mubr.bf16.mxu0 %v499
    %637 = vmatmul.mubr.bf16.gmra.mrb[0].mxu0 %v170
    %v638 = vpop.f32.mrb[0].mxu0
    %v639 = vadd.f32 0.0, %v638
    %v640 = vpop.f32.mrb[0].mxu0
    %v641 = vadd.f32 0.0, %v640
    %v642 = vpop.f32.mrb[0].mxu0
    %v643 = vadd.f32 0.0, %v642
    %v644 = vpop.f32.mrb[0].mxu0
    %v645 = vadd.f32 0.0, %v644
    %646 = vdwg.mxu0
    %647 = vmatprep.subr.bf16.mxu0 0
    %648 = vmatpush1.bf16.msra.mxu0 %v372
    %649 = vmatprep.subr.bf16.mxu0 0
    %650 = vmatpush1.bf16.msra.mxu0 %v377
    %651 = vmatprep.subr.bf16.mxu0 0
    %652 = vmatpush1.bf16.msra.mxu0 %v382
    %653 = vmatprep.subr.bf16.mxu0 0
    %654 = vmatpush1.bf16.msra.mxu0 %v387
    %655 = vmatprep.subr.bf16.mxu0 0
    %656 = vmatpush1.bf16.msra.mxu0 %v392
    %657 = vmatprep.subr.bf16.mxu0 0
    %658 = vmatpush1.bf16.msra.mxu0 %v397
    %659 = vmatprep.subr.bf16.mxu0 0
    %660 = vmatpush1.bf16.msra.mxu0 %v402
    %661 = vmatprep.subr.bf16.mxu0 0
    %662 = vmatpush1.bf16.msra.mxu0 %v407
    %663 = vmatprep.subr.bf16.mxu0 0
    %664 = vmatpush1.bf16.msra.mxu0 %v412
    %665 = vmatprep.subr.bf16.mxu0 0
    %666 = vmatpush1.bf16.msra.mxu0 %v417
    %667 = vmatprep.subr.bf16.mxu0 0
    %668 = vmatpush1.bf16.msra.mxu0 %v422
    %669 = vmatprep.subr.bf16.mxu0 0
    %670 = vmatpush1.bf16.msra.mxu0 %v427
    %671 = vmatprep.subr.bf16.mxu0 0
    %672 = vmatpush1.bf16.msra.mxu0 0
    %673 = vmatprep.subr.bf16.mxu0 0
    %674 = vmatpush1.bf16.msra.mxu0 0
    %675 = vmatprep.subr.bf16.mxu0 0
    %676 = vmatpush1.bf16.msra.mxu0 0
    %677 = vmatprep.subr.bf16.mxu0 0
    %678 = vmatpush1.bf16.msra.mxu0 0
    %679 = vmatprep.mubr.bf16.mxu0 %v490
    %680 = vmatmul.mubr.bf16.gmra.mrb[0].mxu0 %v164
    %v681 = vpop.f32.mrb[0].mxu0
    %v682 = vadd.f32 0.0, %v681
    %v683 = vpop.f32.mrb[0].mxu0
    %v684 = vpop.f32.mrb[0].mxu0
    %v685 = vadd.f32 0.0, %v684
    %v686 = vpop.f32.mrb[0].mxu0
    %687 = vmatprep.mubr.bf16.mxu0 %v493
    %688 = vmatmul.mubr.bf16.gmra.mrb[0].mxu0 %v166
    %v689 = vpop.f32.mrb[0].mxu0
    %v690 = vadd.f32 0.0, %v689
    %v691 = vpop.f32.mrb[0].mxu0
    %v692 = vpop.f32.mrb[0].mxu0
    %v693 = vadd.f32 0.0, %v692
    %v694 = vpop.f32.mrb[0].mxu0
    %695 = vmatprep.mubr.bf16.mxu0 %v496
    %696 = vmatmul.mubr.bf16.gmra.mrb[0].mxu0 %v168
    %v697 = vpop.f32.mrb[0].mxu0
    %v698 = vadd.f32 0.0, %v697
    %v699 = vpop.f32.mrb[0].mxu0
    %v700 = vpop.f32.mrb[0].mxu0
    %v701 = vadd.f32 0.0, %v700
    %v702 = vpop.f32.mrb[0].mxu0
    %703 = vmatprep.mubr.bf16.mxu0 %v499
    %704 = vmatmul.mubr.bf16.gmra.mrb[0].mxu0 %v170
    %v705 = vpop.f32.mrb[0].mxu0
    %v706 = vadd.f32 0.0, %v705
    %v707 = vpop.f32.mrb[0].mxu0
    %v708 = vpop.f32.mrb[0].mxu0
    %v709 = vadd.f32 0.0, %v708
    %v710 = vpop.f32.mrb[0].mxu0
    %711 = vdwg.mxu0
    %v712 = vpack.c.bf16 %v540, %v536
    %v713 = vpack.c.bf16 %v542, %v538
    %v714 = vpack.c.bf16 %v613, %v609
    %v715 = vpack.c.bf16 %v615, %v611
    %v716 = vpack.c.bf16 %v685, %v682
    %v717 = vpack.c.bf16 %v550, %v546
    %v718 = vpack.c.bf16 %v552, %v548
    %v719 = vpack.c.bf16 %v623, %v619
    %v720 = vpack.c.bf16 %v625, %v621
    %v721 = vpack.c.bf16 %v693, %v690
    %v722 = vpack.c.bf16 %v560, %v556
    %v723 = vpack.c.bf16 %v562, %v558
    %v724 = vpack.c.bf16 %v633, %v629
    %v725 = vpack.c.bf16 %v635, %v631
    %v726 = vpack.c.bf16 %v701, %v698
    %v727 = vpack.c.bf16 %v570, %v566
    %v728 = vpack.c.bf16 %v572, %v568
    %v729 = vpack.c.bf16 %v643, %v639
    %v730 = vpack.c.bf16 %v645, %v641
    %v731 = vpack.c.bf16 %v709, %v706
    %v732 = vlaneseq
    %v733 = vshrl.u32 %v732, 7
    %v734 = vadd.s32 %v733, 8
    %v735 = vlaneseq
    %v736 = vand.u32 %v735, 127
    %vm737 = vcmp.le.s32.totalorder %v736, %v733
    %vm738 = vcmp.le.s32.totalorder %v736, %v734
    %740 = vrot.lane.b32.xlu0 %v713, 64
    %v741 = vpop.permute.xlu0 %740
    %vm742 = vcmask 261120
    %v744 = vsel %vm742, %v712, 0
    %v747 = vsel %vm742, %v741, 0
    %749 = vmatprep.subr.bf16.mxu0 0
    %750 = vmatpush1.bf16.xpose.msra.mxu0 %v747
    %751 = vmatprep.subr.bf16.mxu0 0
    %752 = vmatpush1.bf16.xpose.msra.mxu0 0
    %753 = vmatprep.subr.bf16.mxu0 0
    %754 = vmatpush1.bf16.xpose.msra.mxu0 0
    %755 = vmatprep.subr.bf16.mxu0 0
    %756 = vmatpush1.bf16.xpose.msra.mxu0 0
    %757 = vmatprep.subr.bf16.mxu0 0
    %758 = vmatpush1.bf16.xpose.msra.mxu0 0
    %759 = vmatprep.subr.bf16.mxu0 0
    %760 = vmatpush1.bf16.xpose.msra.mxu0 0
    %761 = vmatprep.subr.bf16.mxu0 0
    %762 = vmatpush1.bf16.xpose.msra.mxu0 0
    %763 = vmatprep.subr.bf16.mxu0 0
    %764 = vmatpush1.bf16.xpose.msra.mxu0 0
    %765 = vmatprep.subr.bf16.mxu0 0
    %766 = vmatpush1.bf16.xpose.msra.mxu0 0
    %767 = vmatprep.subr.bf16.mxu0 0
    %768 = vmatpush1.bf16.xpose.msra.mxu0 0
    %769 = vmatprep.subr.bf16.mxu0 0
    %770 = vmatpush1.bf16.xpose.msra.mxu0 0
    %771 = vmatprep.subr.bf16.mxu0 0
    %772 = vmatpush1.bf16.xpose.msra.mxu0 0
    %773 = vmatprep.subr.bf16.mxu0 0
    %774 = vmatpush1.bf16.xpose.msra.mxu0 0
    %775 = vmatprep.subr.bf16.mxu0 0
    %776 = vmatpush1.bf16.xpose.msra.mxu0 0
    %777 = vmatprep.subr.bf16.mxu0 0
    %778 = vmatpush1.bf16.xpose.msra.mxu0 0
    %779 = vmatprep.subr.bf16.mxu0 0
    %780 = vmatpush1.bf16.xpose.msra.mxu0 0
    %781 = vmatprep.mubr.bf16.mxu0 0
    %782 = vmatmul.mubr.bf16.gmra.mrb[0].mxu0 %v744
    %v783 = vpop.f32.mrb[0].mxu0
    %v784 = vadd.f32 0.0, %v783
    %v785 = vpop.f32.mrb[0].mxu0
    %v786 = vpop.f32.mrb[0].mxu0
    %v787 = vadd.f32 0.0, %v786
    %v788 = vpop.f32.mrb[0].mxu0
    %789 = vdwg.mxu0
    %791 = vrot.lane.b32.xlu0 %v718, 64
    %v792 = vpop.permute.xlu0 %791
    %v794 = vsel %vm742, %v717, 0
    %v797 = vsel %vm742, %v792, 0
    %799 = vmatprep.subr.bf16.mxu0 0
    %800 = vmatpush1.bf16.xpose.msra.mxu0 %v797
    %801 = vmatprep.subr.bf16.mxu0 0
    %802 = vmatpush1.bf16.xpose.msra.mxu0 0
    %803 = vmatprep.subr.bf16.mxu0 0
    %804 = vmatpush1.bf16.xpose.msra.mxu0 0
    %805 = vmatprep.subr.bf16.mxu0 0
    %806 = vmatpush1.bf16.xpose.msra.mxu0 0
    %807 = vmatprep.subr.bf16.mxu0 0
    %808 = vmatpush1.bf16.xpose.msra.mxu0 0
    %809 = vmatprep.subr.bf16.mxu0 0
    %810 = vmatpush1.bf16.xpose.msra.mxu0 0
    %811 = vmatprep.subr.bf16.mxu0 0
    %812 = vmatpush1.bf16.xpose.msra.mxu0 0
    %813 = vmatprep.subr.bf16.mxu0 0
    %814 = vmatpush1.bf16.xpose.msra.mxu0 0
    %815 = vmatprep.subr.bf16.mxu0 0
    %816 = vmatpush1.bf16.xpose.msra.mxu0 0
    %817 = vmatprep.subr.bf16.mxu0 0
    %818 = vmatpush1.bf16.xpose.msra.mxu0 0
    %819 = vmatprep.subr.bf16.mxu0 0
    %820 = vmatpush1.bf16.xpose.msra.mxu0 0
    %821 = vmatprep.subr.bf16.mxu0 0
    %822 = vmatpush1.bf16.xpose.msra.mxu0 0
    %823 = vmatprep.subr.bf16.mxu0 0
    %824 = vmatpush1.bf16.xpose.msra.mxu0 0
    %825 = vmatprep.subr.bf16.mxu0 0
    %826 = vmatpush1.bf16.xpose.msra.mxu0 0
    %827 = vmatprep.subr.bf16.mxu0 0
    %828 = vmatpush1.bf16.xpose.msra.mxu0 0
    %829 = vmatprep.subr.bf16.mxu0 0
    %830 = vmatpush1.bf16.xpose.msra.mxu0 0
    %831 = vmatprep.mubr.bf16.mxu0 0
    %832 = vmatmul.mubr.bf16.gmra.mrb[0].mxu0 %v794
    %v833 = vpop.f32.mrb[0].mxu0
    %v834 = vadd.f32 0.0, %v833
    %v835 = vpop.f32.mrb[0].mxu0
    %v836 = vpop.f32.mrb[0].mxu0
    %v837 = vadd.f32 0.0, %v836
    %v838 = vpop.f32.mrb[0].mxu0
    %839 = vdwg.mxu0
    %841 = vrot.lane.b32.xlu0 %v723, 64
    %v842 = vpop.permute.xlu0 %841
    %v844 = vsel %vm742, %v722, 0
    %v847 = vsel %vm742, %v842, 0
    %849 = vmatprep.subr.bf16.mxu0 0
    %850 = vmatpush1.bf16.xpose.msra.mxu0 %v847
    %851 = vmatprep.subr.bf16.mxu0 0
    %852 = vmatpush1.bf16.xpose.msra.mxu0 0
    %853 = vmatprep.subr.bf16.mxu0 0
    %854 = vmatpush1.bf16.xpose.msra.mxu0 0
    %855 = vmatprep.subr.bf16.mxu0 0
    %856 = vmatpush1.bf16.xpose.msra.mxu0 0
    %857 = vmatprep.subr.bf16.mxu0 0
    %858 = vmatpush1.bf16.xpose.msra.mxu0 0
    %859 = vmatprep.subr.bf16.mxu0 0
    %860 = vmatpush1.bf16.xpose.msra.mxu0 0
    %861 = vmatprep.subr.bf16.mxu0 0
    %862 = vmatpush1.bf16.xpose.msra.mxu0 0
    %863 = vmatprep.subr.bf16.mxu0 0
    %864 = vmatpush1.bf16.xpose.msra.mxu0 0
    %865 = vmatprep.subr.bf16.mxu0 0
    %866 = vmatpush1.bf16.xpose.msra.mxu0 0
    %867 = vmatprep.subr.bf16.mxu0 0
    %868 = vmatpush1.bf16.xpose.msra.mxu0 0
    %869 = vmatprep.subr.bf16.mxu0 0
    %870 = vmatpush1.bf16.xpose.msra.mxu0 0
    %871 = vmatprep.subr.bf16.mxu0 0
    %872 = vmatpush1.bf16.xpose.msra.mxu0 0
    %873 = vmatprep.subr.bf16.mxu0 0
    %874 = vmatpush1.bf16.xpose.msra.mxu0 0
    %875 = vmatprep.subr.bf16.mxu0 0
    %876 = vmatpush1.bf16.xpose.msra.mxu0 0
    %877 = vmatprep.subr.bf16.mxu0 0
    %878 = vmatpush1.bf16.xpose.msra.mxu0 0
    %879 = vmatprep.subr.bf16.mxu0 0
    %880 = vmatpush1.bf16.xpose.msra.mxu0 0
    %881 = vmatprep.mubr.bf16.mxu0 0
    %882 = vmatmul.mubr.bf16.gmra.mrb[0].mxu0 %v844
    %v883 = vpop.f32.mrb[0].mxu0
    %v884 = vadd.f32 0.0, %v883
    %v885 = vpop.f32.mrb[0].mxu0
    %v886 = vpop.f32.mrb[0].mxu0
    %v887 = vadd.f32 0.0, %v886
    %v888 = vpop.f32.mrb[0].mxu0
    %889 = vdwg.mxu0
    %891 = vrot.lane.b32.xlu0 %v728, 64
    %v892 = vpop.permute.xlu0 %891
    %v894 = vsel %vm742, %v727, 0
    %v897 = vsel %vm742, %v892, 0
    %899 = vmatprep.subr.bf16.mxu0 0
    %900 = vmatpush1.bf16.xpose.msra.mxu0 %v897
    %901 = vmatprep.subr.bf16.mxu0 0
    %902 = vmatpush1.bf16.xpose.msra.mxu0 0
    %903 = vmatprep.subr.bf16.mxu0 0
    %904 = vmatpush1.bf16.xpose.msra.mxu0 0
    %905 = vmatprep.subr.bf16.mxu0 0
    %906 = vmatpush1.bf16.xpose.msra.mxu0 0
    %907 = vmatprep.subr.bf16.mxu0 0
    %908 = vmatpush1.bf16.xpose.msra.mxu0 0
    %909 = vmatprep.subr.bf16.mxu0 0
    %910 = vmatpush1.bf16.xpose.msra.mxu0 0
    %911 = vmatprep.subr.bf16.mxu0 0
    %912 = vmatpush1.bf16.xpose.msra.mxu0 0
    %913 = vmatprep.subr.bf16.mxu0 0
    %914 = vmatpush1.bf16.xpose.msra.mxu0 0
    %915 = vmatprep.subr.bf16.mxu0 0
    %916 = vmatpush1.bf16.xpose.msra.mxu0 0
    %917 = vmatprep.subr.bf16.mxu0 0
    %918 = vmatpush1.bf16.xpose.msra.mxu0 0
    %919 = vmatprep.subr.bf16.mxu0 0
    %920 = vmatpush1.bf16.xpose.msra.mxu0 0
    %921 = vmatprep.subr.bf16.mxu0 0
    %922 = vmatpush1.bf16.xpose.msra.mxu0 0
    %923 = vmatprep.subr.bf16.mxu0 0
    %924 = vmatpush1.bf16.xpose.msra.mxu0 0
    %925 = vmatprep.subr.bf16.mxu0 0
    %926 = vmatpush1.bf16.xpose.msra.mxu0 0
    %927 = vmatprep.subr.bf16.mxu0 0
    %928 = vmatpush1.bf16.xpose.msra.mxu0 0
    %929 = vmatprep.subr.bf16.mxu0 0
    %930 = vmatpush1.bf16.xpose.msra.mxu0 0
    %931 = vmatprep.mubr.bf16.mxu0 0
    %932 = vmatmul.mubr.bf16.gmra.mrb[0].mxu0 %v894
    %v933 = vpop.f32.mrb[0].mxu0
    %v934 = vadd.f32 0.0, %v933
    %v935 = vpop.f32.mrb[0].mxu0
    %v936 = vpop.f32.mrb[0].mxu0
    %v937 = vadd.f32 0.0, %v936
    %v938 = vpop.f32.mrb[0].mxu0
    %939 = vdwg.mxu0
    %v940 = vsel %vm737, 1, 0
    %v941 = vsel %vm738, 1, 0
    %vm942 = vcmp.eq.s32.totalorder %v940, 1
    %vm943 = vcmp.eq.s32.totalorder %v941, 1
    %v944 = vsel %vm942, %v784, -inf
    %v945 = vsel %vm943, %v787, -inf
    %v946 = vsel %vm942, %v834, -inf
    %v947 = vsel %vm943, %v837, -inf
    %v948 = vsel %vm942, %v884, -inf
    %v949 = vsel %vm943, %v887, -inf
    %v950 = vsel %vm942, %v934, -inf
    %v951 = vsel %vm943, %v937, -inf
    %vm952 = vcmask 130048
    %v953 = vsel %vm952, %v944, -inf
    %954 = vmax.xlane.f32.xlu0 %v953
    %v955 = vpop.xlane.xlu0 %954
    %v956 = vsel %vm952, %v945, -inf
    %957 = vmax.xlane.f32.xlu0 %v956
    %v958 = vpop.xlane.xlu0 %957
    %v959 = vsel %vm952, %v946, -inf
    %960 = vmax.xlane.f32.xlu0 %v959
    %v961 = vpop.xlane.xlu0 %960
    %v962 = vsel %vm952, %v947, -inf
    %963 = vmax.xlane.f32.xlu0 %v962
    %v964 = vpop.xlane.xlu0 %963
    %v965 = vsel %vm952, %v948, -inf
    %966 = vmax.xlane.f32.xlu0 %v965
    %v967 = vpop.xlane.xlu0 %966
    %v968 = vsel %vm952, %v949, -inf
    %969 = vmax.xlane.f32.xlu0 %v968
    %v970 = vpop.xlane.xlu0 %969
    %v971 = vsel %vm952, %v950, -inf
    %972 = vmax.xlane.f32.xlu0 %v971
    %v973 = vpop.xlane.xlu0 %972
    %v974 = vsel %vm952, %v951, -inf
    %975 = vmax.xlane.f32.xlu0 %v974
    %v976 = vpop.xlane.xlu0 %975
    %v977 = vsub.f32 %v944, %v955
    %v978 = vsub.f32 %v945, %v958
    %v979 = vsub.f32 %v946, %v961
    %v980 = vsub.f32 %v947, %v964
    %v981 = vsub.f32 %v948, %v967
    %v982 = vsub.f32 %v949, %v970
    %v983 = vsub.f32 %v950, %v973
    %v984 = vsub.f32 %v951, %v976
    %v985 = vmul.f32 %v977, 1.442695
    %v986 = vpow.pop %v985
    %v987 = vmul.f32 %v978, 1.442695
    %v988 = vpow.pop %v987
    %v989 = vmul.f32 %v979, 1.442695
    %v990 = vpow.pop %v989
    %v991 = vmul.f32 %v980, 1.442695
    %v992 = vpow.pop %v991
    %v993 = vmul.f32 %v981, 1.442695
    %v994 = vpow.pop %v993
    %v995 = vmul.f32 %v982, 1.442695
    %v996 = vpow.pop %v995
    %v997 = vmul.f32 %v983, 1.442695
    %v998 = vpow.pop %v997
    %v999 = vmul.f32 %v984, 1.442695
    %v1000 = vpow.pop %v999
    %v1001 = vsel %vm952, %v986, 0.0
    %1002 = vadd.xlane.f32.xlu0 %v1001
    %v1003 = vpop.xlane.xlu0 %1002
    %v1004 = vsel %vm952, %v988, 0.0
    %1005 = vadd.xlane.f32.xlu0 %v1004
    %v1006 = vpop.xlane.xlu0 %1005
    %v1007 = vsel %vm952, %v990, 0.0
    %1008 = vadd.xlane.f32.xlu0 %v1007
    %v1009 = vpop.xlane.xlu0 %1008
    %v1010 = vsel %vm952, %v992, 0.0
    %1011 = vadd.xlane.f32.xlu0 %v1010
    %v1012 = vpop.xlane.xlu0 %1011
    %v1013 = vsel %vm952, %v994, 0.0
    %1014 = vadd.xlane.f32.xlu0 %v1013
    %v1015 = vpop.xlane.xlu0 %1014
    %v1016 = vsel %vm952, %v996, 0.0
    %1017 = vadd.xlane.f32.xlu0 %v1016
    %v1018 = vpop.xlane.xlu0 %1017
    %v1019 = vsel %vm952, %v998, 0.0
    %1020 = vadd.xlane.f32.xlu0 %v1019
    %v1021 = vpop.xlane.xlu0 %1020
    %v1022 = vsel %vm952, %v1000, 0.0
    %1023 = vadd.xlane.f32.xlu0 %v1022
    %v1024 = vpop.xlane.xlu0 %1023
    %v1025 = vpack.c.bf16 %v988, %v986
    %v1026 = vpack.c.bf16 %v992, %v990
    %v1027 = vpack.c.bf16 %v996, %v994
    %v1028 = vpack.c.bf16 %v1000, %v998
    %v1030 = vsel %vm952, %v1025, 0
    %1032 = vmatprep.subr.bf16.mxu0 0
    %1033 = vmatpush1.bf16.msra.mxu0 %v715
    %1034 = vmatprep.subr.bf16.mxu0 0
    %1035 = vmatpush1.bf16.msra.mxu0 0
    %1036 = vmatprep.subr.bf16.mxu0 0
    %1037 = vmatpush1.bf16.msra.mxu0 0
    %1038 = vmatprep.subr.bf16.mxu0 0
    %1039 = vmatpush1.bf16.msra.mxu0 0
    %1040 = vmatprep.subr.bf16.mxu0 0
    %1041 = vmatpush1.bf16.msra.mxu0 0
    %1042 = vmatprep.subr.bf16.mxu0 0
    %1043 = vmatpush1.bf16.msra.mxu0 0
    %1044 = vmatprep.subr.bf16.mxu0 0
    %1045 = vmatpush1.bf16.msra.mxu0 0
    %1046 = vmatprep.subr.bf16.mxu0 0
    %1047 = vmatpush1.bf16.msra.mxu0 0
    %1048 = vmatprep.subr.bf16.mxu0 0
    %1049 = vmatpush1.bf16.msra.mxu0 0
    %1050 = vmatprep.subr.bf16.mxu0 0
    %1051 = vmatpush1.bf16.msra.mxu0 0
    %1052 = vmatprep.subr.bf16.mxu0 0
    %1053 = vmatpush1.bf16.msra.mxu0 0
    %1054 = vmatprep.subr.bf16.mxu0 0
    %1055 = vmatpush1.bf16.msra.mxu0 0
    %1056 = vmatprep.subr.bf16.mxu0 0
    %1057 = vmatpush1.bf16.msra.mxu0 0
    %1058 = vmatprep.subr.bf16.mxu0 0
    %1059 = vmatpush1.bf16.msra.mxu0 0
    %1060 = vmatprep.subr.bf16.mxu0 0
    %1061 = vmatpush1.bf16.msra.mxu0 0
    %1062 = vmatprep.subr.bf16.mxu0 0
    %1063 = vmatpush1.bf16.msra.mxu0 0
    %1064 = vmatprep.mubr.bf16.mxu0 0
    %1065 = vmatmul.mubr.bf16.gmra.mrb[0].mxu0 %v1030
    %v1066 = vpop.f32.mrb[0].mxu0
    %v1067 = vadd.f32 0.0, %v1066
    %v1068 = vpop.f32.mrb[0].mxu0
    %v1069 = vpop.f32.mrb[0].mxu0
    %v1070 = vadd.f32 0.0, %v1069
    %v1071 = vpop.f32.mrb[0].mxu0
    %1072 = vdwg.mxu0
    %v1074 = vsel %vm952, %v1026, 0
    %1076 = vmatprep.subr.bf16.mxu0 0
    %1077 = vmatpush1.bf16.msra.mxu0 %v720
    %1078 = vmatprep.subr.bf16.mxu0 0
    %1079 = vmatpush1.bf16.msra.mxu0 0
    %1080 = vmatprep.subr.bf16.mxu0 0
    %1081 = vmatpush1.bf16.msra.mxu0 0
    %1082 = vmatprep.subr.bf16.mxu0 0
    %1083 = vmatpush1.bf16.msra.mxu0 0
    %1084 = vmatprep.subr.bf16.mxu0 0
    %1085 = vmatpush1.bf16.msra.mxu0 0
    %1086 = vmatprep.subr.bf16.mxu0 0
    %1087 = vmatpush1.bf16.msra.mxu0 0
    %1088 = vmatprep.subr.bf16.mxu0 0
    %1089 = vmatpush1.bf16.msra.mxu0 0
    %1090 = vmatprep.subr.bf16.mxu0 0
    %1091 = vmatpush1.bf16.msra.mxu0 0
    %1092 = vmatprep.subr.bf16.mxu0 0
    %1093 = vmatpush1.bf16.msra.mxu0 0
    %1094 = vmatprep.subr.bf16.mxu0 0
    %1095 = vmatpush1.bf16.msra.mxu0 0
    %1096 = vmatprep.subr.bf16.mxu0 0
    %1097 = vmatpush1.bf16.msra.mxu0 0
    %1098 = vmatprep.subr.bf16.mxu0 0
    %1099 = vmatpush1.bf16.msra.mxu0 0
    %1100 = vmatprep.subr.bf16.mxu0 0
    %1101 = vmatpush1.bf16.msra.mxu0 0
    %1102 = vmatprep.subr.bf16.mxu0 0
    %1103 = vmatpush1.bf16.msra.mxu0 0
    %1104 = vmatprep.subr.bf16.mxu0 0
    %1105 = vmatpush1.bf16.msra.mxu0 0
    %1106 = vmatprep.subr.bf16.mxu0 0
    %1107 = vmatpush1.bf16.msra.mxu0 0
    %1108 = vmatprep.mubr.bf16.mxu0 0
    %1109 = vmatmul.mubr.bf16.gmra.mrb[0].mxu0 %v1074
    %v1110 = vpop.f32.mrb[0].mxu0
    %v1111 = vadd.f32 0.0, %v1110
    %v1112 = vpop.f32.mrb[0].mxu0
    %v1113 = vpop.f32.mrb[0].mxu0
    %v1114 = vadd.f32 0.0, %v1113
    %v1115 = vpop.f32.mrb[0].mxu0
    %1116 = vdwg.mxu0
    %v1118 = vsel %vm952, %v1027, 0
    %1120 = vmatprep.subr.bf16.mxu0 0
    %1121 = vmatpush1.bf16.msra.mxu0 %v725
    %1122 = vmatprep.subr.bf16.mxu0 0
    %1123 = vmatpush1.bf16.msra.mxu0 0
    %1124 = vmatprep.subr.bf16.mxu0 0
    %1125 = vmatpush1.bf16.msra.mxu0 0
    %1126 = vmatprep.subr.bf16.mxu0 0
    %1127 = vmatpush1.bf16.msra.mxu0 0
    %1128 = vmatprep.subr.bf16.mxu0 0
    %1129 = vmatpush1.bf16.msra.mxu0 0
    %1130 = vmatprep.subr.bf16.mxu0 0
    %1131 = vmatpush1.bf16.msra.mxu0 0
    %1132 = vmatprep.subr.bf16.mxu0 0
    %1133 = vmatpush1.bf16.msra.mxu0 0
    %1134 = vmatprep.subr.bf16.mxu0 0
    %1135 = vmatpush1.bf16.msra.mxu0 0
    %1136 = vmatprep.subr.bf16.mxu0 0
    %1137 = vmatpush1.bf16.msra.mxu0 0
    %1138 = vmatprep.subr.bf16.mxu0 0
    %1139 = vmatpush1.bf16.msra.mxu0 0
    %1140 = vmatprep.subr.bf16.mxu0 0
    %1141 = vmatpush1.bf16.msra.mxu0 0
    %1142 = vmatprep.subr.bf16.mxu0 0
    %1143 = vmatpush1.bf16.msra.mxu0 0
    %1144 = vmatprep.subr.bf16.mxu0 0
    %1145 = vmatpush1.bf16.msra.mxu0 0
    %1146 = vmatprep.subr.bf16.mxu0 0
    %1147 = vmatpush1.bf16.msra.mxu0 0
    %1148 = vmatprep.subr.bf16.mxu0 0
    %1149 = vmatpush1.bf16.msra.mxu0 0
    %1150 = vmatprep.subr.bf16.mxu0 0
    %1151 = vmatpush1.bf16.msra.mxu0 0
    %1152 = vmatprep.mubr.bf16.mxu0 0
    %1153 = vmatmul.mubr.bf16.gmra.mrb[0].mxu0 %v1118
    %v1154 = vpop.f32.mrb[0].mxu0
    %v1155 = vadd.f32 0.0, %v1154
    %v1156 = vpop.f32.mrb[0].mxu0
    %v1157 = vpop.f32.mrb[0].mxu0
    %v1158 = vadd.f32 0.0, %v1157
    %v1159 = vpop.f32.mrb[0].mxu0
    %1160 = vdwg.mxu0
    %v1162 = vsel %vm952, %v1028, 0
    %1164 = vmatprep.subr.bf16.mxu0 0
    %1165 = vmatpush1.bf16.msra.mxu0 %v730
    %1166 = vmatprep.subr.bf16.mxu0 0
    %1167 = vmatpush1.bf16.msra.mxu0 0
    %1168 = vmatprep.subr.bf16.mxu0 0
    %1169 = vmatpush1.bf16.msra.mxu0 0
    %1170 = vmatprep.subr.bf16.mxu0 0
    %1171 = vmatpush1.bf16.msra.mxu0 0
    %1172 = vmatprep.subr.bf16.mxu0 0
    %1173 = vmatpush1.bf16.msra.mxu0 0
    %1174 = vmatprep.subr.bf16.mxu0 0
    %1175 = vmatpush1.bf16.msra.mxu0 0
    %1176 = vmatprep.subr.bf16.mxu0 0
    %1177 = vmatpush1.bf16.msra.mxu0 0
    %1178 = vmatprep.subr.bf16.mxu0 0
    %1179 = vmatpush1.bf16.msra.mxu0 0
    %1180 = vmatprep.subr.bf16.mxu0 0
    %1181 = vmatpush1.bf16.msra.mxu0 0
    %1182 = vmatprep.subr.bf16.mxu0 0
    %1183 = vmatpush1.bf16.msra.mxu0 0
    %1184 = vmatprep.subr.bf16.mxu0 0
    %1185 = vmatpush1.bf16.msra.mxu0 0
    %1186 = vmatprep.subr.bf16.mxu0 0
    %1187 = vmatpush1.bf16.msra.mxu0 0
    %1188 = vmatprep.subr.bf16.mxu0 0
    %1189 = vmatpush1.bf16.msra.mxu0 0
    %1190 = vmatprep.subr.bf16.mxu0 0
    %1191 = vmatpush1.bf16.msra.mxu0 0
    %1192 = vmatprep.subr.bf16.mxu0 0
    %1193 = vmatpush1.bf16.msra.mxu0 0
    %1194 = vmatprep.subr.bf16.mxu0 0
    %1195 = vmatpush1.bf16.msra.mxu0 0
    %1196 = vmatprep.mubr.bf16.mxu0 0
    %1197 = vmatmul.mubr.bf16.gmra.mrb[0].mxu0 %v1162
    %v1198 = vpop.f32.mrb[0].mxu0
    %v1199 = vadd.f32 0.0, %v1198
    %v1200 = vpop.f32.mrb[0].mxu0
    %v1201 = vpop.f32.mrb[0].mxu0
    %v1202 = vadd.f32 0.0, %v1201
    %v1203 = vpop.f32.mrb[0].mxu0
    %1204 = vdwg.mxu0
    %v1205 = vrcp.pop %v1003
    %v1206 = vrcp.pop %v1006
    %v1207 = vrcp.pop %v1009
    %v1208 = vrcp.pop %v1012
    %v1209 = vrcp.pop %v1015
    %v1210 = vrcp.pop %v1018
    %v1211 = vrcp.pop %v1021
    %v1212 = vrcp.pop %v1024
    %v1213 = vmul.f32 %v1067, %v1205
    %v1214 = vmul.f32 %v1070, %v1206
    %v1215 = vmul.f32 %v1111, %v1207
    %v1216 = vmul.f32 %v1114, %v1208
    %v1217 = vmul.f32 %v1155, %v1209
    %v1218 = vmul.f32 %v1158, %v1210
    %v1219 = vmul.f32 %v1199, %v1211
    %v1220 = vmul.f32 %v1202, %v1212
    %v1221 = vpack.c.bf16 %v1214, %v1213
    %v1222 = vpack.c.bf16 %v1216, %v1215
    %v1223 = vpack.c.bf16 %v1218, %v1217
    %v1224 = vpack.c.bf16 %v1220, %v1219
    %1226 = vrot.lane.b32.xlu0 %v712, 96
    %v1227 = vpop.permute.xlu0 %1226
    %1228 = vrot.lane.b32.xlu0 %v713, 32
    %v1229 = vpop.permute.xlu0 %1228
    %v1231 = vsel %vm742, %v1227, 0
    %v1234 = vsel %vm742, %v1229, 0
    %1236 = vmatprep.subr.bf16.mxu0 0
    %1237 = vmatpush1.bf16.xpose.msra.mxu0 %v1234
    %1238 = vmatprep.subr.bf16.mxu0 0
    %1239 = vmatpush1.bf16.xpose.msra.mxu0 0
    %1240 = vmatprep.subr.bf16.mxu0 0
    %1241 = vmatpush1.bf16.xpose.msra.mxu0 0
    %1242 = vmatprep.subr.bf16.mxu0 0
    %1243 = vmatpush1.bf16.xpose.msra.mxu0 0
    %1244 = vmatprep.subr.bf16.mxu0 0
    %1245 = vmatpush1.bf16.xpose.msra.mxu0 0
    %1246 = vmatprep.subr.bf16.mxu0 0
    %1247 = vmatpush1.bf16.xpose.msra.mxu0 0
    %1248 = vmatprep.subr.bf16.mxu0 0
    %1249 = vmatpush1.bf16.xpose.msra.mxu0 0
    %1250 = vmatprep.subr.bf16.mxu0 0
    %1251 = vmatpush1.bf16.xpose.msra.mxu0 0
    %1252 = vmatprep.subr.bf16.mxu0 0
    %1253 = vmatpush1.bf16.xpose.msra.mxu0 0
    %1254 = vmatprep.subr.bf16.mxu0 0
    %1255 = vmatpush1.bf16.xpose.msra.mxu0 0
    %1256 = vmatprep.subr.bf16.mxu0 0
    %1257 = vmatpush1.bf16.xpose.msra.mxu0 0
    %1258 = vmatprep.subr.bf16.mxu0 0
    %1259 = vmatpush1.bf16.xpose.msra.mxu0 0
    %1260 = vmatprep.subr.bf16.mxu0 0
    %1261 = vmatpush1.bf16.xpose.msra.mxu0 0
    %1262 = vmatprep.subr.bf16.mxu0 0
    %1263 = vmatpush1.bf16.xpose.msra.mxu0 0
    %1264 = vmatprep.subr.bf16.mxu0 0
    %1265 = vmatpush1.bf16.xpose.msra.mxu0 0
    %1266 = vmatprep.subr.bf16.mxu0 0
    %1267 = vmatpush1.bf16.xpose.msra.mxu0 0
    %1268 = vmatprep.mubr.bf16.mxu0 0
    %1269 = vmatmul.mubr.bf16.gmra.mrb[0].mxu0 %v1231
    %v1270 = vpop.f32.mrb[0].mxu0
    %v1271 = vadd.f32 0.0, %v1270
    %v1272 = vpop.f32.mrb[0].mxu0
    %v1273 = vpop.f32.mrb[0].mxu0
    %v1274 = vadd.f32 0.0, %v1273
    %v1275 = vpop.f32.mrb[0].mxu0
    %1276 = vdwg.mxu0
    %1278 = vrot.lane.b32.xlu0 %v717, 96
    %v1279 = vpop.permute.xlu0 %1278
    %1280 = vrot.lane.b32.xlu0 %v718, 32
    %v1281 = vpop.permute.xlu0 %1280
    %v1283 = vsel %vm742, %v1279, 0
    %v1286 = vsel %vm742, %v1281, 0
    %1288 = vmatprep.subr.bf16.mxu0 0
    %1289 = vmatpush1.bf16.xpose.msra.mxu0 %v1286
    %1290 = vmatprep.subr.bf16.mxu0 0
    %1291 = vmatpush1.bf16.xpose.msra.mxu0 0
    %1292 = vmatprep.subr.bf16.mxu0 0
    %1293 = vmatpush1.bf16.xpose.msra.mxu0 0
    %1294 = vmatprep.subr.bf16.mxu0 0
    %1295 = vmatpush1.bf16.xpose.msra.mxu0 0
    %1296 = vmatprep.subr.bf16.mxu0 0
    %1297 = vmatpush1.bf16.xpose.msra.mxu0 0
    %1298 = vmatprep.subr.bf16.mxu0 0
    %1299 = vmatpush1.bf16.xpose.msra.mxu0 0
    %1300 = vmatprep.subr.bf16.mxu0 0
    %1301 = vmatpush1.bf16.xpose.msra.mxu0 0
    %1302 = vmatprep.subr.bf16.mxu0 0
    %1303 = vmatpush1.bf16.xpose.msra.mxu0 0
    %1304 = vmatprep.subr.bf16.mxu0 0
    %1305 = vmatpush1.bf16.xpose.msra.mxu0 0
    %1306 = vmatprep.subr.bf16.mxu0 0
    %1307 = vmatpush1.bf16.xpose.msra.mxu0 0
    %1308 = vmatprep.subr.bf16.mxu0 0
    %1309 = vmatpush1.bf16.xpose.msra.mxu0 0
    %1310 = vmatprep.subr.bf16.mxu0 0
    %1311 = vmatpush1.bf16.xpose.msra.mxu0 0
    %1312 = vmatprep.subr.bf16.mxu0 0
    %1313 = vmatpush1.bf16.xpose.msra.mxu0 0
    %1314 = vmatprep.subr.bf16.mxu0 0
    %1315 = vmatpush1.bf16.xpose.msra.mxu0 0
    %1316 = vmatprep.subr.bf16.mxu0 0
    %1317 = vmatpush1.bf16.xpose.msra.mxu0 0
    %1318 = vmatprep.subr.bf16.mxu0 0
    %1319 = vmatpush1.bf16.xpose.msra.mxu0 0
    %1320 = vmatprep.mubr.bf16.mxu0 0
    %1321 = vmatmul.mubr.bf16.gmra.mrb[0].mxu0 %v1283
    %v1322 = vpop.f32.mrb[0].mxu0
    %v1323 = vadd.f32 0.0, %v1322
    %v1324 = vpop.f32.mrb[0].mxu0
    %v1325 = vpop.f32.mrb[0].mxu0
    %v1326 = vadd.f32 0.0, %v1325
    %v1327 = vpop.f32.mrb[0].mxu0
    %1328 = vdwg.mxu0
    %1330 = vrot.lane.b32.xlu0 %v722, 96
    %v1331 = vpop.permute.xlu0 %1330
    %1332 = vrot.lane.b32.xlu0 %v723, 32
    %v1333 = vpop.permute.xlu0 %1332
    %v1335 = vsel %vm742, %v1331, 0
    %v1338 = vsel %vm742, %v1333, 0
    %1340 = vmatprep.subr.bf16.mxu0 0
    %1341 = vmatpush1.bf16.xpose.msra.mxu0 %v1338
    %1342 = vmatprep.subr.bf16.mxu0 0
    %1343 = vmatpush1.bf16.xpose.msra.mxu0 0
    %1344 = vmatprep.subr.bf16.mxu0 0
    %1345 = vmatpush1.bf16.xpose.msra.mxu0 0
    %1346 = vmatprep.subr.bf16.mxu0 0
    %1347 = vmatpush1.bf16.xpose.msra.mxu0 0
    %1348 = vmatprep.subr.bf16.mxu0 0
    %1349 = vmatpush1.bf16.xpose.msra.mxu0 0
    %1350 = vmatprep.subr.bf16.mxu0 0
    %1351 = vmatpush1.bf16.xpose.msra.mxu0 0
    %1352 = vmatprep.subr.bf16.mxu0 0
    %1353 = vmatpush1.bf16.xpose.msra.mxu0 0
    %1354 = vmatprep.subr.bf16.mxu0 0
    %1355 = vmatpush1.bf16.xpose.msra.mxu0 0
    %1356 = vmatprep.subr.bf16.mxu0 0
    %1357 = vmatpush1.bf16.xpose.msra.mxu0 0
    %1358 = vmatprep.subr.bf16.mxu0 0
    %1359 = vmatpush1.bf16.xpose.msra.mxu0 0
    %1360 = vmatprep.subr.bf16.mxu0 0
    %1361 = vmatpush1.bf16.xpose.msra.mxu0 0
    %1362 = vmatprep.subr.bf16.mxu0 0
    %1363 = vmatpush1.bf16.xpose.msra.mxu0 0
    %1364 = vmatprep.subr.bf16.mxu0 0
    %1365 = vmatpush1.bf16.xpose.msra.mxu0 0
    %1366 = vmatprep.subr.bf16.mxu0 0
    %1367 = vmatpush1.bf16.xpose.msra.mxu0 0
    %1368 = vmatprep.subr.bf16.mxu0 0
    %1369 = vmatpush1.bf16.xpose.msra.mxu0 0
    %1370 = vmatprep.subr.bf16.mxu0 0
    %1371 = vmatpush1.bf16.xpose.msra.mxu0 0
    %1372 = vmatprep.mubr.bf16.mxu0 0
    %1373 = vmatmul.mubr.bf16.gmra.mrb[0].mxu0 %v1335
    %v1374 = vpop.f32.mrb[0].mxu0
    %v1375 = vadd.f32 0.0, %v1374
    %v1376 = vpop.f32.mrb[0].mxu0
    %v1377 = vpop.f32.mrb[0].mxu0
    %v1378 = vadd.f32 0.0, %v1377
    %v1379 = vpop.f32.mrb[0].mxu0
    %1380 = vdwg.mxu0
    %1382 = vrot.lane.b32.xlu0 %v727, 96
    %v1383 = vpop.permute.xlu0 %1382
    %1384 = vrot.lane.b32.xlu0 %v728, 32
    %v1385 = vpop.permute.xlu0 %1384
    %v1387 = vsel %vm742, %v1383, 0
    %v1390 = vsel %vm742, %v1385, 0
    %1392 = vmatprep.subr.bf16.mxu0 0
    %1393 = vmatpush1.bf16.xpose.msra.mxu0 %v1390
    %1394 = vmatprep.subr.bf16.mxu0 0
    %1395 = vmatpush1.bf16.xpose.msra.mxu0 0
    %1396 = vmatprep.subr.bf16.mxu0 0
    %1397 = vmatpush1.bf16.xpose.msra.mxu0 0
    %1398 = vmatprep.subr.bf16.mxu0 0
    %1399 = vmatpush1.bf16.xpose.msra.mxu0 0
    %1400 = vmatprep.subr.bf16.mxu0 0
    %1401 = vmatpush1.bf16.xpose.msra.mxu0 0
    %1402 = vmatprep.subr.bf16.mxu0 0
    %1403 = vmatpush1.bf16.xpose.msra.mxu0 0
    %1404 = vmatprep.subr.bf16.mxu0 0
    %1405 = vmatpush1.bf16.xpose.msra.mxu0 0
    %1406 = vmatprep.subr.bf16.mxu0 0
    %1407 = vmatpush1.bf16.xpose.msra.mxu0 0
    %1408 = vmatprep.subr.bf16.mxu0 0
    %1409 = vmatpush1.bf16.xpose.msra.mxu0 0
    %1410 = vmatprep.subr.bf16.mxu0 0
    %1411 = vmatpush1.bf16.xpose.msra.mxu0 0
    %1412 = vmatprep.subr.bf16.mxu0 0
    %1413 = vmatpush1.bf16.xpose.msra.mxu0 0
    %1414 = vmatprep.subr.bf16.mxu0 0
    %1415 = vmatpush1.bf16.xpose.msra.mxu0 0
    %1416 = vmatprep.subr.bf16.mxu0 0
    %1417 = vmatpush1.bf16.xpose.msra.mxu0 0
    %1418 = vmatprep.subr.bf16.mxu0 0
    %1419 = vmatpush1.bf16.xpose.msra.mxu0 0
    %1420 = vmatprep.subr.bf16.mxu0 0
    %1421 = vmatpush1.bf16.xpose.msra.mxu0 0
    %1422 = vmatprep.subr.bf16.mxu0 0
    %1423 = vmatpush1.bf16.xpose.msra.mxu0 0
    %1424 = vmatprep.mubr.bf16.mxu0 0
    %1425 = vmatmul.mubr.bf16.gmra.mrb[0].mxu0 %v1387
    %v1426 = vpop.f32.mrb[0].mxu0
    %v1427 = vadd.f32 0.0, %v1426
    %v1428 = vpop.f32.mrb[0].mxu0
    %v1429 = vpop.f32.mrb[0].mxu0
    %v1430 = vadd.f32 0.0, %v1429
    %v1431 = vpop.f32.mrb[0].mxu0
    %1432 = vdwg.mxu0
    %v1433 = vsel %vm942, %v1271, -inf
    %v1434 = vsel %vm943, %v1274, -inf
    %v1435 = vsel %vm942, %v1323, -inf
    %v1436 = vsel %vm943, %v1326, -inf
    %v1437 = vsel %vm942, %v1375, -inf
    %v1438 = vsel %vm943, %v1378, -inf
    %v1439 = vsel %vm942, %v1427, -inf
    %v1440 = vsel %vm943, %v1430, -inf
    %v1441 = vsel %vm952, %v1433, -inf
    %1442 = vmax.xlane.f32.xlu0 %v1441
    %v1443 = vpop.xlane.xlu0 %1442
    %v1444 = vsel %vm952, %v1434, -inf
    %1445 = vmax.xlane.f32.xlu0 %v1444
    %v1446 = vpop.xlane.xlu0 %1445
    %v1447 = vsel %vm952, %v1435, -inf
    %1448 = vmax.xlane.f32.xlu0 %v1447
    %v1449 = vpop.xlane.xlu0 %1448
    %v1450 = vsel %vm952, %v1436, -inf
    %1451 = vmax.xlane.f32.xlu0 %v1450
    %v1452 = vpop.xlane.xlu0 %1451
    %v1453 = vsel %vm952, %v1437, -inf
    %1454 = vmax.xlane.f32.xlu0 %v1453
    %v1455 = vpop.xlane.xlu0 %1454
    %v1456 = vsel %vm952, %v1438, -inf
    %1457 = vmax.xlane.f32.xlu0 %v1456
    %v1458 = vpop.xlane.xlu0 %1457
    %v1459 = vsel %vm952, %v1439, -inf
    %1460 = vmax.xlane.f32.xlu0 %v1459
    %v1461 = vpop.xlane.xlu0 %1460
    %v1462 = vsel %vm952, %v1440, -inf
    %1463 = vmax.xlane.f32.xlu0 %v1462
    %v1464 = vpop.xlane.xlu0 %1463
    %v1465 = vsub.f32 %v1433, %v1443
    %v1466 = vsub.f32 %v1434, %v1446
    %v1467 = vsub.f32 %v1435, %v1449
    %v1468 = vsub.f32 %v1436, %v1452
    %v1469 = vsub.f32 %v1437, %v1455
    %v1470 = vsub.f32 %v1438, %v1458
    %v1471 = vsub.f32 %v1439, %v1461
    %v1472 = vsub.f32 %v1440, %v1464
    %v1473 = vmul.f32 %v1465, 1.442695
    %v1474 = vpow.pop %v1473
    %v1475 = vmul.f32 %v1466, 1.442695
    %v1476 = vpow.pop %v1475
    %v1477 = vmul.f32 %v1467, 1.442695
    %v1478 = vpow.pop %v1477
    %v1479 = vmul.f32 %v1468, 1.442695
    %v1480 = vpow.pop %v1479
    %v1481 = vmul.f32 %v1469, 1.442695
    %v1482 = vpow.pop %v1481
    %v1483 = vmul.f32 %v1470, 1.442695
    %v1484 = vpow.pop %v1483
    %v1485 = vmul.f32 %v1471, 1.442695
    %v1486 = vpow.pop %v1485
    %v1487 = vmul.f32 %v1472, 1.442695
    %v1488 = vpow.pop %v1487
    %v1489 = vsel %vm952, %v1474, 0.0
    %1490 = vadd.xlane.f32.xlu0 %v1489
    %v1491 = vpop.xlane.xlu0 %1490
    %v1492 = vsel %vm952, %v1476, 0.0
    %1493 = vadd.xlane.f32.xlu0 %v1492
    %v1494 = vpop.xlane.xlu0 %1493
    %v1495 = vsel %vm952, %v1478, 0.0
    %1496 = vadd.xlane.f32.xlu0 %v1495
    %v1497 = vpop.xlane.xlu0 %1496
    %v1498 = vsel %vm952, %v1480, 0.0
    %1499 = vadd.xlane.f32.xlu0 %v1498
    %v1500 = vpop.xlane.xlu0 %1499
    %v1501 = vsel %vm952, %v1482, 0.0
    %1502 = vadd.xlane.f32.xlu0 %v1501
    %v1503 = vpop.xlane.xlu0 %1502
    %v1504 = vsel %vm952, %v1484, 0.0
    %1505 = vadd.xlane.f32.xlu0 %v1504
    %v1506 = vpop.xlane.xlu0 %1505
    %v1507 = vsel %vm952, %v1486, 0.0
    %1508 = vadd.xlane.f32.xlu0 %v1507
    %v1509 = vpop.xlane.xlu0 %1508
    %v1510 = vsel %vm952, %v1488, 0.0
    %1511 = vadd.xlane.f32.xlu0 %v1510
    %v1512 = vpop.xlane.xlu0 %1511
    %v1513 = vpack.c.bf16 %v1476, %v1474
    %v1514 = vpack.c.bf16 %v1480, %v1478
    %v1515 = vpack.c.bf16 %v1484, %v1482
    %v1516 = vpack.c.bf16 %v1488, %v1486
    %1518 = vrot.lane.b32.xlu0 %v715, 96
    %v1519 = vpop.permute.xlu0 %1518
    %v1522 = vsel %vm952, %v1513, 0
    %1524 = vmatprep.subr.bf16.mxu0 0
    %1525 = vmatpush1.bf16.msra.mxu0 %v1519
    %1526 = vmatprep.subr.bf16.mxu0 0
    %1527 = vmatpush1.bf16.msra.mxu0 0
    %1528 = vmatprep.subr.bf16.mxu0 0
    %1529 = vmatpush1.bf16.msra.mxu0 0
    %1530 = vmatprep.subr.bf16.mxu0 0
    %1531 = vmatpush1.bf16.msra.mxu0 0
    %1532 = vmatprep.subr.bf16.mxu0 0
    %1533 = vmatpush1.bf16.msra.mxu0 0
    %1534 = vmatprep.subr.bf16.mxu0 0
    %1535 = vmatpush1.bf16.msra.mxu0 0
    %1536 = vmatprep.subr.bf16.mxu0 0
    %1537 = vmatpush1.bf16.msra.mxu0 0
    %1538 = vmatprep.subr.bf16.mxu0 0
    %1539 = vmatpush1.bf16.msra.mxu0 0
    %1540 = vmatprep.subr.bf16.mxu0 0
    %1541 = vmatpush1.bf16.msra.mxu0 0
    %1542 = vmatprep.subr.bf16.mxu0 0
    %1543 = vmatpush1.bf16.msra.mxu0 0
    %1544 = vmatprep.subr.bf16.mxu0 0
    %1545 = vmatpush1.bf16.msra.mxu0 0
    %1546 = vmatprep.subr.bf16.mxu0 0
    %1547 = vmatpush1.bf16.msra.mxu0 0
    %1548 = vmatprep.subr.bf16.mxu0 0
    %1549 = vmatpush1.bf16.msra.mxu0 0
    %1550 = vmatprep.subr.bf16.mxu0 0
    %1551 = vmatpush1.bf16.msra.mxu0 0
    %1552 = vmatprep.subr.bf16.mxu0 0
    %1553 = vmatpush1.bf16.msra.mxu0 0
    %1554 = vmatprep.subr.bf16.mxu0 0
    %1555 = vmatpush1.bf16.msra.mxu0 0
    %1556 = vmatprep.mubr.bf16.mxu0 0
    %1557 = vmatmul.mubr.bf16.gmra.mrb[0].mxu0 %v1522
    %v1558 = vpop.f32.mrb[0].mxu0
    %v1559 = vadd.f32 0.0, %v1558
    %v1560 = vpop.f32.mrb[0].mxu0
    %v1561 = vpop.f32.mrb[0].mxu0
    %v1562 = vadd.f32 0.0, %v1561
    %v1563 = vpop.f32.mrb[0].mxu0
    %1564 = vdwg.mxu0
    %1566 = vrot.lane.b32.xlu0 %v720, 96
    %v1567 = vpop.permute.xlu0 %1566
    %v1570 = vsel %vm952, %v1514, 0
    %1572 = vmatprep.subr.bf16.mxu0 0
    %1573 = vmatpush1.bf16.msra.mxu0 %v1567
    %1574 = vmatprep.subr.bf16.mxu0 0
    %1575 = vmatpush1.bf16.msra.mxu0 0
    %1576 = vmatprep.subr.bf16.mxu0 0
    %1577 = vmatpush1.bf16.msra.mxu0 0
    %1578 = vmatprep.subr.bf16.mxu0 0
    %1579 = vmatpush1.bf16.msra.mxu0 0
    %1580 = vmatprep.subr.bf16.mxu0 0
    %1581 = vmatpush1.bf16.msra.mxu0 0
    %1582 = vmatprep.subr.bf16.mxu0 0
    %1583 = vmatpush1.bf16.msra.mxu0 0
    %1584 = vmatprep.subr.bf16.mxu0 0
    %1585 = vmatpush1.bf16.msra.mxu0 0
    %1586 = vmatprep.subr.bf16.mxu0 0
    %1587 = vmatpush1.bf16.msra.mxu0 0
    %1588 = vmatprep.subr.bf16.mxu0 0
    %1589 = vmatpush1.bf16.msra.mxu0 0
    %1590 = vmatprep.subr.bf16.mxu0 0
    %1591 = vmatpush1.bf16.msra.mxu0 0
    %1592 = vmatprep.subr.bf16.mxu0 0
    %1593 = vmatpush1.bf16.msra.mxu0 0
    %1594 = vmatprep.subr.bf16.mxu0 0
    %1595 = vmatpush1.bf16.msra.mxu0 0
    %1596 = vmatprep.subr.bf16.mxu0 0
    %1597 = vmatpush1.bf16.msra.mxu0 0
    %1598 = vmatprep.subr.bf16.mxu0 0
    %1599 = vmatpush1.bf16.msra.mxu0 0
    %1600 = vmatprep.subr.bf16.mxu0 0
    %1601 = vmatpush1.bf16.msra.mxu0 0
    %1602 = vmatprep.subr.bf16.mxu0 0
    %1603 = vmatpush1.bf16.msra.mxu0 0
    %1604 = vmatprep.mubr.bf16.mxu0 0
    %1605 = vmatmul.mubr.bf16.gmra.mrb[0].mxu0 %v1570
    %v1606 = vpop.f32.mrb[0].mxu0
    %v1607 = vadd.f32 0.0, %v1606
    %v1608 = vpop.f32.mrb[0].mxu0
    %v1609 = vpop.f32.mrb[0].mxu0
    %v1610 = vadd.f32 0.0, %v1609
    %v1611 = vpop.f32.mrb[0].mxu0
    %1612 = vdwg.mxu0
    %1614 = vrot.lane.b32.xlu0 %v725, 96
    %v1615 = vpop.permute.xlu0 %1614
    %v1618 = vsel %vm952, %v1515, 0
    %1620 = vmatprep.subr.bf16.mxu0 0
    %1621 = vmatpush1.bf16.msra.mxu0 %v1615
    %1622 = vmatprep.subr.bf16.mxu0 0
    %1623 = vmatpush1.bf16.msra.mxu0 0
    %1624 = vmatprep.subr.bf16.mxu0 0
    %1625 = vmatpush1.bf16.msra.mxu0 0
    %1626 = vmatprep.subr.bf16.mxu0 0
    %1627 = vmatpush1.bf16.msra.mxu0 0
    %1628 = vmatprep.subr.bf16.mxu0 0
    %1629 = vmatpush1.bf16.msra.mxu0 0
    %1630 = vmatprep.subr.bf16.mxu0 0
    %1631 = vmatpush1.bf16.msra.mxu0 0
    %1632 = vmatprep.subr.bf16.mxu0 0
    %1633 = vmatpush1.bf16.msra.mxu0 0
    %1634 = vmatprep.subr.bf16.mxu0 0
    %1635 = vmatpush1.bf16.msra.mxu0 0
    %1636 = vmatprep.subr.bf16.mxu0 0
    %1637 = vmatpush1.bf16.msra.mxu0 0
    %1638 = vmatprep.subr.bf16.mxu0 0
    %1639 = vmatpush1.bf16.msra.mxu0 0
    %1640 = vmatprep.subr.bf16.mxu0 0
    %1641 = vmatpush1.bf16.msra.mxu0 0
    %1642 = vmatprep.subr.bf16.mxu0 0
    %1643 = vmatpush1.bf16.msra.mxu0 0
    %1644 = vmatprep.subr.bf16.mxu0 0
    %1645 = vmatpush1.bf16.msra.mxu0 0
    %1646 = vmatprep.subr.bf16.mxu0 0
    %1647 = vmatpush1.bf16.msra.mxu0 0
    %1648 = vmatprep.subr.bf16.mxu0 0
    %1649 = vmatpush1.bf16.msra.mxu0 0
    %1650 = vmatprep.subr.bf16.mxu0 0
    %1651 = vmatpush1.bf16.msra.mxu0 0
    %1652 = vmatprep.mubr.bf16.mxu0 0
    %1653 = vmatmul.mubr.bf16.gmra.mrb[0].mxu0 %v1618
    %v1654 = vpop.f32.mrb[0].mxu0
    %v1655 = vadd.f32 0.0, %v1654
    %v1656 = vpop.f32.mrb[0].mxu0
    %v1657 = vpop.f32.mrb[0].mxu0
    %v1658 = vadd.f32 0.0, %v1657
    %v1659 = vpop.f32.mrb[0].mxu0
    %1660 = vdwg.mxu0
    %1662 = vrot.lane.b32.xlu0 %v730, 96
    %v1663 = vpop.permute.xlu0 %1662
    %v1666 = vsel %vm952, %v1516, 0
    %1668 = vmatprep.subr.bf16.mxu0 0
    %1669 = vmatpush1.bf16.msra.mxu0 %v1663
    %1670 = vmatprep.subr.bf16.mxu0 0
    %1671 = vmatpush1.bf16.msra.mxu0 0
    %1672 = vmatprep.subr.bf16.mxu0 0
    %1673 = vmatpush1.bf16.msra.mxu0 0
    %1674 = vmatprep.subr.bf16.mxu0 0
    %1675 = vmatpush1.bf16.msra.mxu0 0
    %1676 = vmatprep.subr.bf16.mxu0 0
    %1677 = vmatpush1.bf16.msra.mxu0 0
    %1678 = vmatprep.subr.bf16.mxu0 0
    %1679 = vmatpush1.bf16.msra.mxu0 0
    %1680 = vmatprep.subr.bf16.mxu0 0
    %1681 = vmatpush1.bf16.msra.mxu0 0
    %1682 = vmatprep.subr.bf16.mxu0 0
    %1683 = vmatpush1.bf16.msra.mxu0 0
    %1684 = vmatprep.subr.bf16.mxu0 0
    %1685 = vmatpush1.bf16.msra.mxu0 0
    %1686 = vmatprep.subr.bf16.mxu0 0
    %1687 = vmatpush1.bf16.msra.mxu0 0
    %1688 = vmatprep.subr.bf16.mxu0 0
    %1689 = vmatpush1.bf16.msra.mxu0 0
    %1690 = vmatprep.subr.bf16.mxu0 0
    %1691 = vmatpush1.bf16.msra.mxu0 0
    %1692 = vmatprep.subr.bf16.mxu0 0
    %1693 = vmatpush1.bf16.msra.mxu0 0
    %1694 = vmatprep.subr.bf16.mxu0 0
    %1695 = vmatpush1.bf16.msra.mxu0 0
    %1696 = vmatprep.subr.bf16.mxu0 0
    %1697 = vmatpush1.bf16.msra.mxu0 0
    %1698 = vmatprep.subr.bf16.mxu0 0
    %1699 = vmatpush1.bf16.msra.mxu0 0
    %1700 = vmatprep.mubr.bf16.mxu0 0
    %1701 = vmatmul.mubr.bf16.gmra.mrb[0].mxu0 %v1666
    %v1702 = vpop.f32.mrb[0].mxu0
    %v1703 = vadd.f32 0.0, %v1702
    %v1704 = vpop.f32.mrb[0].mxu0
    %v1705 = vpop.f32.mrb[0].mxu0
    %v1706 = vadd.f32 0.0, %v1705
    %v1707 = vpop.f32.mrb[0].mxu0
    %1708 = vdwg.mxu0
    %v1709 = vrcp.pop %v1491
    %v1710 = vrcp.pop %v1494
    %v1711 = vrcp.pop %v1497
    %v1712 = vrcp.pop %v1500
    %v1713 = vrcp.pop %v1503
    %v1714 = vrcp.pop %v1506
    %v1715 = vrcp.pop %v1509
    %v1716 = vrcp.pop %v1512
    %v1717 = vmul.f32 %v1559, %v1709
    %v1718 = vmul.f32 %v1562, %v1710
    %v1719 = vmul.f32 %v1607, %v1711
    %v1720 = vmul.f32 %v1610, %v1712
    %v1721 = vmul.f32 %v1655, %v1713
    %v1722 = vmul.f32 %v1658, %v1714
    %v1723 = vmul.f32 %v1703, %v1715
    %v1724 = vmul.f32 %v1706, %v1716
    %v1725 = vpack.c.bf16 %v1718, %v1717
    %v1726 = vpack.c.bf16 %v1720, %v1719
    %v1727 = vpack.c.bf16 %v1722, %v1721
    %v1728 = vpack.c.bf16 %v1724, %v1723
    %1729 = vrot.lane.b32.xlu0 %v712, 64
    %v1730 = vpop.permute.xlu0 %1729
    %v1732 = vsel %vm742, %v1730, 0
    %v1735 = vsel %vm742, %v714, 0
    %1737 = vmatprep.subr.bf16.mxu0 0
    %1738 = vmatpush1.bf16.xpose.msra.mxu0 %v1735
    %1739 = vmatprep.subr.bf16.mxu0 0
    %1740 = vmatpush1.bf16.xpose.msra.mxu0 0
    %1741 = vmatprep.subr.bf16.mxu0 0
    %1742 = vmatpush1.bf16.xpose.msra.mxu0 0
    %1743 = vmatprep.subr.bf16.mxu0 0
    %1744 = vmatpush1.bf16.xpose.msra.mxu0 0
    %1745 = vmatprep.subr.bf16.mxu0 0
    %1746 = vmatpush1.bf16.xpose.msra.mxu0 0
    %1747 = vmatprep.subr.bf16.mxu0 0
    %1748 = vmatpush1.bf16.xpose.msra.mxu0 0
    %1749 = vmatprep.subr.bf16.mxu0 0
    %1750 = vmatpush1.bf16.xpose.msra.mxu0 0
    %1751 = vmatprep.subr.bf16.mxu0 0
    %1752 = vmatpush1.bf16.xpose.msra.mxu0 0
    %1753 = vmatprep.subr.bf16.mxu0 0
    %1754 = vmatpush1.bf16.xpose.msra.mxu0 0
    %1755 = vmatprep.subr.bf16.mxu0 0
    %1756 = vmatpush1.bf16.xpose.msra.mxu0 0
    %1757 = vmatprep.subr.bf16.mxu0 0
    %1758 = vmatpush1.bf16.xpose.msra.mxu0 0
    %1759 = vmatprep.subr.bf16.mxu0 0
    %1760 = vmatpush1.bf16.xpose.msra.mxu0 0
    %1761 = vmatprep.subr.bf16.mxu0 0
    %1762 = vmatpush1.bf16.xpose.msra.mxu0 0
    %1763 = vmatprep.subr.bf16.mxu0 0
    %1764 = vmatpush1.bf16.xpose.msra.mxu0 0
    %1765 = vmatprep.subr.bf16.mxu0 0
    %1766 = vmatpush1.bf16.xpose.msra.mxu0 0
    %1767 = vmatprep.subr.bf16.mxu0 0
    %1768 = vmatpush1.bf16.xpose.msra.mxu0 0
    %1769 = vmatprep.mubr.bf16.mxu0 0
    %1770 = vmatmul.mubr.bf16.gmra.mrb[0].mxu0 %v1732
    %v1771 = vpop.f32.mrb[0].mxu0
    %v1772 = vadd.f32 0.0, %v1771
    %v1773 = vpop.f32.mrb[0].mxu0
    %v1774 = vpop.f32.mrb[0].mxu0
    %v1775 = vadd.f32 0.0, %v1774
    %v1776 = vpop.f32.mrb[0].mxu0
    %1777 = vdwg.mxu0
    %1778 = vrot.lane.b32.xlu0 %v717, 64
    %v1779 = vpop.permute.xlu0 %1778
    %v1781 = vsel %vm742, %v1779, 0
    %v1784 = vsel %vm742, %v719, 0
    %1786 = vmatprep.subr.bf16.mxu0 0
    %1787 = vmatpush1.bf16.xpose.msra.mxu0 %v1784
    %1788 = vmatprep.subr.bf16.mxu0 0
    %1789 = vmatpush1.bf16.xpose.msra.mxu0 0
    %1790 = vmatprep.subr.bf16.mxu0 0
    %1791 = vmatpush1.bf16.xpose.msra.mxu0 0
    %1792 = vmatprep.subr.bf16.mxu0 0
    %1793 = vmatpush1.bf16.xpose.msra.mxu0 0
    %1794 = vmatprep.subr.bf16.mxu0 0
    %1795 = vmatpush1.bf16.xpose.msra.mxu0 0
    %1796 = vmatprep.subr.bf16.mxu0 0
    %1797 = vmatpush1.bf16.xpose.msra.mxu0 0
    %1798 = vmatprep.subr.bf16.mxu0 0
    %1799 = vmatpush1.bf16.xpose.msra.mxu0 0
    %1800 = vmatprep.subr.bf16.mxu0 0
    %1801 = vmatpush1.bf16.xpose.msra.mxu0 0
    %1802 = vmatprep.subr.bf16.mxu0 0
    %1803 = vmatpush1.bf16.xpose.msra.mxu0 0
    %1804 = vmatprep.subr.bf16.mxu0 0
    %1805 = vmatpush1.bf16.xpose.msra.mxu0 0
    %1806 = vmatprep.subr.bf16.mxu0 0
    %1807 = vmatpush1.bf16.xpose.msra.mxu0 0
    %1808 = vmatprep.subr.bf16.mxu0 0
    %1809 = vmatpush1.bf16.xpose.msra.mxu0 0
    %1810 = vmatprep.subr.bf16.mxu0 0
    %1811 = vmatpush1.bf16.xpose.msra.mxu0 0
    %1812 = vmatprep.subr.bf16.mxu0 0
    %1813 = vmatpush1.bf16.xpose.msra.mxu0 0
    %1814 = vmatprep.subr.bf16.mxu0 0
    %1815 = vmatpush1.bf16.xpose.msra.mxu0 0
    %1816 = vmatprep.subr.bf16.mxu0 0
    %1817 = vmatpush1.bf16.xpose.msra.mxu0 0
    %1818 = vmatprep.mubr.bf16.mxu0 0
    %1819 = vmatmul.mubr.bf16.gmra.mrb[0].mxu0 %v1781
    %v1820 = vpop.f32.mrb[0].mxu0
    %v1821 = vadd.f32 0.0, %v1820
    %v1822 = vpop.f32.mrb[0].mxu0
    %v1823 = vpop.f32.mrb[0].mxu0
    %v1824 = vadd.f32 0.0, %v1823
    %v1825 = vpop.f32.mrb[0].mxu0
    %1826 = vdwg.mxu0
    %1827 = vrot.lane.b32.xlu0 %v722, 64
    %v1828 = vpop.permute.xlu0 %1827
    %v1830 = vsel %vm742, %v1828, 0
    %v1833 = vsel %vm742, %v724, 0
    %1835 = vmatprep.subr.bf16.mxu0 0
    %1836 = vmatpush1.bf16.xpose.msra.mxu0 %v1833
    %1837 = vmatprep.subr.bf16.mxu0 0
    %1838 = vmatpush1.bf16.xpose.msra.mxu0 0
    %1839 = vmatprep.subr.bf16.mxu0 0
    %1840 = vmatpush1.bf16.xpose.msra.mxu0 0
    %1841 = vmatprep.subr.bf16.mxu0 0
    %1842 = vmatpush1.bf16.xpose.msra.mxu0 0
    %1843 = vmatprep.subr.bf16.mxu0 0
    %1844 = vmatpush1.bf16.xpose.msra.mxu0 0
    %1845 = vmatprep.subr.bf16.mxu0 0
    %1846 = vmatpush1.bf16.xpose.msra.mxu0 0
    %1847 = vmatprep.subr.bf16.mxu0 0
    %1848 = vmatpush1.bf16.xpose.msra.mxu0 0
    %1849 = vmatprep.subr.bf16.mxu0 0
    %1850 = vmatpush1.bf16.xpose.msra.mxu0 0
    %1851 = vmatprep.subr.bf16.mxu0 0
    %1852 = vmatpush1.bf16.xpose.msra.mxu0 0
    %1853 = vmatprep.subr.bf16.mxu0 0
    %1854 = vmatpush1.bf16.xpose.msra.mxu0 0
    %1855 = vmatprep.subr.bf16.mxu0 0
    %1856 = vmatpush1.bf16.xpose.msra.mxu0 0
    %1857 = vmatprep.subr.bf16.mxu0 0
    %1858 = vmatpush1.bf16.xpose.msra.mxu0 0
    %1859 = vmatprep.subr.bf16.mxu0 0
    %1860 = vmatpush1.bf16.xpose.msra.mxu0 0
    %1861 = vmatprep.subr.bf16.mxu0 0
    %1862 = vmatpush1.bf16.xpose.msra.mxu0 0
    %1863 = vmatprep.subr.bf16.mxu0 0
    %1864 = vmatpush1.bf16.xpose.msra.mxu0 0
    %1865 = vmatprep.subr.bf16.mxu0 0
    %1866 = vmatpush1.bf16.xpose.msra.mxu0 0
    %1867 = vmatprep.mubr.bf16.mxu0 0
    %1868 = vmatmul.mubr.bf16.gmra.mrb[0].mxu0 %v1830
    %v1869 = vpop.f32.mrb[0].mxu0
    %v1870 = vadd.f32 0.0, %v1869
    %v1871 = vpop.f32.mrb[0].mxu0
    %v1872 = vpop.f32.mrb[0].mxu0
    %v1873 = vadd.f32 0.0, %v1872
    %v1874 = vpop.f32.mrb[0].mxu0
    %1875 = vdwg.mxu0
    %1876 = vrot.lane.b32.xlu0 %v727, 64
    %v1877 = vpop.permute.xlu0 %1876
    %v1879 = vsel %vm742, %v1877, 0
    %v1882 = vsel %vm742, %v729, 0
    %1884 = vmatprep.subr.bf16.mxu0 0
    %1885 = vmatpush1.bf16.xpose.msra.mxu0 %v1882
    %1886 = vmatprep.subr.bf16.mxu0 0
    %1887 = vmatpush1.bf16.xpose.msra.mxu0 0
    %1888 = vmatprep.subr.bf16.mxu0 0
    %1889 = vmatpush1.bf16.xpose.msra.mxu0 0
    %1890 = vmatprep.subr.bf16.mxu0 0
    %1891 = vmatpush1.bf16.xpose.msra.mxu0 0
    %1892 = vmatprep.subr.bf16.mxu0 0
    %1893 = vmatpush1.bf16.xpose.msra.mxu0 0
    %1894 = vmatprep.subr.bf16.mxu0 0
    %1895 = vmatpush1.bf16.xpose.msra.mxu0 0
    %1896 = vmatprep.subr.bf16.mxu0 0
    %1897 = vmatpush1.bf16.xpose.msra.mxu0 0
    %1898 = vmatprep.subr.bf16.mxu0 0
    %1899 = vmatpush1.bf16.xpose.msra.mxu0 0
    %1900 = vmatprep.subr.bf16.mxu0 0
    %1901 = vmatpush1.bf16.xpose.msra.mxu0 0
    %1902 = vmatprep.subr.bf16.mxu0 0
    %1903 = vmatpush1.bf16.xpose.msra.mxu0 0
    %1904 = vmatprep.subr.bf16.mxu0 0
    %1905 = vmatpush1.bf16.xpose.msra.mxu0 0
    %1906 = vmatprep.subr.bf16.mxu0 0
    %1907 = vmatpush1.bf16.xpose.msra.mxu0 0
    %1908 = vmatprep.subr.bf16.mxu0 0
    %1909 = vmatpush1.bf16.xpose.msra.mxu0 0
    %1910 = vmatprep.subr.bf16.mxu0 0
    %1911 = vmatpush1.bf16.xpose.msra.mxu0 0
    %1912 = vmatprep.subr.bf16.mxu0 0
    %1913 = vmatpush1.bf16.xpose.msra.mxu0 0
    %1914 = vmatprep.subr.bf16.mxu0 0
    %1915 = vmatpush1.bf16.xpose.msra.mxu0 0
    %1916 = vmatprep.mubr.bf16.mxu0 0
    %1917 = vmatmul.mubr.bf16.gmra.mrb[0].mxu0 %v1879
    %v1918 = vpop.f32.mrb[0].mxu0
    %v1919 = vadd.f32 0.0, %v1918
    %v1920 = vpop.f32.mrb[0].mxu0
    %v1921 = vpop.f32.mrb[0].mxu0
    %v1922 = vadd.f32 0.0, %v1921
    %v1923 = vpop.f32.mrb[0].mxu0
    %1924 = vdwg.mxu0
    %v1925 = vsel %vm942, %v1772, -inf
    %v1926 = vsel %vm943, %v1775, -inf
    %v1927 = vsel %vm942, %v1821, -inf
    %v1928 = vsel %vm943, %v1824, -inf
    %v1929 = vsel %vm942, %v1870, -inf
    %v1930 = vsel %vm943, %v1873, -inf
    %v1931 = vsel %vm942, %v1919, -inf
    %v1932 = vsel %vm943, %v1922, -inf
    %v1933 = vsel %vm952, %v1925, -inf
    %1934 = vmax.xlane.f32.xlu0 %v1933
    %v1935 = vpop.xlane.xlu0 %1934
    %v1936 = vsel %vm952, %v1926, -inf
    %1937 = vmax.xlane.f32.xlu0 %v1936
    %v1938 = vpop.xlane.xlu0 %1937
    %v1939 = vsel %vm952, %v1927, -inf
    %1940 = vmax.xlane.f32.xlu0 %v1939
    %v1941 = vpop.xlane.xlu0 %1940
    %v1942 = vsel %vm952, %v1928, -inf
    %1943 = vmax.xlane.f32.xlu0 %v1942
    %v1944 = vpop.xlane.xlu0 %1943
    %v1945 = vsel %vm952, %v1929, -inf
    %1946 = vmax.xlane.f32.xlu0 %v1945
    %v1947 = vpop.xlane.xlu0 %1946
    %v1948 = vsel %vm952, %v1930, -inf
    %1949 = vmax.xlane.f32.xlu0 %v1948
    %v1950 = vpop.xlane.xlu0 %1949
    %v1951 = vsel %vm952, %v1931, -inf
    %1952 = vmax.xlane.f32.xlu0 %v1951
    %v1953 = vpop.xlane.xlu0 %1952
    %v1954 = vsel %vm952, %v1932, -inf
    %1955 = vmax.xlane.f32.xlu0 %v1954
    %v1956 = vpop.xlane.xlu0 %1955
    %v1957 = vsub.f32 %v1925, %v1935
    %v1958 = vsub.f32 %v1926, %v1938
    %v1959 = vsub.f32 %v1927, %v1941
    %v1960 = vsub.f32 %v1928, %v1944
    %v1961 = vsub.f32 %v1929, %v1947
    %v1962 = vsub.f32 %v1930, %v1950
    %v1963 = vsub.f32 %v1931, %v1953
    %v1964 = vsub.f32 %v1932, %v1956
    %v1965 = vmul.f32 %v1957, 1.442695
    %v1966 = vpow.pop %v1965
    %v1967 = vmul.f32 %v1958, 1.442695
    %v1968 = vpow.pop %v1967
    %v1969 = vmul.f32 %v1959, 1.442695
    %v1970 = vpow.pop %v1969
    %v1971 = vmul.f32 %v1960, 1.442695
    %v1972 = vpow.pop %v1971
    %v1973 = vmul.f32 %v1961, 1.442695
    %v1974 = vpow.pop %v1973
    %v1975 = vmul.f32 %v1962, 1.442695
    %v1976 = vpow.pop %v1975
    %v1977 = vmul.f32 %v1963, 1.442695
    %v1978 = vpow.pop %v1977
    %v1979 = vmul.f32 %v1964, 1.442695
    %v1980 = vpow.pop %v1979
    %v1981 = vsel %vm952, %v1966, 0.0
    %1982 = vadd.xlane.f32.xlu0 %v1981
    %v1983 = vpop.xlane.xlu0 %1982
    %v1984 = vsel %vm952, %v1968, 0.0
    %1985 = vadd.xlane.f32.xlu0 %v1984
    %v1986 = vpop.xlane.xlu0 %1985
    %v1987 = vsel %vm952, %v1970, 0.0
    %1988 = vadd.xlane.f32.xlu0 %v1987
    %v1989 = vpop.xlane.xlu0 %1988
    %v1990 = vsel %vm952, %v1972, 0.0
    %1991 = vadd.xlane.f32.xlu0 %v1990
    %v1992 = vpop.xlane.xlu0 %1991
    %v1993 = vsel %vm952, %v1974, 0.0
    %1994 = vadd.xlane.f32.xlu0 %v1993
    %v1995 = vpop.xlane.xlu0 %1994
    %v1996 = vsel %vm952, %v1976, 0.0
    %1997 = vadd.xlane.f32.xlu0 %v1996
    %v1998 = vpop.xlane.xlu0 %1997
    %v1999 = vsel %vm952, %v1978, 0.0
    %2000 = vadd.xlane.f32.xlu0 %v1999
    %v2001 = vpop.xlane.xlu0 %2000
    %v2002 = vsel %vm952, %v1980, 0.0
    %2003 = vadd.xlane.f32.xlu0 %v2002
    %v2004 = vpop.xlane.xlu0 %2003
    %v2005 = vpack.c.bf16 %v1968, %v1966
    %v2006 = vpack.c.bf16 %v1972, %v1970
    %v2007 = vpack.c.bf16 %v1976, %v1974
    %v2008 = vpack.c.bf16 %v1980, %v1978
    %2009 = vrot.lane.b32.xlu0 %v715, 64
    %v2010 = vpop.permute.xlu0 %2009
    %v2013 = vsel %vm952, %v2005, 0
    %2015 = vmatprep.subr.bf16.mxu0 0
    %2016 = vmatpush1.bf16.msra.mxu0 %v2010
    %2017 = vmatprep.subr.bf16.mxu0 0
    %2018 = vmatpush1.bf16.msra.mxu0 0
    %2019 = vmatprep.subr.bf16.mxu0 0
    %2020 = vmatpush1.bf16.msra.mxu0 0
    %2021 = vmatprep.subr.bf16.mxu0 0
    %2022 = vmatpush1.bf16.msra.mxu0 0
    %2023 = vmatprep.subr.bf16.mxu0 0
    %2024 = vmatpush1.bf16.msra.mxu0 0
    %2025 = vmatprep.subr.bf16.mxu0 0
    %2026 = vmatpush1.bf16.msra.mxu0 0
    %2027 = vmatprep.subr.bf16.mxu0 0
    %2028 = vmatpush1.bf16.msra.mxu0 0
    %2029 = vmatprep.subr.bf16.mxu0 0
    %2030 = vmatpush1.bf16.msra.mxu0 0
    %2031 = vmatprep.subr.bf16.mxu0 0
    %2032 = vmatpush1.bf16.msra.mxu0 0
    %2033 = vmatprep.subr.bf16.mxu0 0
    %2034 = vmatpush1.bf16.msra.mxu0 0
    %2035 = vmatprep.subr.bf16.mxu0 0
    %2036 = vmatpush1.bf16.msra.mxu0 0
    %2037 = vmatprep.subr.bf16.mxu0 0
    %2038 = vmatpush1.bf16.msra.mxu0 0
    %2039 = vmatprep.subr.bf16.mxu0 0
    %2040 = vmatpush1.bf16.msra.mxu0 0
    %2041 = vmatprep.subr.bf16.mxu0 0
    %2042 = vmatpush1.bf16.msra.mxu0 0
    %2043 = vmatprep.subr.bf16.mxu0 0
    %2044 = vmatpush1.bf16.msra.mxu0 0
    %2045 = vmatprep.subr.bf16.mxu0 0
    %2046 = vmatpush1.bf16.msra.mxu0 0
    %2047 = vmatprep.mubr.bf16.mxu0 0
    %2048 = vmatmul.mubr.bf16.gmra.mrb[0].mxu0 %v2013
    %v2049 = vpop.f32.mrb[0].mxu0
    %v2050 = vadd.f32 0.0, %v2049
    %v2051 = vpop.f32.mrb[0].mxu0
    %v2052 = vpop.f32.mrb[0].mxu0
    %v2053 = vadd.f32 0.0, %v2052
    %v2054 = vpop.f32.mrb[0].mxu0
    %2055 = vdwg.mxu0
    %2056 = vrot.lane.b32.xlu0 %v720, 64
    %v2057 = vpop.permute.xlu0 %2056
    %v2060 = vsel %vm952, %v2006, 0
    %2062 = vmatprep.subr.bf16.mxu0 0
    %2063 = vmatpush1.bf16.msra.mxu0 %v2057
    %2064 = vmatprep.subr.bf16.mxu0 0
    %2065 = vmatpush1.bf16.msra.mxu0 0
    %2066 = vmatprep.subr.bf16.mxu0 0
    %2067 = vmatpush1.bf16.msra.mxu0 0
    %2068 = vmatprep.subr.bf16.mxu0 0
    %2069 = vmatpush1.bf16.msra.mxu0 0
    %2070 = vmatprep.subr.bf16.mxu0 0
    %2071 = vmatpush1.bf16.msra.mxu0 0
    %2072 = vmatprep.subr.bf16.mxu0 0
    %2073 = vmatpush1.bf16.msra.mxu0 0
    %2074 = vmatprep.subr.bf16.mxu0 0
    %2075 = vmatpush1.bf16.msra.mxu0 0
    %2076 = vmatprep.subr.bf16.mxu0 0
    %2077 = vmatpush1.bf16.msra.mxu0 0
    %2078 = vmatprep.subr.bf16.mxu0 0
    %2079 = vmatpush1.bf16.msra.mxu0 0
    %2080 = vmatprep.subr.bf16.mxu0 0
    %2081 = vmatpush1.bf16.msra.mxu0 0
    %2082 = vmatprep.subr.bf16.mxu0 0
    %2083 = vmatpush1.bf16.msra.mxu0 0
    %2084 = vmatprep.subr.bf16.mxu0 0
    %2085 = vmatpush1.bf16.msra.mxu0 0
    %2086 = vmatprep.subr.bf16.mxu0 0
    %2087 = vmatpush1.bf16.msra.mxu0 0
    %2088 = vmatprep.subr.bf16.mxu0 0
    %2089 = vmatpush1.bf16.msra.mxu0 0
    %2090 = vmatprep.subr.bf16.mxu0 0
    %2091 = vmatpush1.bf16.msra.mxu0 0
    %2092 = vmatprep.subr.bf16.mxu0 0
    %2093 = vmatpush1.bf16.msra.mxu0 0
    %2094 = vmatprep.mubr.bf16.mxu0 0
    %2095 = vmatmul.mubr.bf16.gmra.mrb[0].mxu0 %v2060
    %v2096 = vpop.f32.mrb[0].mxu0
    %v2097 = vadd.f32 0.0, %v2096
    %v2098 = vpop.f32.mrb[0].mxu0
    %v2099 = vpop.f32.mrb[0].mxu0
    %v2100 = vadd.f32 0.0, %v2099
    %v2101 = vpop.f32.mrb[0].mxu0
    %2102 = vdwg.mxu0
    %2103 = vrot.lane.b32.xlu0 %v725, 64
    %v2104 = vpop.permute.xlu0 %2103
    %v2107 = vsel %vm952, %v2007, 0
    %2109 = vmatprep.subr.bf16.mxu0 0
    %2110 = vmatpush1.bf16.msra.mxu0 %v2104
    %2111 = vmatprep.subr.bf16.mxu0 0
    %2112 = vmatpush1.bf16.msra.mxu0 0
    %2113 = vmatprep.subr.bf16.mxu0 0
    %2114 = vmatpush1.bf16.msra.mxu0 0
    %2115 = vmatprep.subr.bf16.mxu0 0
    %2116 = vmatpush1.bf16.msra.mxu0 0
    %2117 = vmatprep.subr.bf16.mxu0 0
    %2118 = vmatpush1.bf16.msra.mxu0 0
    %2119 = vmatprep.subr.bf16.mxu0 0
    %2120 = vmatpush1.bf16.msra.mxu0 0
    %2121 = vmatprep.subr.bf16.mxu0 0
    %2122 = vmatpush1.bf16.msra.mxu0 0
    %2123 = vmatprep.subr.bf16.mxu0 0
    %2124 = vmatpush1.bf16.msra.mxu0 0
    %2125 = vmatprep.subr.bf16.mxu0 0
    %2126 = vmatpush1.bf16.msra.mxu0 0
    %2127 = vmatprep.subr.bf16.mxu0 0
    %2128 = vmatpush1.bf16.msra.mxu0 0
    %2129 = vmatprep.subr.bf16.mxu0 0
    %2130 = vmatpush1.bf16.msra.mxu0 0
    %2131 = vmatprep.subr.bf16.mxu0 0
    %2132 = vmatpush1.bf16.msra.mxu0 0
    %2133 = vmatprep.subr.bf16.mxu0 0
    %2134 = vmatpush1.bf16.msra.mxu0 0
    %2135 = vmatprep.subr.bf16.mxu0 0
    %2136 = vmatpush1.bf16.msra.mxu0 0
    %2137 = vmatprep.subr.bf16.mxu0 0
    %2138 = vmatpush1.bf16.msra.mxu0 0
    %2139 = vmatprep.subr.bf16.mxu0 0
    %2140 = vmatpush1.bf16.msra.mxu0 0
    %2141 = vmatprep.mubr.bf16.mxu0 0
    %2142 = vmatmul.mubr.bf16.gmra.mrb[0].mxu0 %v2107
    %v2143 = vpop.f32.mrb[0].mxu0
    %v2144 = vadd.f32 0.0, %v2143
    %v2145 = vpop.f32.mrb[0].mxu0
    %v2146 = vpop.f32.mrb[0].mxu0
    %v2147 = vadd.f32 0.0, %v2146
    %v2148 = vpop.f32.mrb[0].mxu0
    %2149 = vdwg.mxu0
    %2150 = vrot.lane.b32.xlu0 %v730, 64
    %v2151 = vpop.permute.xlu0 %2150
    %v2154 = vsel %vm952, %v2008, 0
    %2156 = vmatprep.subr.bf16.mxu0 0
    %2157 = vmatpush1.bf16.msra.mxu0 %v2151
    %2158 = vmatprep.subr.bf16.mxu0 0
    %2159 = vmatpush1.bf16.msra.mxu0 0
    %2160 = vmatprep.subr.bf16.mxu0 0
    %2161 = vmatpush1.bf16.msra.mxu0 0
    %2162 = vmatprep.subr.bf16.mxu0 0
    %2163 = vmatpush1.bf16.msra.mxu0 0
    %2164 = vmatprep.subr.bf16.mxu0 0
    %2165 = vmatpush1.bf16.msra.mxu0 0
    %2166 = vmatprep.subr.bf16.mxu0 0
    %2167 = vmatpush1.bf16.msra.mxu0 0
    %2168 = vmatprep.subr.bf16.mxu0 0
    %2169 = vmatpush1.bf16.msra.mxu0 0
    %2170 = vmatprep.subr.bf16.mxu0 0
    %2171 = vmatpush1.bf16.msra.mxu0 0
    %2172 = vmatprep.subr.bf16.mxu0 0
    %2173 = vmatpush1.bf16.msra.mxu0 0
    %2174 = vmatprep.subr.bf16.mxu0 0
    %2175 = vmatpush1.bf16.msra.mxu0 0
    %2176 = vmatprep.subr.bf16.mxu0 0
    %2177 = vmatpush1.bf16.msra.mxu0 0
    %2178 = vmatprep.subr.bf16.mxu0 0
    %2179 = vmatpush1.bf16.msra.mxu0 0
    %2180 = vmatprep.subr.bf16.mxu0 0
    %2181 = vmatpush1.bf16.msra.mxu0 0
    %2182 = vmatprep.subr.bf16.mxu0 0
    %2183 = vmatpush1.bf16.msra.mxu0 0
    %2184 = vmatprep.subr.bf16.mxu0 0
    %2185 = vmatpush1.bf16.msra.mxu0 0
    %2186 = vmatprep.subr.bf16.mxu0 0
    %2187 = vmatpush1.bf16.msra.mxu0 0
    %2188 = vmatprep.mubr.bf16.mxu0 0
    %2189 = vmatmul.mubr.bf16.gmra.mrb[0].mxu0 %v2154
    %v2190 = vpop.f32.mrb[0].mxu0
    %v2191 = vadd.f32 0.0, %v2190
    %v2192 = vpop.f32.mrb[0].mxu0
    %v2193 = vpop.f32.mrb[0].mxu0
    %v2194 = vadd.f32 0.0, %v2193
    %v2195 = vpop.f32.mrb[0].mxu0
    %2196 = vdwg.mxu0
    %v2197 = vrcp.pop %v1983
    %v2198 = vrcp.pop %v1986
    %v2199 = vrcp.pop %v1989
    %v2200 = vrcp.pop %v1992
    %v2201 = vrcp.pop %v1995
    %v2202 = vrcp.pop %v1998
    %v2203 = vrcp.pop %v2001
    %v2204 = vrcp.pop %v2004
    %v2205 = vmul.f32 %v2050, %v2197
    %v2206 = vmul.f32 %v2053, %v2198
    %v2207 = vmul.f32 %v2097, %v2199
    %v2208 = vmul.f32 %v2100, %v2200
    %v2209 = vmul.f32 %v2144, %v2201
    %v2210 = vmul.f32 %v2147, %v2202
    %v2211 = vmul.f32 %v2191, %v2203
    %v2212 = vmul.f32 %v2194, %v2204
    %v2213 = vpack.c.bf16 %v2206, %v2205
    %v2214 = vpack.c.bf16 %v2208, %v2207
    %v2215 = vpack.c.bf16 %v2210, %v2209
    %v2216 = vpack.c.bf16 %v2212, %v2211
    %2217 = vrot.lane.b32.xlu0 %v712, 32
    %v2218 = vpop.permute.xlu0 %2217
    %2220 = vrot.lane.b32.xlu0 %v714, 96
    %v2221 = vpop.permute.xlu0 %2220
    %v2223 = vsel %vm742, %v2218, 0
    %v2226 = vsel %vm742, %v2221, 0
    %2228 = vmatprep.subr.bf16.mxu0 0
    %2229 = vmatpush1.bf16.xpose.msra.mxu0 %v2226
    %2230 = vmatprep.subr.bf16.mxu0 0
    %2231 = vmatpush1.bf16.xpose.msra.mxu0 0
    %2232 = vmatprep.subr.bf16.mxu0 0
    %2233 = vmatpush1.bf16.xpose.msra.mxu0 0
    %2234 = vmatprep.subr.bf16.mxu0 0
    %2235 = vmatpush1.bf16.xpose.msra.mxu0 0
    %2236 = vmatprep.subr.bf16.mxu0 0
    %2237 = vmatpush1.bf16.xpose.msra.mxu0 0
    %2238 = vmatprep.subr.bf16.mxu0 0
    %2239 = vmatpush1.bf16.xpose.msra.mxu0 0
    %2240 = vmatprep.subr.bf16.mxu0 0
    %2241 = vmatpush1.bf16.xpose.msra.mxu0 0
    %2242 = vmatprep.subr.bf16.mxu0 0
    %2243 = vmatpush1.bf16.xpose.msra.mxu0 0
    %2244 = vmatprep.subr.bf16.mxu0 0
    %2245 = vmatpush1.bf16.xpose.msra.mxu0 0
    %2246 = vmatprep.subr.bf16.mxu0 0
    %2247 = vmatpush1.bf16.xpose.msra.mxu0 0
    %2248 = vmatprep.subr.bf16.mxu0 0
    %2249 = vmatpush1.bf16.xpose.msra.mxu0 0
    %2250 = vmatprep.subr.bf16.mxu0 0
    %2251 = vmatpush1.bf16.xpose.msra.mxu0 0
    %2252 = vmatprep.subr.bf16.mxu0 0
    %2253 = vmatpush1.bf16.xpose.msra.mxu0 0
    %2254 = vmatprep.subr.bf16.mxu0 0
    %2255 = vmatpush1.bf16.xpose.msra.mxu0 0
    %2256 = vmatprep.subr.bf16.mxu0 0
    %2257 = vmatpush1.bf16.xpose.msra.mxu0 0
    %2258 = vmatprep.subr.bf16.mxu0 0
    %2259 = vmatpush1.bf16.xpose.msra.mxu0 0
    %2260 = vmatprep.mubr.bf16.mxu0 0
    %2261 = vmatmul.mubr.bf16.gmra.mrb[0].mxu0 %v2223
    %v2262 = vpop.f32.mrb[0].mxu0
    %v2263 = vadd.f32 0.0, %v2262
    %v2264 = vpop.f32.mrb[0].mxu0
    %v2265 = vpop.f32.mrb[0].mxu0
    %v2266 = vadd.f32 0.0, %v2265
    %v2267 = vpop.f32.mrb[0].mxu0
    %2268 = vdwg.mxu0
    %2269 = vrot.lane.b32.xlu0 %v717, 32
    %v2270 = vpop.permute.xlu0 %2269
    %2272 = vrot.lane.b32.xlu0 %v719, 96
    %v2273 = vpop.permute.xlu0 %2272
    %v2275 = vsel %vm742, %v2270, 0
    %v2278 = vsel %vm742, %v2273, 0
    %2280 = vmatprep.subr.bf16.mxu0 0
    %2281 = vmatpush1.bf16.xpose.msra.mxu0 %v2278
    %2282 = vmatprep.subr.bf16.mxu0 0
    %2283 = vmatpush1.bf16.xpose.msra.mxu0 0
    %2284 = vmatprep.subr.bf16.mxu0 0
    %2285 = vmatpush1.bf16.xpose.msra.mxu0 0
    %2286 = vmatprep.subr.bf16.mxu0 0
    %2287 = vmatpush1.bf16.xpose.msra.mxu0 0
    %2288 = vmatprep.subr.bf16.mxu0 0
    %2289 = vmatpush1.bf16.xpose.msra.mxu0 0
    %2290 = vmatprep.subr.bf16.mxu0 0
    %2291 = vmatpush1.bf16.xpose.msra.mxu0 0
    %2292 = vmatprep.subr.bf16.mxu0 0
    %2293 = vmatpush1.bf16.xpose.msra.mxu0 0
    %2294 = vmatprep.subr.bf16.mxu0 0
    %2295 = vmatpush1.bf16.xpose.msra.mxu0 0
    %2296 = vmatprep.subr.bf16.mxu0 0
    %2297 = vmatpush1.bf16.xpose.msra.mxu0 0
    %2298 = vmatprep.subr.bf16.mxu0 0
    %2299 = vmatpush1.bf16.xpose.msra.mxu0 0
    %2300 = vmatprep.subr.bf16.mxu0 0
    %2301 = vmatpush1.bf16.xpose.msra.mxu0 0
    %2302 = vmatprep.subr.bf16.mxu0 0
    %2303 = vmatpush1.bf16.xpose.msra.mxu0 0
    %2304 = vmatprep.subr.bf16.mxu0 0
    %2305 = vmatpush1.bf16.xpose.msra.mxu0 0
    %2306 = vmatprep.subr.bf16.mxu0 0
    %2307 = vmatpush1.bf16.xpose.msra.mxu0 0
    %2308 = vmatprep.subr.bf16.mxu0 0
    %2309 = vmatpush1.bf16.xpose.msra.mxu0 0
    %2310 = vmatprep.subr.bf16.mxu0 0
    %2311 = vmatpush1.bf16.xpose.msra.mxu0 0
    %2312 = vmatprep.mubr.bf16.mxu0 0
    %2313 = vmatmul.mubr.bf16.gmra.mrb[0].mxu0 %v2275
    %v2314 = vpop.f32.mrb[0].mxu0
    %v2315 = vadd.f32 0.0, %v2314
    %v2316 = vpop.f32.mrb[0].mxu0
    %v2317 = vpop.f32.mrb[0].mxu0
    %v2318 = vadd.f32 0.0, %v2317
    %v2319 = vpop.f32.mrb[0].mxu0
    %2320 = vdwg.mxu0
    %2321 = vrot.lane.b32.xlu0 %v722, 32
    %v2322 = vpop.permute.xlu0 %2321
    %2324 = vrot.lane.b32.xlu0 %v724, 96
    %v2325 = vpop.permute.xlu0 %2324
    %v2327 = vsel %vm742, %v2322, 0
    %v2330 = vsel %vm742, %v2325, 0
    %2332 = vmatprep.subr.bf16.mxu0 0
    %2333 = vmatpush1.bf16.xpose.msra.mxu0 %v2330
    %2334 = vmatprep.subr.bf16.mxu0 0
    %2335 = vmatpush1.bf16.xpose.msra.mxu0 0
    %2336 = vmatprep.subr.bf16.mxu0 0
    %2337 = vmatpush1.bf16.xpose.msra.mxu0 0
    %2338 = vmatprep.subr.bf16.mxu0 0
    %2339 = vmatpush1.bf16.xpose.msra.mxu0 0
    %2340 = vmatprep.subr.bf16.mxu0 0
    %2341 = vmatpush1.bf16.xpose.msra.mxu0 0
    %2342 = vmatprep.subr.bf16.mxu0 0
    %2343 = vmatpush1.bf16.xpose.msra.mxu0 0
    %2344 = vmatprep.subr.bf16.mxu0 0
    %2345 = vmatpush1.bf16.xpose.msra.mxu0 0
    %2346 = vmatprep.subr.bf16.mxu0 0
    %2347 = vmatpush1.bf16.xpose.msra.mxu0 0
    %2348 = vmatprep.subr.bf16.mxu0 0
    %2349 = vmatpush1.bf16.xpose.msra.mxu0 0
    %2350 = vmatprep.subr.bf16.mxu0 0
    %2351 = vmatpush1.bf16.xpose.msra.mxu0 0
    %2352 = vmatprep.subr.bf16.mxu0 0
    %2353 = vmatpush1.bf16.xpose.msra.mxu0 0
    %2354 = vmatprep.subr.bf16.mxu0 0
    %2355 = vmatpush1.bf16.xpose.msra.mxu0 0
    %2356 = vmatprep.subr.bf16.mxu0 0
    %2357 = vmatpush1.bf16.xpose.msra.mxu0 0
    %2358 = vmatprep.subr.bf16.mxu0 0
    %2359 = vmatpush1.bf16.xpose.msra.mxu0 0
    %2360 = vmatprep.subr.bf16.mxu0 0
    %2361 = vmatpush1.bf16.xpose.msra.mxu0 0
    %2362 = vmatprep.subr.bf16.mxu0 0
    %2363 = vmatpush1.bf16.xpose.msra.mxu0 0
    %2364 = vmatprep.mubr.bf16.mxu0 0
    %2365 = vmatmul.mubr.bf16.gmra.mrb[0].mxu0 %v2327
    %v2366 = vpop.f32.mrb[0].mxu0
    %v2367 = vadd.f32 0.0, %v2366
    %v2368 = vpop.f32.mrb[0].mxu0
    %v2369 = vpop.f32.mrb[0].mxu0
    %v2370 = vadd.f32 0.0, %v2369
    %v2371 = vpop.f32.mrb[0].mxu0
    %2372 = vdwg.mxu0
    %2373 = vrot.lane.b32.xlu0 %v727, 32
    %v2374 = vpop.permute.xlu0 %2373
    %2376 = vrot.lane.b32.xlu0 %v729, 96
    %v2377 = vpop.permute.xlu0 %2376
    %v2379 = vsel %vm742, %v2374, 0
    %v2382 = vsel %vm742, %v2377, 0
    %2384 = vmatprep.subr.bf16.mxu0 0
    %2385 = vmatpush1.bf16.xpose.msra.mxu0 %v2382
    %2386 = vmatprep.subr.bf16.mxu0 0
    %2387 = vmatpush1.bf16.xpose.msra.mxu0 0
    %2388 = vmatprep.subr.bf16.mxu0 0
    %2389 = vmatpush1.bf16.xpose.msra.mxu0 0
    %2390 = vmatprep.subr.bf16.mxu0 0
    %2391 = vmatpush1.bf16.xpose.msra.mxu0 0
    %2392 = vmatprep.subr.bf16.mxu0 0
    %2393 = vmatpush1.bf16.xpose.msra.mxu0 0
    %2394 = vmatprep.subr.bf16.mxu0 0
    %2395 = vmatpush1.bf16.xpose.msra.mxu0 0
    %2396 = vmatprep.subr.bf16.mxu0 0
    %2397 = vmatpush1.bf16.xpose.msra.mxu0 0
    %2398 = vmatprep.subr.bf16.mxu0 0
    %2399 = vmatpush1.bf16.xpose.msra.mxu0 0
    %2400 = vmatprep.subr.bf16.mxu0 0
    %2401 = vmatpush1.bf16.xpose.msra.mxu0 0
    %2402 = vmatprep.subr.bf16.mxu0 0
    %2403 = vmatpush1.bf16.xpose.msra.mxu0 0
    %2404 = vmatprep.subr.bf16.mxu0 0
    %2405 = vmatpush1.bf16.xpose.msra.mxu0 0
    %2406 = vmatprep.subr.bf16.mxu0 0
    %2407 = vmatpush1.bf16.xpose.msra.mxu0 0
    %2408 = vmatprep.subr.bf16.mxu0 0
    %2409 = vmatpush1.bf16.xpose.msra.mxu0 0
    %2410 = vmatprep.subr.bf16.mxu0 0
    %2411 = vmatpush1.bf16.xpose.msra.mxu0 0
    %2412 = vmatprep.subr.bf16.mxu0 0
    %2413 = vmatpush1.bf16.xpose.msra.mxu0 0
    %2414 = vmatprep.subr.bf16.mxu0 0
    %2415 = vmatpush1.bf16.xpose.msra.mxu0 0
    %2416 = vmatprep.mubr.bf16.mxu0 0
    %2417 = vmatmul.mubr.bf16.gmra.mrb[0].mxu0 %v2379
    %v2418 = vpop.f32.mrb[0].mxu0
    %v2419 = vadd.f32 0.0, %v2418
    %v2420 = vpop.f32.mrb[0].mxu0
    %v2421 = vpop.f32.mrb[0].mxu0
    %v2422 = vadd.f32 0.0, %v2421
    %v2423 = vpop.f32.mrb[0].mxu0
    %2424 = vdwg.mxu0
    %v2425 = vsel %vm942, %v2263, -inf
    %v2426 = vsel %vm943, %v2266, -inf
    %v2427 = vsel %vm942, %v2315, -inf
    %v2428 = vsel %vm943, %v2318, -inf
    %v2429 = vsel %vm942, %v2367, -inf
    %v2430 = vsel %vm943, %v2370, -inf
    %v2431 = vsel %vm942, %v2419, -inf
    %v2432 = vsel %vm943, %v2422, -inf
    %v2433 = vsel %vm952, %v2425, -inf
    %2434 = vmax.xlane.f32.xlu0 %v2433
    %v2435 = vpop.xlane.xlu0 %2434
    %v2436 = vsel %vm952, %v2426, -inf
    %2437 = vmax.xlane.f32.xlu0 %v2436
    %v2438 = vpop.xlane.xlu0 %2437
    %v2439 = vsel %vm952, %v2427, -inf
    %2440 = vmax.xlane.f32.xlu0 %v2439
    %v2441 = vpop.xlane.xlu0 %2440
    %v2442 = vsel %vm952, %v2428, -inf
    %2443 = vmax.xlane.f32.xlu0 %v2442
    %v2444 = vpop.xlane.xlu0 %2443
    %v2445 = vsel %vm952, %v2429, -inf
    %2446 = vmax.xlane.f32.xlu0 %v2445
    %v2447 = vpop.xlane.xlu0 %2446
    %v2448 = vsel %vm952, %v2430, -inf
    %2449 = vmax.xlane.f32.xlu0 %v2448
    %v2450 = vpop.xlane.xlu0 %2449
    %v2451 = vsel %vm952, %v2431, -inf
    %2452 = vmax.xlane.f32.xlu0 %v2451
    %v2453 = vpop.xlane.xlu0 %2452
    %v2454 = vsel %vm952, %v2432, -inf
    %2455 = vmax.xlane.f32.xlu0 %v2454
    %v2456 = vpop.xlane.xlu0 %2455
    %v2457 = vsub.f32 %v2425, %v2435
    %v2458 = vsub.f32 %v2426, %v2438
    %v2459 = vsub.f32 %v2427, %v2441
    %v2460 = vsub.f32 %v2428, %v2444
    %v2461 = vsub.f32 %v2429, %v2447
    %v2462 = vsub.f32 %v2430, %v2450
    %v2463 = vsub.f32 %v2431, %v2453
    %v2464 = vsub.f32 %v2432, %v2456
    %v2465 = vmul.f32 %v2457, 1.442695
    %v2466 = vpow.pop %v2465
    %v2467 = vmul.f32 %v2458, 1.442695
    %v2468 = vpow.pop %v2467
    %v2469 = vmul.f32 %v2459, 1.442695
    %v2470 = vpow.pop %v2469
    %v2471 = vmul.f32 %v2460, 1.442695
    %v2472 = vpow.pop %v2471
    %v2473 = vmul.f32 %v2461, 1.442695
    %v2474 = vpow.pop %v2473
    %v2475 = vmul.f32 %v2462, 1.442695
    %v2476 = vpow.pop %v2475
    %v2477 = vmul.f32 %v2463, 1.442695
    %v2478 = vpow.pop %v2477
    %v2479 = vmul.f32 %v2464, 1.442695
    %v2480 = vpow.pop %v2479
    %v2481 = vsel %vm952, %v2466, 0.0
    %2482 = vadd.xlane.f32.xlu0 %v2481
    %v2483 = vpop.xlane.xlu0 %2482
    %v2484 = vsel %vm952, %v2468, 0.0
    %2485 = vadd.xlane.f32.xlu0 %v2484
    %v2486 = vpop.xlane.xlu0 %2485
    %v2487 = vsel %vm952, %v2470, 0.0
    %2488 = vadd.xlane.f32.xlu0 %v2487
    %v2489 = vpop.xlane.xlu0 %2488
    %v2490 = vsel %vm952, %v2472, 0.0
    %2491 = vadd.xlane.f32.xlu0 %v2490
    %v2492 = vpop.xlane.xlu0 %2491
    %v2493 = vsel %vm952, %v2474, 0.0
    %2494 = vadd.xlane.f32.xlu0 %v2493
    %v2495 = vpop.xlane.xlu0 %2494
    %v2496 = vsel %vm952, %v2476, 0.0
    %2497 = vadd.xlane.f32.xlu0 %v2496
    %v2498 = vpop.xlane.xlu0 %2497
    %v2499 = vsel %vm952, %v2478, 0.0
    %2500 = vadd.xlane.f32.xlu0 %v2499
    %v2501 = vpop.xlane.xlu0 %2500
    %v2502 = vsel %vm952, %v2480, 0.0
    %2503 = vadd.xlane.f32.xlu0 %v2502
    %v2504 = vpop.xlane.xlu0 %2503
    %v2505 = vpack.c.bf16 %v2468, %v2466
    %v2506 = vpack.c.bf16 %v2472, %v2470
    %v2507 = vpack.c.bf16 %v2476, %v2474
    %v2508 = vpack.c.bf16 %v2480, %v2478
    %2509 = vrot.lane.b32.xlu0 %v715, 32
    %v2510 = vpop.permute.xlu0 %2509
    %v2513 = vsel %vm952, %v2505, 0
    %2515 = vmatprep.subr.bf16.mxu0 0
    %2516 = vmatpush1.bf16.msra.mxu0 %v2510
    %2517 = vmatprep.subr.bf16.mxu0 0
    %2518 = vmatpush1.bf16.msra.mxu0 0
    %2519 = vmatprep.subr.bf16.mxu0 0
    %2520 = vmatpush1.bf16.msra.mxu0 0
    %2521 = vmatprep.subr.bf16.mxu0 0
    %2522 = vmatpush1.bf16.msra.mxu0 0
    %2523 = vmatprep.subr.bf16.mxu0 0
    %2524 = vmatpush1.bf16.msra.mxu0 0
    %2525 = vmatprep.subr.bf16.mxu0 0
    %2526 = vmatpush1.bf16.msra.mxu0 0
    %2527 = vmatprep.subr.bf16.mxu0 0
    %2528 = vmatpush1.bf16.msra.mxu0 0
    %2529 = vmatprep.subr.bf16.mxu0 0
    %2530 = vmatpush1.bf16.msra.mxu0 0
    %2531 = vmatprep.subr.bf16.mxu0 0
    %2532 = vmatpush1.bf16.msra.mxu0 0
    %2533 = vmatprep.subr.bf16.mxu0 0
    %2534 = vmatpush1.bf16.msra.mxu0 0
    %2535 = vmatprep.subr.bf16.mxu0 0
    %2536 = vmatpush1.bf16.msra.mxu0 0
    %2537 = vmatprep.subr.bf16.mxu0 0
    %2538 = vmatpush1.bf16.msra.mxu0 0
    %2539 = vmatprep.subr.bf16.mxu0 0
    %2540 = vmatpush1.bf16.msra.mxu0 0
    %2541 = vmatprep.subr.bf16.mxu0 0
    %2542 = vmatpush1.bf16.msra.mxu0 0
    %2543 = vmatprep.subr.bf16.mxu0 0
    %2544 = vmatpush1.bf16.msra.mxu0 0
    %2545 = vmatprep.subr.bf16.mxu0 0
    %2546 = vmatpush1.bf16.msra.mxu0 0
    %2547 = vmatprep.mubr.bf16.mxu0 0
    %2548 = vmatmul.mubr.bf16.gmra.mrb[0].mxu0 %v2513
    %v2549 = vpop.f32.mrb[0].mxu0
    %v2550 = vadd.f32 0.0, %v2549
    %v2551 = vpop.f32.mrb[0].mxu0
    %v2552 = vpop.f32.mrb[0].mxu0
    %v2553 = vadd.f32 0.0, %v2552
    %v2554 = vpop.f32.mrb[0].mxu0
    %2555 = vdwg.mxu0
    %2556 = vrot.lane.b32.xlu0 %v720, 32
    %v2557 = vpop.permute.xlu0 %2556
    %v2560 = vsel %vm952, %v2506, 0
    %2562 = vmatprep.subr.bf16.mxu0 0
    %2563 = vmatpush1.bf16.msra.mxu0 %v2557
    %2564 = vmatprep.subr.bf16.mxu0 0
    %2565 = vmatpush1.bf16.msra.mxu0 0
    %2566 = vmatprep.subr.bf16.mxu0 0
    %2567 = vmatpush1.bf16.msra.mxu0 0
    %2568 = vmatprep.subr.bf16.mxu0 0
    %2569 = vmatpush1.bf16.msra.mxu0 0
    %2570 = vmatprep.subr.bf16.mxu0 0
    %2571 = vmatpush1.bf16.msra.mxu0 0
    %2572 = vmatprep.subr.bf16.mxu0 0
    %2573 = vmatpush1.bf16.msra.mxu0 0
    %2574 = vmatprep.subr.bf16.mxu0 0
    %2575 = vmatpush1.bf16.msra.mxu0 0
    %2576 = vmatprep.subr.bf16.mxu0 0
    %2577 = vmatpush1.bf16.msra.mxu0 0
    %2578 = vmatprep.subr.bf16.mxu0 0
    %2579 = vmatpush1.bf16.msra.mxu0 0
    %2580 = vmatprep.subr.bf16.mxu0 0
    %2581 = vmatpush1.bf16.msra.mxu0 0
    %2582 = vmatprep.subr.bf16.mxu0 0
    %2583 = vmatpush1.bf16.msra.mxu0 0
    %2584 = vmatprep.subr.bf16.mxu0 0
    %2585 = vmatpush1.bf16.msra.mxu0 0
    %2586 = vmatprep.subr.bf16.mxu0 0
    %2587 = vmatpush1.bf16.msra.mxu0 0
    %2588 = vmatprep.subr.bf16.mxu0 0
    %2589 = vmatpush1.bf16.msra.mxu0 0
    %2590 = vmatprep.subr.bf16.mxu0 0
    %2591 = vmatpush1.bf16.msra.mxu0 0
    %2592 = vmatprep.subr.bf16.mxu0 0
    %2593 = vmatpush1.bf16.msra.mxu0 0
    %2594 = vmatprep.mubr.bf16.mxu0 0
    %2595 = vmatmul.mubr.bf16.gmra.mrb[0].mxu0 %v2560
    %v2596 = vpop.f32.mrb[0].mxu0
    %v2597 = vadd.f32 0.0, %v2596
    %v2598 = vpop.f32.mrb[0].mxu0
    %v2599 = vpop.f32.mrb[0].mxu0
    %v2600 = vadd.f32 0.0, %v2599
    %v2601 = vpop.f32.mrb[0].mxu0
    %2602 = vdwg.mxu0
    %2603 = vrot.lane.b32.xlu0 %v725, 32
    %v2604 = vpop.permute.xlu0 %2603
    %v2607 = vsel %vm952, %v2507, 0
    %2609 = vmatprep.subr.bf16.mxu0 0
    %2610 = vmatpush1.bf16.msra.mxu0 %v2604
    %2611 = vmatprep.subr.bf16.mxu0 0
    %2612 = vmatpush1.bf16.msra.mxu0 0
    %2613 = vmatprep.subr.bf16.mxu0 0
    %2614 = vmatpush1.bf16.msra.mxu0 0
    %2615 = vmatprep.subr.bf16.mxu0 0
    %2616 = vmatpush1.bf16.msra.mxu0 0
    %2617 = vmatprep.subr.bf16.mxu0 0
    %2618 = vmatpush1.bf16.msra.mxu0 0
    %2619 = vmatprep.subr.bf16.mxu0 0
    %2620 = vmatpush1.bf16.msra.mxu0 0
    %2621 = vmatprep.subr.bf16.mxu0 0
    %2622 = vmatpush1.bf16.msra.mxu0 0
    %2623 = vmatprep.subr.bf16.mxu0 0
    %2624 = vmatpush1.bf16.msra.mxu0 0
    %2625 = vmatprep.subr.bf16.mxu0 0
    %2626 = vmatpush1.bf16.msra.mxu0 0
    %2627 = vmatprep.subr.bf16.mxu0 0
    %2628 = vmatpush1.bf16.msra.mxu0 0
    %2629 = vmatprep.subr.bf16.mxu0 0
    %2630 = vmatpush1.bf16.msra.mxu0 0
    %2631 = vmatprep.subr.bf16.mxu0 0
    %2632 = vmatpush1.bf16.msra.mxu0 0
    %2633 = vmatprep.subr.bf16.mxu0 0
    %2634 = vmatpush1.bf16.msra.mxu0 0
    %2635 = vmatprep.subr.bf16.mxu0 0
    %2636 = vmatpush1.bf16.msra.mxu0 0
    %2637 = vmatprep.subr.bf16.mxu0 0
    %2638 = vmatpush1.bf16.msra.mxu0 0
    %2639 = vmatprep.subr.bf16.mxu0 0
    %2640 = vmatpush1.bf16.msra.mxu0 0
    %2641 = vmatprep.mubr.bf16.mxu0 0
    %2642 = vmatmul.mubr.bf16.gmra.mrb[0].mxu0 %v2607
    %v2643 = vpop.f32.mrb[0].mxu0
    %v2644 = vadd.f32 0.0, %v2643
    %v2645 = vpop.f32.mrb[0].mxu0
    %v2646 = vpop.f32.mrb[0].mxu0
    %v2647 = vadd.f32 0.0, %v2646
    %v2648 = vpop.f32.mrb[0].mxu0
    %2649 = vdwg.mxu0
    %2650 = vrot.lane.b32.xlu0 %v730, 32
    %v2651 = vpop.permute.xlu0 %2650
    %v2654 = vsel %vm952, %v2508, 0
    %2656 = vmatprep.subr.bf16.mxu0 0
    %2657 = vmatpush1.bf16.msra.mxu0 %v2651
    %2658 = vmatprep.subr.bf16.mxu0 0
    %2659 = vmatpush1.bf16.msra.mxu0 0
    %2660 = vmatprep.subr.bf16.mxu0 0
    %2661 = vmatpush1.bf16.msra.mxu0 0
    %2662 = vmatprep.subr.bf16.mxu0 0
    %2663 = vmatpush1.bf16.msra.mxu0 0
    %2664 = vmatprep.subr.bf16.mxu0 0
    %2665 = vmatpush1.bf16.msra.mxu0 0
    %2666 = vmatprep.subr.bf16.mxu0 0
    %2667 = vmatpush1.bf16.msra.mxu0 0
    %2668 = vmatprep.subr.bf16.mxu0 0
    %2669 = vmatpush1.bf16.msra.mxu0 0
    %2670 = vmatprep.subr.bf16.mxu0 0
    %2671 = vmatpush1.bf16.msra.mxu0 0
    %2672 = vmatprep.subr.bf16.mxu0 0
    %2673 = vmatpush1.bf16.msra.mxu0 0
    %2674 = vmatprep.subr.bf16.mxu0 0
    %2675 = vmatpush1.bf16.msra.mxu0 0
    %2676 = vmatprep.subr.bf16.mxu0 0
    %2677 = vmatpush1.bf16.msra.mxu0 0
    %2678 = vmatprep.subr.bf16.mxu0 0
    %2679 = vmatpush1.bf16.msra.mxu0 0
    %2680 = vmatprep.subr.bf16.mxu0 0
    %2681 = vmatpush1.bf16.msra.mxu0 0
    %2682 = vmatprep.subr.bf16.mxu0 0
    %2683 = vmatpush1.bf16.msra.mxu0 0
    %2684 = vmatprep.subr.bf16.mxu0 0
    %2685 = vmatpush1.bf16.msra.mxu0 0
    %2686 = vmatprep.subr.bf16.mxu0 0
    %2687 = vmatpush1.bf16.msra.mxu0 0
    %2688 = vmatprep.mubr.bf16.mxu0 0
    %2689 = vmatmul.mubr.bf16.gmra.mrb[0].mxu0 %v2654
    %v2690 = vpop.f32.mrb[0].mxu0
    %v2691 = vadd.f32 0.0, %v2690
    %v2692 = vpop.f32.mrb[0].mxu0
    %v2693 = vpop.f32.mrb[0].mxu0
    %v2694 = vadd.f32 0.0, %v2693
    %v2695 = vpop.f32.mrb[0].mxu0
    %2696 = vdwg.mxu0
    %v2697 = vrcp.pop %v2483
    %v2698 = vrcp.pop %v2486
    %v2699 = vrcp.pop %v2489
    %v2700 = vrcp.pop %v2492
    %v2701 = vrcp.pop %v2495
    %v2702 = vrcp.pop %v2498
    %v2703 = vrcp.pop %v2501
    %v2704 = vrcp.pop %v2504
    %v2705 = vmul.f32 %v2550, %v2697
    %v2706 = vmul.f32 %v2553, %v2698
    %v2707 = vmul.f32 %v2597, %v2699
    %v2708 = vmul.f32 %v2600, %v2700
    %v2709 = vmul.f32 %v2644, %v2701
    %v2710 = vmul.f32 %v2647, %v2702
    %v2711 = vmul.f32 %v2691, %v2703
    %v2712 = vmul.f32 %v2694, %v2704
    %v2713 = vpack.c.bf16 %v2706, %v2705
    %v2714 = vpack.c.bf16 %v2708, %v2707
    %v2715 = vpack.c.bf16 %v2710, %v2709
    %v2716 = vpack.c.bf16 %v2712, %v2711
    %2717 = vrot.lane.b32.xlu0 %v714, 64
    %v2718 = vpop.permute.xlu0 %2717
    %v2720 = vsel %vm742, %v713, 0
    %v2723 = vsel %vm742, %v2718, 0
    %2725 = vmatprep.subr.bf16.mxu0 0
    %2726 = vmatpush1.bf16.xpose.msra.mxu0 %v2723
    %2727 = vmatprep.subr.bf16.mxu0 0
    %2728 = vmatpush1.bf16.xpose.msra.mxu0 0
    %2729 = vmatprep.subr.bf16.mxu0 0
    %2730 = vmatpush1.bf16.xpose.msra.mxu0 0
    %2731 = vmatprep.subr.bf16.mxu0 0
    %2732 = vmatpush1.bf16.xpose.msra.mxu0 0
    %2733 = vmatprep.subr.bf16.mxu0 0
    %2734 = vmatpush1.bf16.xpose.msra.mxu0 0
    %2735 = vmatprep.subr.bf16.mxu0 0
    %2736 = vmatpush1.bf16.xpose.msra.mxu0 0
    %2737 = vmatprep.subr.bf16.mxu0 0
    %2738 = vmatpush1.bf16.xpose.msra.mxu0 0
    %2739 = vmatprep.subr.bf16.mxu0 0
    %2740 = vmatpush1.bf16.xpose.msra.mxu0 0
    %2741 = vmatprep.subr.bf16.mxu0 0
    %2742 = vmatpush1.bf16.xpose.msra.mxu0 0
    %2743 = vmatprep.subr.bf16.mxu0 0
    %2744 = vmatpush1.bf16.xpose.msra.mxu0 0
    %2745 = vmatprep.subr.bf16.mxu0 0
    %2746 = vmatpush1.bf16.xpose.msra.mxu0 0
    %2747 = vmatprep.subr.bf16.mxu0 0
    %2748 = vmatpush1.bf16.xpose.msra.mxu0 0
    %2749 = vmatprep.subr.bf16.mxu0 0
    %2750 = vmatpush1.bf16.xpose.msra.mxu0 0
    %2751 = vmatprep.subr.bf16.mxu0 0
    %2752 = vmatpush1.bf16.xpose.msra.mxu0 0
    %2753 = vmatprep.subr.bf16.mxu0 0
    %2754 = vmatpush1.bf16.xpose.msra.mxu0 0
    %2755 = vmatprep.subr.bf16.mxu0 0
    %2756 = vmatpush1.bf16.xpose.msra.mxu0 0
    %2757 = vmatprep.mubr.bf16.mxu0 0
    %2758 = vmatmul.mubr.bf16.gmra.mrb[0].mxu0 %v2720
    %v2759 = vpop.f32.mrb[0].mxu0
    %v2760 = vadd.f32 0.0, %v2759
    %v2761 = vpop.f32.mrb[0].mxu0
    %v2762 = vpop.f32.mrb[0].mxu0
    %v2763 = vadd.f32 0.0, %v2762
    %v2764 = vpop.f32.mrb[0].mxu0
    %2765 = vdwg.mxu0
    %2766 = vrot.lane.b32.xlu0 %v719, 64
    %v2767 = vpop.permute.xlu0 %2766
    %v2769 = vsel %vm742, %v718, 0
    %v2772 = vsel %vm742, %v2767, 0
    %2774 = vmatprep.subr.bf16.mxu0 0
    %2775 = vmatpush1.bf16.xpose.msra.mxu0 %v2772
    %2776 = vmatprep.subr.bf16.mxu0 0
    %2777 = vmatpush1.bf16.xpose.msra.mxu0 0
    %2778 = vmatprep.subr.bf16.mxu0 0
    %2779 = vmatpush1.bf16.xpose.msra.mxu0 0
    %2780 = vmatprep.subr.bf16.mxu0 0
    %2781 = vmatpush1.bf16.xpose.msra.mxu0 0
    %2782 = vmatprep.subr.bf16.mxu0 0
    %2783 = vmatpush1.bf16.xpose.msra.mxu0 0
    %2784 = vmatprep.subr.bf16.mxu0 0
    %2785 = vmatpush1.bf16.xpose.msra.mxu0 0
    %2786 = vmatprep.subr.bf16.mxu0 0
    %2787 = vmatpush1.bf16.xpose.msra.mxu0 0
    %2788 = vmatprep.subr.bf16.mxu0 0
    %2789 = vmatpush1.bf16.xpose.msra.mxu0 0
    %2790 = vmatprep.subr.bf16.mxu0 0
    %2791 = vmatpush1.bf16.xpose.msra.mxu0 0
    %2792 = vmatprep.subr.bf16.mxu0 0
    %2793 = vmatpush1.bf16.xpose.msra.mxu0 0
    %2794 = vmatprep.subr.bf16.mxu0 0
    %2795 = vmatpush1.bf16.xpose.msra.mxu0 0
    %2796 = vmatprep.subr.bf16.mxu0 0
    %2797 = vmatpush1.bf16.xpose.msra.mxu0 0
    %2798 = vmatprep.subr.bf16.mxu0 0
    %2799 = vmatpush1.bf16.xpose.msra.mxu0 0
    %2800 = vmatprep.subr.bf16.mxu0 0
    %2801 = vmatpush1.bf16.xpose.msra.mxu0 0
    %2802 = vmatprep.subr.bf16.mxu0 0
    %2803 = vmatpush1.bf16.xpose.msra.mxu0 0
    %2804 = vmatprep.subr.bf16.mxu0 0
    %2805 = vmatpush1.bf16.xpose.msra.mxu0 0
    %2806 = vmatprep.mubr.bf16.mxu0 0
    %2807 = vmatmul.mubr.bf16.gmra.mrb[0].mxu0 %v2769
    %v2808 = vpop.f32.mrb[0].mxu0
    %v2809 = vadd.f32 0.0, %v2808
    %v2810 = vpop.f32.mrb[0].mxu0
    %v2811 = vpop.f32.mrb[0].mxu0
    %v2812 = vadd.f32 0.0, %v2811
    %v2813 = vpop.f32.mrb[0].mxu0
    %2814 = vdwg.mxu0
    %2815 = vrot.lane.b32.xlu0 %v724, 64
    %v2816 = vpop.permute.xlu0 %2815
    %v2818 = vsel %vm742, %v723, 0
    %v2821 = vsel %vm742, %v2816, 0
    %2823 = vmatprep.subr.bf16.mxu0 0
    %2824 = vmatpush1.bf16.xpose.msra.mxu0 %v2821
    %2825 = vmatprep.subr.bf16.mxu0 0
    %2826 = vmatpush1.bf16.xpose.msra.mxu0 0
    %2827 = vmatprep.subr.bf16.mxu0 0
    %2828 = vmatpush1.bf16.xpose.msra.mxu0 0
    %2829 = vmatprep.subr.bf16.mxu0 0
    %2830 = vmatpush1.bf16.xpose.msra.mxu0 0
    %2831 = vmatprep.subr.bf16.mxu0 0
    %2832 = vmatpush1.bf16.xpose.msra.mxu0 0
    %2833 = vmatprep.subr.bf16.mxu0 0
    %2834 = vmatpush1.bf16.xpose.msra.mxu0 0
    %2835 = vmatprep.subr.bf16.mxu0 0
    %2836 = vmatpush1.bf16.xpose.msra.mxu0 0
    %2837 = vmatprep.subr.bf16.mxu0 0
    %2838 = vmatpush1.bf16.xpose.msra.mxu0 0
    %2839 = vmatprep.subr.bf16.mxu0 0
    %2840 = vmatpush1.bf16.xpose.msra.mxu0 0
    %2841 = vmatprep.subr.bf16.mxu0 0
    %2842 = vmatpush1.bf16.xpose.msra.mxu0 0
    %2843 = vmatprep.subr.bf16.mxu0 0
    %2844 = vmatpush1.bf16.xpose.msra.mxu0 0
    %2845 = vmatprep.subr.bf16.mxu0 0
    %2846 = vmatpush1.bf16.xpose.msra.mxu0 0
    %2847 = vmatprep.subr.bf16.mxu0 0
    %2848 = vmatpush1.bf16.xpose.msra.mxu0 0
    %2849 = vmatprep.subr.bf16.mxu0 0
    %2850 = vmatpush1.bf16.xpose.msra.mxu0 0
    %2851 = vmatprep.subr.bf16.mxu0 0
    %2852 = vmatpush1.bf16.xpose.msra.mxu0 0
    %2853 = vmatprep.subr.bf16.mxu0 0
    %2854 = vmatpush1.bf16.xpose.msra.mxu0 0
    %2855 = vmatprep.mubr.bf16.mxu0 0
    %2856 = vmatmul.mubr.bf16.gmra.mrb[0].mxu0 %v2818
    %v2857 = vpop.f32.mrb[0].mxu0
    %v2858 = vadd.f32 0.0, %v2857
    %v2859 = vpop.f32.mrb[0].mxu0
    %v2860 = vpop.f32.mrb[0].mxu0
    %v2861 = vadd.f32 0.0, %v2860
    %v2862 = vpop.f32.mrb[0].mxu0
    %2863 = vdwg.mxu0
    %2864 = vrot.lane.b32.xlu0 %v729, 64
    %v2865 = vpop.permute.xlu0 %2864
    %v2867 = vsel %vm742, %v728, 0
    %v2870 = vsel %vm742, %v2865, 0
    %2872 = vmatprep.subr.bf16.mxu0 0
    %2873 = vmatpush1.bf16.xpose.msra.mxu0 %v2870
    %2874 = vmatprep.subr.bf16.mxu0 0
    %2875 = vmatpush1.bf16.xpose.msra.mxu0 0
    %2876 = vmatprep.subr.bf16.mxu0 0
    %2877 = vmatpush1.bf16.xpose.msra.mxu0 0
    %2878 = vmatprep.subr.bf16.mxu0 0
    %2879 = vmatpush1.bf16.xpose.msra.mxu0 0
    %2880 = vmatprep.subr.bf16.mxu0 0
    %2881 = vmatpush1.bf16.xpose.msra.mxu0 0
    %2882 = vmatprep.subr.bf16.mxu0 0
    %2883 = vmatpush1.bf16.xpose.msra.mxu0 0
    %2884 = vmatprep.subr.bf16.mxu0 0
    %2885 = vmatpush1.bf16.xpose.msra.mxu0 0
    %2886 = vmatprep.subr.bf16.mxu0 0
    %2887 = vmatpush1.bf16.xpose.msra.mxu0 0
    %2888 = vmatprep.subr.bf16.mxu0 0
    %2889 = vmatpush1.bf16.xpose.msra.mxu0 0
    %2890 = vmatprep.subr.bf16.mxu0 0
    %2891 = vmatpush1.bf16.xpose.msra.mxu0 0
    %2892 = vmatprep.subr.bf16.mxu0 0
    %2893 = vmatpush1.bf16.xpose.msra.mxu0 0
    %2894 = vmatprep.subr.bf16.mxu0 0
    %2895 = vmatpush1.bf16.xpose.msra.mxu0 0
    %2896 = vmatprep.subr.bf16.mxu0 0
    %2897 = vmatpush1.bf16.xpose.msra.mxu0 0
    %2898 = vmatprep.subr.bf16.mxu0 0
    %2899 = vmatpush1.bf16.xpose.msra.mxu0 0
    %2900 = vmatprep.subr.bf16.mxu0 0
    %2901 = vmatpush1.bf16.xpose.msra.mxu0 0
    %2902 = vmatprep.subr.bf16.mxu0 0
    %2903 = vmatpush1.bf16.xpose.msra.mxu0 0
    %2904 = vmatprep.mubr.bf16.mxu0 0
    %2905 = vmatmul.mubr.bf16.gmra.mrb[0].mxu0 %v2867
    %v2906 = vpop.f32.mrb[0].mxu0
    %v2907 = vadd.f32 0.0, %v2906
    %v2908 = vpop.f32.mrb[0].mxu0
    %v2909 = vpop.f32.mrb[0].mxu0
    %v2910 = vadd.f32 0.0, %v2909
    %v2911 = vpop.f32.mrb[0].mxu0
    %2912 = vdwg.mxu0
    %v2913 = vsel %vm942, %v2760, -inf
    %v2914 = vsel %vm943, %v2763, -inf
    %v2915 = vsel %vm942, %v2809, -inf
    %v2916 = vsel %vm943, %v2812, -inf
    %v2917 = vsel %vm942, %v2858, -inf
    %v2918 = vsel %vm943, %v2861, -inf
    %v2919 = vsel %vm942, %v2907, -inf
    %v2920 = vsel %vm943, %v2910, -inf
    %v2921 = vsel %vm952, %v2913, -inf
    %2922 = vmax.xlane.f32.xlu0 %v2921
    %v2923 = vpop.xlane.xlu0 %2922
    %v2924 = vsel %vm952, %v2914, -inf
    %2925 = vmax.xlane.f32.xlu0 %v2924
    %v2926 = vpop.xlane.xlu0 %2925
    %v2927 = vsel %vm952, %v2915, -inf
    %2928 = vmax.xlane.f32.xlu0 %v2927
    %v2929 = vpop.xlane.xlu0 %2928
    %v2930 = vsel %vm952, %v2916, -inf
    %2931 = vmax.xlane.f32.xlu0 %v2930
    %v2932 = vpop.xlane.xlu0 %2931
    %v2933 = vsel %vm952, %v2917, -inf
    %2934 = vmax.xlane.f32.xlu0 %v2933
    %v2935 = vpop.xlane.xlu0 %2934
    %v2936 = vsel %vm952, %v2918, -inf
    %2937 = vmax.xlane.f32.xlu0 %v2936
    %v2938 = vpop.xlane.xlu0 %2937
    %v2939 = vsel %vm952, %v2919, -inf
    %2940 = vmax.xlane.f32.xlu0 %v2939
    %v2941 = vpop.xlane.xlu0 %2940
    %v2942 = vsel %vm952, %v2920, -inf
    %2943 = vmax.xlane.f32.xlu0 %v2942
    %v2944 = vpop.xlane.xlu0 %2943
    %v2945 = vsub.f32 %v2913, %v2923
    %v2946 = vsub.f32 %v2914, %v2926
    %v2947 = vsub.f32 %v2915, %v2929
    %v2948 = vsub.f32 %v2916, %v2932
    %v2949 = vsub.f32 %v2917, %v2935
    %v2950 = vsub.f32 %v2918, %v2938
    %v2951 = vsub.f32 %v2919, %v2941
    %v2952 = vsub.f32 %v2920, %v2944
    %v2953 = vmul.f32 %v2945, 1.442695
    %v2954 = vpow.pop %v2953
    %v2955 = vmul.f32 %v2946, 1.442695
    %v2956 = vpow.pop %v2955
    %v2957 = vmul.f32 %v2947, 1.442695
    %v2958 = vpow.pop %v2957
    %v2959 = vmul.f32 %v2948, 1.442695
    %v2960 = vpow.pop %v2959
    %v2961 = vmul.f32 %v2949, 1.442695
    %v2962 = vpow.pop %v2961
    %v2963 = vmul.f32 %v2950, 1.442695
    %v2964 = vpow.pop %v2963
    %v2965 = vmul.f32 %v2951, 1.442695
    %v2966 = vpow.pop %v2965
    %v2967 = vmul.f32 %v2952, 1.442695
    %v2968 = vpow.pop %v2967
    %v2969 = vsel %vm952, %v2954, 0.0
    %2970 = vadd.xlane.f32.xlu0 %v2969
    %v2971 = vpop.xlane.xlu0 %2970
    %v2972 = vsel %vm952, %v2956, 0.0
    %2973 = vadd.xlane.f32.xlu0 %v2972
    %v2974 = vpop.xlane.xlu0 %2973
    %v2975 = vsel %vm952, %v2958, 0.0
    %2976 = vadd.xlane.f32.xlu0 %v2975
    %v2977 = vpop.xlane.xlu0 %2976
    %v2978 = vsel %vm952, %v2960, 0.0
    %2979 = vadd.xlane.f32.xlu0 %v2978
    %v2980 = vpop.xlane.xlu0 %2979
    %v2981 = vsel %vm952, %v2962, 0.0
    %2982 = vadd.xlane.f32.xlu0 %v2981
    %v2983 = vpop.xlane.xlu0 %2982
    %v2984 = vsel %vm952, %v2964, 0.0
    %2985 = vadd.xlane.f32.xlu0 %v2984
    %v2986 = vpop.xlane.xlu0 %2985
    %v2987 = vsel %vm952, %v2966, 0.0
    %2988 = vadd.xlane.f32.xlu0 %v2987
    %v2989 = vpop.xlane.xlu0 %2988
    %v2990 = vsel %vm952, %v2968, 0.0
    %2991 = vadd.xlane.f32.xlu0 %v2990
    %v2992 = vpop.xlane.xlu0 %2991
    %v2993 = vpack.c.bf16 %v2956, %v2954
    %v2994 = vpack.c.bf16 %v2960, %v2958
    %v2995 = vpack.c.bf16 %v2964, %v2962
    %v2996 = vpack.c.bf16 %v2968, %v2966
    %v2998 = vsel %vm952, %v2993, 0
    %3000 = vmatprep.subr.bf16.mxu0 0
    %3001 = vmatpush1.bf16.msra.mxu0 %v716
    %3002 = vmatprep.subr.bf16.mxu0 0
    %3003 = vmatpush1.bf16.msra.mxu0 0
    %3004 = vmatprep.subr.bf16.mxu0 0
    %3005 = vmatpush1.bf16.msra.mxu0 0
    %3006 = vmatprep.subr.bf16.mxu0 0
    %3007 = vmatpush1.bf16.msra.mxu0 0
    %3008 = vmatprep.subr.bf16.mxu0 0
    %3009 = vmatpush1.bf16.msra.mxu0 0
    %3010 = vmatprep.subr.bf16.mxu0 0
    %3011 = vmatpush1.bf16.msra.mxu0 0
    %3012 = vmatprep.subr.bf16.mxu0 0
    %3013 = vmatpush1.bf16.msra.mxu0 0
    %3014 = vmatprep.subr.bf16.mxu0 0
    %3015 = vmatpush1.bf16.msra.mxu0 0
    %3016 = vmatprep.subr.bf16.mxu0 0
    %3017 = vmatpush1.bf16.msra.mxu0 0
    %3018 = vmatprep.subr.bf16.mxu0 0
    %3019 = vmatpush1.bf16.msra.mxu0 0
    %3020 = vmatprep.subr.bf16.mxu0 0
    %3021 = vmatpush1.bf16.msra.mxu0 0
    %3022 = vmatprep.subr.bf16.mxu0 0
    %3023 = vmatpush1.bf16.msra.mxu0 0
    %3024 = vmatprep.subr.bf16.mxu0 0
    %3025 = vmatpush1.bf16.msra.mxu0 0
    %3026 = vmatprep.subr.bf16.mxu0 0
    %3027 = vmatpush1.bf16.msra.mxu0 0
    %3028 = vmatprep.subr.bf16.mxu0 0
    %3029 = vmatpush1.bf16.msra.mxu0 0
    %3030 = vmatprep.subr.bf16.mxu0 0
    %3031 = vmatpush1.bf16.msra.mxu0 0
    %3032 = vmatprep.mubr.bf16.mxu0 0
    %3033 = vmatmul.mubr.bf16.gmra.mrb[0].mxu0 %v2998
    %v3034 = vpop.f32.mrb[0].mxu0
    %v3035 = vadd.f32 0.0, %v3034
    %v3036 = vpop.f32.mrb[0].mxu0
    %v3037 = vpop.f32.mrb[0].mxu0
    %v3038 = vadd.f32 0.0, %v3037
    %v3039 = vpop.f32.mrb[0].mxu0
    %3040 = vdwg.mxu0
    %v3042 = vsel %vm952, %v2994, 0
    %3044 = vmatprep.subr.bf16.mxu0 0
    %3045 = vmatpush1.bf16.msra.mxu0 %v721
    %3046 = vmatprep.subr.bf16.mxu0 0
    %3047 = vmatpush1.bf16.msra.mxu0 0
    %3048 = vmatprep.subr.bf16.mxu0 0
    %3049 = vmatpush1.bf16.msra.mxu0 0
    %3050 = vmatprep.subr.bf16.mxu0 0
    %3051 = vmatpush1.bf16.msra.mxu0 0
    %3052 = vmatprep.subr.bf16.mxu0 0
    %3053 = vmatpush1.bf16.msra.mxu0 0
    %3054 = vmatprep.subr.bf16.mxu0 0
    %3055 = vmatpush1.bf16.msra.mxu0 0
    %3056 = vmatprep.subr.bf16.mxu0 0
    %3057 = vmatpush1.bf16.msra.mxu0 0
    %3058 = vmatprep.subr.bf16.mxu0 0
    %3059 = vmatpush1.bf16.msra.mxu0 0
    %3060 = vmatprep.subr.bf16.mxu0 0
    %3061 = vmatpush1.bf16.msra.mxu0 0
    %3062 = vmatprep.subr.bf16.mxu0 0
    %3063 = vmatpush1.bf16.msra.mxu0 0
    %3064 = vmatprep.subr.bf16.mxu0 0
    %3065 = vmatpush1.bf16.msra.mxu0 0
    %3066 = vmatprep.subr.bf16.mxu0 0
    %3067 = vmatpush1.bf16.msra.mxu0 0
    %3068 = vmatprep.subr.bf16.mxu0 0
    %3069 = vmatpush1.bf16.msra.mxu0 0
    %3070 = vmatprep.subr.bf16.mxu0 0
    %3071 = vmatpush1.bf16.msra.mxu0 0
    %3072 = vmatprep.subr.bf16.mxu0 0
    %3073 = vmatpush1.bf16.msra.mxu0 0
    %3074 = vmatprep.subr.bf16.mxu0 0
    %3075 = vmatpush1.bf16.msra.mxu0 0
    %3076 = vmatprep.mubr.bf16.mxu0 0
    %3077 = vmatmul.mubr.bf16.gmra.mrb[0].mxu0 %v3042
    %v3078 = vpop.f32.mrb[0].mxu0
    %v3079 = vadd.f32 0.0, %v3078
    %v3080 = vpop.f32.mrb[0].mxu0
    %v3081 = vpop.f32.mrb[0].mxu0
    %v3082 = vadd.f32 0.0, %v3081
    %v3083 = vpop.f32.mrb[0].mxu0
    %3084 = vdwg.mxu0
    %v3086 = vsel %vm952, %v2995, 0
    %3088 = vmatprep.subr.bf16.mxu0 0
    %3089 = vmatpush1.bf16.msra.mxu0 %v726
    %3090 = vmatprep.subr.bf16.mxu0 0
    %3091 = vmatpush1.bf16.msra.mxu0 0
    %3092 = vmatprep.subr.bf16.mxu0 0
    %3093 = vmatpush1.bf16.msra.mxu0 0
    %3094 = vmatprep.subr.bf16.mxu0 0
    %3095 = vmatpush1.bf16.msra.mxu0 0
    %3096 = vmatprep.subr.bf16.mxu0 0
    %3097 = vmatpush1.bf16.msra.mxu0 0
    %3098 = vmatprep.subr.bf16.mxu0 0
    %3099 = vmatpush1.bf16.msra.mxu0 0
    %3100 = vmatprep.subr.bf16.mxu0 0
    %3101 = vmatpush1.bf16.msra.mxu0 0
    %3102 = vmatprep.subr.bf16.mxu0 0
    %3103 = vmatpush1.bf16.msra.mxu0 0
    %3104 = vmatprep.subr.bf16.mxu0 0
    %3105 = vmatpush1.bf16.msra.mxu0 0
    %3106 = vmatprep.subr.bf16.mxu0 0
    %3107 = vmatpush1.bf16.msra.mxu0 0
    %3108 = vmatprep.subr.bf16.mxu0 0
    %3109 = vmatpush1.bf16.msra.mxu0 0
    %3110 = vmatprep.subr.bf16.mxu0 0
    %3111 = vmatpush1.bf16.msra.mxu0 0
    %3112 = vmatprep.subr.bf16.mxu0 0
    %3113 = vmatpush1.bf16.msra.mxu0 0
    %3114 = vmatprep.subr.bf16.mxu0 0
    %3115 = vmatpush1.bf16.msra.mxu0 0
    %3116 = vmatprep.subr.bf16.mxu0 0
    %3117 = vmatpush1.bf16.msra.mxu0 0
    %3118 = vmatprep.subr.bf16.mxu0 0
    %3119 = vmatpush1.bf16.msra.mxu0 0
    %3120 = vmatprep.mubr.bf16.mxu0 0
    %3121 = vmatmul.mubr.bf16.gmra.mrb[0].mxu0 %v3086
    %v3122 = vpop.f32.mrb[0].mxu0
    %v3123 = vadd.f32 0.0, %v3122
    %v3124 = vpop.f32.mrb[0].mxu0
    %v3125 = vpop.f32.mrb[0].mxu0
    %v3126 = vadd.f32 0.0, %v3125
    %v3127 = vpop.f32.mrb[0].mxu0
    %3128 = vdwg.mxu0
    %v3130 = vsel %vm952, %v2996, 0
    %3132 = vmatprep.subr.bf16.mxu0 0
    %3133 = vmatpush1.bf16.msra.mxu0 %v731
    %3134 = vmatprep.subr.bf16.mxu0 0
    %3135 = vmatpush1.bf16.msra.mxu0 0
    %3136 = vmatprep.subr.bf16.mxu0 0
    %3137 = vmatpush1.bf16.msra.mxu0 0
    %3138 = vmatprep.subr.bf16.mxu0 0
    %3139 = vmatpush1.bf16.msra.mxu0 0
    %3140 = vmatprep.subr.bf16.mxu0 0
    %3141 = vmatpush1.bf16.msra.mxu0 0
    %3142 = vmatprep.subr.bf16.mxu0 0
    %3143 = vmatpush1.bf16.msra.mxu0 0
    %3144 = vmatprep.subr.bf16.mxu0 0
    %3145 = vmatpush1.bf16.msra.mxu0 0
    %3146 = vmatprep.subr.bf16.mxu0 0
    %3147 = vmatpush1.bf16.msra.mxu0 0
    %3148 = vmatprep.subr.bf16.mxu0 0
    %3149 = vmatpush1.bf16.msra.mxu0 0
    %3150 = vmatprep.subr.bf16.mxu0 0
    %3151 = vmatpush1.bf16.msra.mxu0 0
    %3152 = vmatprep.subr.bf16.mxu0 0
    %3153 = vmatpush1.bf16.msra.mxu0 0
    %3154 = vmatprep.subr.bf16.mxu0 0
    %3155 = vmatpush1.bf16.msra.mxu0 0
    %3156 = vmatprep.subr.bf16.mxu0 0
    %3157 = vmatpush1.bf16.msra.mxu0 0
    %3158 = vmatprep.subr.bf16.mxu0 0
    %3159 = vmatpush1.bf16.msra.mxu0 0
    %3160 = vmatprep.subr.bf16.mxu0 0
    %3161 = vmatpush1.bf16.msra.mxu0 0
    %3162 = vmatprep.subr.bf16.mxu0 0
    %3163 = vmatpush1.bf16.msra.mxu0 0
    %3164 = vmatprep.mubr.bf16.mxu0 0
    %3165 = vmatmul.mubr.bf16.gmra.mrb[0].mxu0 %v3130
    %v3166 = vpop.f32.mrb[0].mxu0
    %v3167 = vadd.f32 0.0, %v3166
    %v3168 = vpop.f32.mrb[0].mxu0
    %v3169 = vpop.f32.mrb[0].mxu0
    %v3170 = vadd.f32 0.0, %v3169
    %v3171 = vpop.f32.mrb[0].mxu0
    %3172 = vdwg.mxu0
    %v3173 = vrcp.pop %v2971
    %v3174 = vrcp.pop %v2974
    %v3175 = vrcp.pop %v2977
    %v3176 = vrcp.pop %v2980
    %v3177 = vrcp.pop %v2983
    %v3178 = vrcp.pop %v2986
    %v3179 = vrcp.pop %v2989
    %v3180 = vrcp.pop %v2992
    %v3181 = vmul.f32 %v3035, %v3173
    %v3182 = vmul.f32 %v3038, %v3174
    %v3183 = vmul.f32 %v3079, %v3175
    %v3184 = vmul.f32 %v3082, %v3176
    %v3185 = vmul.f32 %v3123, %v3177
    %v3186 = vmul.f32 %v3126, %v3178
    %v3187 = vmul.f32 %v3167, %v3179
    %v3188 = vmul.f32 %v3170, %v3180
    %v3189 = vpack.c.bf16 %v3182, %v3181
    %v3190 = vpack.c.bf16 %v3184, %v3183
    %v3191 = vpack.c.bf16 %v3186, %v3185
    %v3192 = vpack.c.bf16 %v3188, %v3187
    %3193 = vrot.lane.b32.xlu0 %v713, 96
    %v3194 = vpop.permute.xlu0 %3193
    %3195 = vrot.lane.b32.xlu0 %v714, 32
    %v3196 = vpop.permute.xlu0 %3195
    %v3198 = vsel %vm742, %v3194, 0
    %v3201 = vsel %vm742, %v3196, 0
    %3203 = vmatprep.subr.bf16.mxu0 0
    %3204 = vmatpush1.bf16.xpose.msra.mxu0 %v3201
    %3205 = vmatprep.subr.bf16.mxu0 0
    %3206 = vmatpush1.bf16.xpose.msra.mxu0 0
    %3207 = vmatprep.subr.bf16.mxu0 0
    %3208 = vmatpush1.bf16.xpose.msra.mxu0 0
    %3209 = vmatprep.subr.bf16.mxu0 0
    %3210 = vmatpush1.bf16.xpose.msra.mxu0 0
    %3211 = vmatprep.subr.bf16.mxu0 0
    %3212 = vmatpush1.bf16.xpose.msra.mxu0 0
    %3213 = vmatprep.subr.bf16.mxu0 0
    %3214 = vmatpush1.bf16.xpose.msra.mxu0 0
    %3215 = vmatprep.subr.bf16.mxu0 0
    %3216 = vmatpush1.bf16.xpose.msra.mxu0 0
    %3217 = vmatprep.subr.bf16.mxu0 0
    %3218 = vmatpush1.bf16.xpose.msra.mxu0 0
    %3219 = vmatprep.subr.bf16.mxu0 0
    %3220 = vmatpush1.bf16.xpose.msra.mxu0 0
    %3221 = vmatprep.subr.bf16.mxu0 0
    %3222 = vmatpush1.bf16.xpose.msra.mxu0 0
    %3223 = vmatprep.subr.bf16.mxu0 0
    %3224 = vmatpush1.bf16.xpose.msra.mxu0 0
    %3225 = vmatprep.subr.bf16.mxu0 0
    %3226 = vmatpush1.bf16.xpose.msra.mxu0 0
    %3227 = vmatprep.subr.bf16.mxu0 0
    %3228 = vmatpush1.bf16.xpose.msra.mxu0 0
    %3229 = vmatprep.subr.bf16.mxu0 0
    %3230 = vmatpush1.bf16.xpose.msra.mxu0 0
    %3231 = vmatprep.subr.bf16.mxu0 0
    %3232 = vmatpush1.bf16.xpose.msra.mxu0 0
    %3233 = vmatprep.subr.bf16.mxu0 0
    %3234 = vmatpush1.bf16.xpose.msra.mxu0 0
    %3235 = vmatprep.mubr.bf16.mxu0 0
    %3236 = vmatmul.mubr.bf16.gmra.mrb[0].mxu0 %v3198
    %v3237 = vpop.f32.mrb[0].mxu0
    %v3238 = vadd.f32 0.0, %v3237
    %v3239 = vpop.f32.mrb[0].mxu0
    %v3240 = vpop.f32.mrb[0].mxu0
    %v3241 = vadd.f32 0.0, %v3240
    %v3242 = vpop.f32.mrb[0].mxu0
    %3243 = vdwg.mxu0
    %3244 = vrot.lane.b32.xlu0 %v718, 96
    %v3245 = vpop.permute.xlu0 %3244
    %3246 = vrot.lane.b32.xlu0 %v719, 32
    %v3247 = vpop.permute.xlu0 %3246
    %v3249 = vsel %vm742, %v3245, 0
    %v3252 = vsel %vm742, %v3247, 0
    %3254 = vmatprep.subr.bf16.mxu0 0
    %3255 = vmatpush1.bf16.xpose.msra.mxu0 %v3252
    %3256 = vmatprep.subr.bf16.mxu0 0
    %3257 = vmatpush1.bf16.xpose.msra.mxu0 0
    %3258 = vmatprep.subr.bf16.mxu0 0
    %3259 = vmatpush1.bf16.xpose.msra.mxu0 0
    %3260 = vmatprep.subr.bf16.mxu0 0
    %3261 = vmatpush1.bf16.xpose.msra.mxu0 0
    %3262 = vmatprep.subr.bf16.mxu0 0
    %3263 = vmatpush1.bf16.xpose.msra.mxu0 0
    %3264 = vmatprep.subr.bf16.mxu0 0
    %3265 = vmatpush1.bf16.xpose.msra.mxu0 0
    %3266 = vmatprep.subr.bf16.mxu0 0
    %3267 = vmatpush1.bf16.xpose.msra.mxu0 0
    %3268 = vmatprep.subr.bf16.mxu0 0
    %3269 = vmatpush1.bf16.xpose.msra.mxu0 0
    %3270 = vmatprep.subr.bf16.mxu0 0
    %3271 = vmatpush1.bf16.xpose.msra.mxu0 0
    %3272 = vmatprep.subr.bf16.mxu0 0
    %3273 = vmatpush1.bf16.xpose.msra.mxu0 0
    %3274 = vmatprep.subr.bf16.mxu0 0
    %3275 = vmatpush1.bf16.xpose.msra.mxu0 0
    %3276 = vmatprep.subr.bf16.mxu0 0
    %3277 = vmatpush1.bf16.xpose.msra.mxu0 0
    %3278 = vmatprep.subr.bf16.mxu0 0
    %3279 = vmatpush1.bf16.xpose.msra.mxu0 0
    %3280 = vmatprep.subr.bf16.mxu0 0
    %3281 = vmatpush1.bf16.xpose.msra.mxu0 0
    %3282 = vmatprep.subr.bf16.mxu0 0
    %3283 = vmatpush1.bf16.xpose.msra.mxu0 0
    %3284 = vmatprep.subr.bf16.mxu0 0
    %3285 = vmatpush1.bf16.xpose.msra.mxu0 0
    %3286 = vmatprep.mubr.bf16.mxu0 0
    %3287 = vmatmul.mubr.bf16.gmra.mrb[0].mxu0 %v3249
    %v3288 = vpop.f32.mrb[0].mxu0
    %v3289 = vadd.f32 0.0, %v3288
    %v3290 = vpop.f32.mrb[0].mxu0
    %v3291 = vpop.f32.mrb[0].mxu0
    %v3292 = vadd.f32 0.0, %v3291
    %v3293 = vpop.f32.mrb[0].mxu0
    %3294 = vdwg.mxu0
    %3295 = vrot.lane.b32.xlu0 %v723, 96
    %v3296 = vpop.permute.xlu0 %3295
    %3297 = vrot.lane.b32.xlu0 %v724, 32
    %v3298 = vpop.permute.xlu0 %3297
    %v3300 = vsel %vm742, %v3296, 0
    %v3303 = vsel %vm742, %v3298, 0
    %3305 = vmatprep.subr.bf16.mxu0 0
    %3306 = vmatpush1.bf16.xpose.msra.mxu0 %v3303
    %3307 = vmatprep.subr.bf16.mxu0 0
    %3308 = vmatpush1.bf16.xpose.msra.mxu0 0
    %3309 = vmatprep.subr.bf16.mxu0 0
    %3310 = vmatpush1.bf16.xpose.msra.mxu0 0
    %3311 = vmatprep.subr.bf16.mxu0 0
    %3312 = vmatpush1.bf16.xpose.msra.mxu0 0
    %3313 = vmatprep.subr.bf16.mxu0 0
    %3314 = vmatpush1.bf16.xpose.msra.mxu0 0
    %3315 = vmatprep.subr.bf16.mxu0 0
    %3316 = vmatpush1.bf16.xpose.msra.mxu0 0
    %3317 = vmatprep.subr.bf16.mxu0 0
    %3318 = vmatpush1.bf16.xpose.msra.mxu0 0
    %3319 = vmatprep.subr.bf16.mxu0 0
    %3320 = vmatpush1.bf16.xpose.msra.mxu0 0
    %3321 = vmatprep.subr.bf16.mxu0 0
    %3322 = vmatpush1.bf16.xpose.msra.mxu0 0
    %3323 = vmatprep.subr.bf16.mxu0 0
    %3324 = vmatpush1.bf16.xpose.msra.mxu0 0
    %3325 = vmatprep.subr.bf16.mxu0 0
    %3326 = vmatpush1.bf16.xpose.msra.mxu0 0
    %3327 = vmatprep.subr.bf16.mxu0 0
    %3328 = vmatpush1.bf16.xpose.msra.mxu0 0
    %3329 = vmatprep.subr.bf16.mxu0 0
    %3330 = vmatpush1.bf16.xpose.msra.mxu0 0
    %3331 = vmatprep.subr.bf16.mxu0 0
    %3332 = vmatpush1.bf16.xpose.msra.mxu0 0
    %3333 = vmatprep.subr.bf16.mxu0 0
    %3334 = vmatpush1.bf16.xpose.msra.mxu0 0
    %3335 = vmatprep.subr.bf16.mxu0 0
    %3336 = vmatpush1.bf16.xpose.msra.mxu0 0
    %3337 = vmatprep.mubr.bf16.mxu0 0
    %3338 = vmatmul.mubr.bf16.gmra.mrb[0].mxu0 %v3300
    %v3339 = vpop.f32.mrb[0].mxu0
    %v3340 = vadd.f32 0.0, %v3339
    %v3341 = vpop.f32.mrb[0].mxu0
    %v3342 = vpop.f32.mrb[0].mxu0
    %v3343 = vadd.f32 0.0, %v3342
    %v3344 = vpop.f32.mrb[0].mxu0
    %3345 = vdwg.mxu0
    %3346 = vrot.lane.b32.xlu0 %v728, 96
    %v3347 = vpop.permute.xlu0 %3346
    %3348 = vrot.lane.b32.xlu0 %v729, 32
    %v3349 = vpop.permute.xlu0 %3348
    %v3351 = vsel %vm742, %v3347, 0
    %v3354 = vsel %vm742, %v3349, 0
    %3356 = vmatprep.subr.bf16.mxu0 0
    %3357 = vmatpush1.bf16.xpose.msra.mxu0 %v3354
    %3358 = vmatprep.subr.bf16.mxu0 0
    %3359 = vmatpush1.bf16.xpose.msra.mxu0 0
    %3360 = vmatprep.subr.bf16.mxu0 0
    %3361 = vmatpush1.bf16.xpose.msra.mxu0 0
    %3362 = vmatprep.subr.bf16.mxu0 0
    %3363 = vmatpush1.bf16.xpose.msra.mxu0 0
    %3364 = vmatprep.subr.bf16.mxu0 0
    %3365 = vmatpush1.bf16.xpose.msra.mxu0 0
    %3366 = vmatprep.subr.bf16.mxu0 0
    %3367 = vmatpush1.bf16.xpose.msra.mxu0 0
    %3368 = vmatprep.subr.bf16.mxu0 0
    %3369 = vmatpush1.bf16.xpose.msra.mxu0 0
    %3370 = vmatprep.subr.bf16.mxu0 0
    %3371 = vmatpush1.bf16.xpose.msra.mxu0 0
    %3372 = vmatprep.subr.bf16.mxu0 0
    %3373 = vmatpush1.bf16.xpose.msra.mxu0 0
    %3374 = vmatprep.subr.bf16.mxu0 0
    %3375 = vmatpush1.bf16.xpose.msra.mxu0 0
    %3376 = vmatprep.subr.bf16.mxu0 0
    %3377 = vmatpush1.bf16.xpose.msra.mxu0 0
    %3378 = vmatprep.subr.bf16.mxu0 0
    %3379 = vmatpush1.bf16.xpose.msra.mxu0 0
    %3380 = vmatprep.subr.bf16.mxu0 0
    %3381 = vmatpush1.bf16.xpose.msra.mxu0 0
    %3382 = vmatprep.subr.bf16.mxu0 0
    %3383 = vmatpush1.bf16.xpose.msra.mxu0 0
    %3384 = vmatprep.subr.bf16.mxu0 0
    %3385 = vmatpush1.bf16.xpose.msra.mxu0 0
    %3386 = vmatprep.subr.bf16.mxu0 0
    %3387 = vmatpush1.bf16.xpose.msra.mxu0 0
    %3388 = vmatprep.mubr.bf16.mxu0 0
    %3389 = vmatmul.mubr.bf16.gmra.mrb[0].mxu0 %v3351
    %v3390 = vpop.f32.mrb[0].mxu0
    %v3391 = vadd.f32 0.0, %v3390
    %v3392 = vpop.f32.mrb[0].mxu0
    %v3393 = vpop.f32.mrb[0].mxu0
    %v3394 = vadd.f32 0.0, %v3393
    %v3395 = vpop.f32.mrb[0].mxu0
    %3396 = vdwg.mxu0
    %v3397 = vsel %vm942, %v3238, -inf
    %v3398 = vsel %vm943, %v3241, -inf
    %v3399 = vsel %vm942, %v3289, -inf
    %v3400 = vsel %vm943, %v3292, -inf
    %v3401 = vsel %vm942, %v3340, -inf
    %v3402 = vsel %vm943, %v3343, -inf
    %v3403 = vsel %vm942, %v3391, -inf
    %v3404 = vsel %vm943, %v3394, -inf
    %v3405 = vsel %vm952, %v3397, -inf
    %3406 = vmax.xlane.f32.xlu0 %v3405
    %v3407 = vpop.xlane.xlu0 %3406
    %v3408 = vsel %vm952, %v3398, -inf
    %3409 = vmax.xlane.f32.xlu0 %v3408
    %v3410 = vpop.xlane.xlu0 %3409
    %v3411 = vsel %vm952, %v3399, -inf
    %3412 = vmax.xlane.f32.xlu0 %v3411
    %v3413 = vpop.xlane.xlu0 %3412
    %v3414 = vsel %vm952, %v3400, -inf
    %3415 = vmax.xlane.f32.xlu0 %v3414
    %v3416 = vpop.xlane.xlu0 %3415
    %v3417 = vsel %vm952, %v3401, -inf
    %3418 = vmax.xlane.f32.xlu0 %v3417
    %v3419 = vpop.xlane.xlu0 %3418
    %v3420 = vsel %vm952, %v3402, -inf
    %3421 = vmax.xlane.f32.xlu0 %v3420
    %v3422 = vpop.xlane.xlu0 %3421
    %v3423 = vsel %vm952, %v3403, -inf
    %3424 = vmax.xlane.f32.xlu0 %v3423
    %v3425 = vpop.xlane.xlu0 %3424
    %v3426 = vsel %vm952, %v3404, -inf
    %3427 = vmax.xlane.f32.xlu0 %v3426
    %v3428 = vpop.xlane.xlu0 %3427
    %v3429 = vsub.f32 %v3397, %v3407
    %v3430 = vsub.f32 %v3398, %v3410
    %v3431 = vsub.f32 %v3399, %v3413
    %v3432 = vsub.f32 %v3400, %v3416
    %v3433 = vsub.f32 %v3401, %v3419
    %v3434 = vsub.f32 %v3402, %v3422
    %v3435 = vsub.f32 %v3403, %v3425
    %v3436 = vsub.f32 %v3404, %v3428
    %v3437 = vmul.f32 %v3429, 1.442695
    %v3438 = vpow.pop %v3437
    %v3439 = vmul.f32 %v3430, 1.442695
    %v3440 = vpow.pop %v3439
    %v3441 = vmul.f32 %v3431, 1.442695
    %v3442 = vpow.pop %v3441
    %v3443 = vmul.f32 %v3432, 1.442695
    %v3444 = vpow.pop %v3443
    %v3445 = vmul.f32 %v3433, 1.442695
    %v3446 = vpow.pop %v3445
    %v3447 = vmul.f32 %v3434, 1.442695
    %v3448 = vpow.pop %v3447
    %v3449 = vmul.f32 %v3435, 1.442695
    %v3450 = vpow.pop %v3449
    %v3451 = vmul.f32 %v3436, 1.442695
    %v3452 = vpow.pop %v3451
    %v3453 = vsel %vm952, %v3438, 0.0
    %3454 = vadd.xlane.f32.xlu0 %v3453
    %v3455 = vpop.xlane.xlu0 %3454
    %v3456 = vsel %vm952, %v3440, 0.0
    %3457 = vadd.xlane.f32.xlu0 %v3456
    %v3458 = vpop.xlane.xlu0 %3457
    %v3459 = vsel %vm952, %v3442, 0.0
    %3460 = vadd.xlane.f32.xlu0 %v3459
    %v3461 = vpop.xlane.xlu0 %3460
    %v3462 = vsel %vm952, %v3444, 0.0
    %3463 = vadd.xlane.f32.xlu0 %v3462
    %v3464 = vpop.xlane.xlu0 %3463
    %v3465 = vsel %vm952, %v3446, 0.0
    %3466 = vadd.xlane.f32.xlu0 %v3465
    %v3467 = vpop.xlane.xlu0 %3466
    %v3468 = vsel %vm952, %v3448, 0.0
    %3469 = vadd.xlane.f32.xlu0 %v3468
    %v3470 = vpop.xlane.xlu0 %3469
    %v3471 = vsel %vm952, %v3450, 0.0
    %3472 = vadd.xlane.f32.xlu0 %v3471
    %v3473 = vpop.xlane.xlu0 %3472
    %v3474 = vsel %vm952, %v3452, 0.0
    %3475 = vadd.xlane.f32.xlu0 %v3474
    %v3476 = vpop.xlane.xlu0 %3475
    %v3477 = vpack.c.bf16 %v3440, %v3438
    %v3478 = vpack.c.bf16 %v3444, %v3442
    %v3479 = vpack.c.bf16 %v3448, %v3446
    %v3480 = vpack.c.bf16 %v3452, %v3450
    %3482 = vrot.lane.b32.xlu0 %v716, 96
    %v3483 = vpop.permute.xlu0 %3482
    %v3486 = vsel %vm952, %v3477, 0
    %3488 = vmatprep.subr.bf16.mxu0 0
    %3489 = vmatpush1.bf16.msra.mxu0 %v3483
    %3490 = vmatprep.subr.bf16.mxu0 0
    %3491 = vmatpush1.bf16.msra.mxu0 0
    %3492 = vmatprep.subr.bf16.mxu0 0
    %3493 = vmatpush1.bf16.msra.mxu0 0
    %3494 = vmatprep.subr.bf16.mxu0 0
    %3495 = vmatpush1.bf16.msra.mxu0 0
    %3496 = vmatprep.subr.bf16.mxu0 0
    %3497 = vmatpush1.bf16.msra.mxu0 0
    %3498 = vmatprep.subr.bf16.mxu0 0
    %3499 = vmatpush1.bf16.msra.mxu0 0
    %3500 = vmatprep.subr.bf16.mxu0 0
    %3501 = vmatpush1.bf16.msra.mxu0 0
    %3502 = vmatprep.subr.bf16.mxu0 0
    %3503 = vmatpush1.bf16.msra.mxu0 0
    %3504 = vmatprep.subr.bf16.mxu0 0
    %3505 = vmatpush1.bf16.msra.mxu0 0
    %3506 = vmatprep.subr.bf16.mxu0 0
    %3507 = vmatpush1.bf16.msra.mxu0 0
    %3508 = vmatprep.subr.bf16.mxu0 0
    %3509 = vmatpush1.bf16.msra.mxu0 0
    %3510 = vmatprep.subr.bf16.mxu0 0
    %3511 = vmatpush1.bf16.msra.mxu0 0
    %3512 = vmatprep.subr.bf16.mxu0 0
    %3513 = vmatpush1.bf16.msra.mxu0 0
    %3514 = vmatprep.subr.bf16.mxu0 0
    %3515 = vmatpush1.bf16.msra.mxu0 0
    %3516 = vmatprep.subr.bf16.mxu0 0
    %3517 = vmatpush1.bf16.msra.mxu0 0
    %3518 = vmatprep.subr.bf16.mxu0 0
    %3519 = vmatpush1.bf16.msra.mxu0 0
    %3520 = vmatprep.mubr.bf16.mxu0 0
    %3521 = vmatmul.mubr.bf16.gmra.mrb[0].mxu0 %v3486
    %v3522 = vpop.f32.mrb[0].mxu0
    %v3523 = vadd.f32 0.0, %v3522
    %v3524 = vpop.f32.mrb[0].mxu0
    %v3525 = vpop.f32.mrb[0].mxu0
    %v3526 = vadd.f32 0.0, %v3525
    %v3527 = vpop.f32.mrb[0].mxu0
    %3528 = vdwg.mxu0
    %3530 = vrot.lane.b32.xlu0 %v721, 96
    %v3531 = vpop.permute.xlu0 %3530
    %v3534 = vsel %vm952, %v3478, 0
    %3536 = vmatprep.subr.bf16.mxu0 0
    %3537 = vmatpush1.bf16.msra.mxu0 %v3531
    %3538 = vmatprep.subr.bf16.mxu0 0
    %3539 = vmatpush1.bf16.msra.mxu0 0
    %3540 = vmatprep.subr.bf16.mxu0 0
    %3541 = vmatpush1.bf16.msra.mxu0 0
    %3542 = vmatprep.subr.bf16.mxu0 0
    %3543 = vmatpush1.bf16.msra.mxu0 0
    %3544 = vmatprep.subr.bf16.mxu0 0
    %3545 = vmatpush1.bf16.msra.mxu0 0
    %3546 = vmatprep.subr.bf16.mxu0 0
    %3547 = vmatpush1.bf16.msra.mxu0 0
    %3548 = vmatprep.subr.bf16.mxu0 0
    %3549 = vmatpush1.bf16.msra.mxu0 0
    %3550 = vmatprep.subr.bf16.mxu0 0
    %3551 = vmatpush1.bf16.msra.mxu0 0
    %3552 = vmatprep.subr.bf16.mxu0 0
    %3553 = vmatpush1.bf16.msra.mxu0 0
    %3554 = vmatprep.subr.bf16.mxu0 0
    %3555 = vmatpush1.bf16.msra.mxu0 0
    %3556 = vmatprep.subr.bf16.mxu0 0
    %3557 = vmatpush1.bf16.msra.mxu0 0
    %3558 = vmatprep.subr.bf16.mxu0 0
    %3559 = vmatpush1.bf16.msra.mxu0 0
    %3560 = vmatprep.subr.bf16.mxu0 0
    %3561 = vmatpush1.bf16.msra.mxu0 0
    %3562 = vmatprep.subr.bf16.mxu0 0
    %3563 = vmatpush1.bf16.msra.mxu0 0
    %3564 = vmatprep.subr.bf16.mxu0 0
    %3565 = vmatpush1.bf16.msra.mxu0 0
    %3566 = vmatprep.subr.bf16.mxu0 0
    %3567 = vmatpush1.bf16.msra.mxu0 0
    %3568 = vmatprep.mubr.bf16.mxu0 0
    %3569 = vmatmul.mubr.bf16.gmra.mrb[0].mxu0 %v3534
    %v3570 = vpop.f32.mrb[0].mxu0
    %v3571 = vadd.f32 0.0, %v3570
    %v3572 = vpop.f32.mrb[0].mxu0
    %v3573 = vpop.f32.mrb[0].mxu0
    %v3574 = vadd.f32 0.0, %v3573
    %v3575 = vpop.f32.mrb[0].mxu0
    %3576 = vdwg.mxu0
    %3578 = vrot.lane.b32.xlu0 %v726, 96
    %v3579 = vpop.permute.xlu0 %3578
    %v3582 = vsel %vm952, %v3479, 0
    %3584 = vmatprep.subr.bf16.mxu0 0
    %3585 = vmatpush1.bf16.msra.mxu0 %v3579
    %3586 = vmatprep.subr.bf16.mxu0 0
    %3587 = vmatpush1.bf16.msra.mxu0 0
    %3588 = vmatprep.subr.bf16.mxu0 0
    %3589 = vmatpush1.bf16.msra.mxu0 0
    %3590 = vmatprep.subr.bf16.mxu0 0
    %3591 = vmatpush1.bf16.msra.mxu0 0
    %3592 = vmatprep.subr.bf16.mxu0 0
    %3593 = vmatpush1.bf16.msra.mxu0 0
    %3594 = vmatprep.subr.bf16.mxu0 0
    %3595 = vmatpush1.bf16.msra.mxu0 0
    %3596 = vmatprep.subr.bf16.mxu0 0
    %3597 = vmatpush1.bf16.msra.mxu0 0
    %3598 = vmatprep.subr.bf16.mxu0 0
    %3599 = vmatpush1.bf16.msra.mxu0 0
    %3600 = vmatprep.subr.bf16.mxu0 0
    %3601 = vmatpush1.bf16.msra.mxu0 0
    %3602 = vmatprep.subr.bf16.mxu0 0
    %3603 = vmatpush1.bf16.msra.mxu0 0
    %3604 = vmatprep.subr.bf16.mxu0 0
    %3605 = vmatpush1.bf16.msra.mxu0 0
    %3606 = vmatprep.subr.bf16.mxu0 0
    %3607 = vmatpush1.bf16.msra.mxu0 0
    %3608 = vmatprep.subr.bf16.mxu0 0
    %3609 = vmatpush1.bf16.msra.mxu0 0
    %3610 = vmatprep.subr.bf16.mxu0 0
    %3611 = vmatpush1.bf16.msra.mxu0 0
    %3612 = vmatprep.subr.bf16.mxu0 0
    %3613 = vmatpush1.bf16.msra.mxu0 0
    %3614 = vmatprep.subr.bf16.mxu0 0
    %3615 = vmatpush1.bf16.msra.mxu0 0
    %3616 = vmatprep.mubr.bf16.mxu0 0
    %3617 = vmatmul.mubr.bf16.gmra.mrb[0].mxu0 %v3582
    %v3618 = vpop.f32.mrb[0].mxu0
    %v3619 = vadd.f32 0.0, %v3618
    %v3620 = vpop.f32.mrb[0].mxu0
    %v3621 = vpop.f32.mrb[0].mxu0
    %v3622 = vadd.f32 0.0, %v3621
    %v3623 = vpop.f32.mrb[0].mxu0
    %3624 = vdwg.mxu0
    %3626 = vrot.lane.b32.xlu0 %v731, 96
    %v3627 = vpop.permute.xlu0 %3626
    %v3630 = vsel %vm952, %v3480, 0
    %3632 = vmatprep.subr.bf16.mxu0 0
    %3633 = vmatpush1.bf16.msra.mxu0 %v3627
    %3634 = vmatprep.subr.bf16.mxu0 0
    %3635 = vmatpush1.bf16.msra.mxu0 0
    %3636 = vmatprep.subr.bf16.mxu0 0
    %3637 = vmatpush1.bf16.msra.mxu0 0
    %3638 = vmatprep.subr.bf16.mxu0 0
    %3639 = vmatpush1.bf16.msra.mxu0 0
    %3640 = vmatprep.subr.bf16.mxu0 0
    %3641 = vmatpush1.bf16.msra.mxu0 0
    %3642 = vmatprep.subr.bf16.mxu0 0
    %3643 = vmatpush1.bf16.msra.mxu0 0
    %3644 = vmatprep.subr.bf16.mxu0 0
    %3645 = vmatpush1.bf16.msra.mxu0 0
    %3646 = vmatprep.subr.bf16.mxu0 0
    %3647 = vmatpush1.bf16.msra.mxu0 0
    %3648 = vmatprep.subr.bf16.mxu0 0
    %3649 = vmatpush1.bf16.msra.mxu0 0
    %3650 = vmatprep.subr.bf16.mxu0 0
    %3651 = vmatpush1.bf16.msra.mxu0 0
    %3652 = vmatprep.subr.bf16.mxu0 0
    %3653 = vmatpush1.bf16.msra.mxu0 0
    %3654 = vmatprep.subr.bf16.mxu0 0
    %3655 = vmatpush1.bf16.msra.mxu0 0
    %3656 = vmatprep.subr.bf16.mxu0 0
    %3657 = vmatpush1.bf16.msra.mxu0 0
    %3658 = vmatprep.subr.bf16.mxu0 0
    %3659 = vmatpush1.bf16.msra.mxu0 0
    %3660 = vmatprep.subr.bf16.mxu0 0
    %3661 = vmatpush1.bf16.msra.mxu0 0
    %3662 = vmatprep.subr.bf16.mxu0 0
    %3663 = vmatpush1.bf16.msra.mxu0 0
    %3664 = vmatprep.mubr.bf16.mxu0 0
    %3665 = vmatmul.mubr.bf16.gmra.mrb[0].mxu0 %v3630
    %v3666 = vpop.f32.mrb[0].mxu0
    %v3667 = vadd.f32 0.0, %v3666
    %v3668 = vpop.f32.mrb[0].mxu0
    %v3669 = vpop.f32.mrb[0].mxu0
    %v3670 = vadd.f32 0.0, %v3669
    %v3671 = vpop.f32.mrb[0].mxu0
    %3672 = vdwg.mxu0
    %v3673 = vrcp.pop %v3455
    %v3674 = vrcp.pop %v3458
    %v3675 = vrcp.pop %v3461
    %v3676 = vrcp.pop %v3464
    %v3677 = vrcp.pop %v3467
    %v3678 = vrcp.pop %v3470
    %v3679 = vrcp.pop %v3473
    %v3680 = vrcp.pop %v3476
    %v3681 = vmul.f32 %v3523, %v3673
    %v3682 = vmul.f32 %v3526, %v3674
    %v3683 = vmul.f32 %v3571, %v3675
    %v3684 = vmul.f32 %v3574, %v3676
    %v3685 = vmul.f32 %v3619, %v3677
    %v3686 = vmul.f32 %v3622, %v3678
    %v3687 = vmul.f32 %v3667, %v3679
    %v3688 = vmul.f32 %v3670, %v3680
    %v3689 = vpack.c.bf16 %v3682, %v3681
    %v3690 = vpack.c.bf16 %v3684, %v3683
    %v3691 = vpack.c.bf16 %v3686, %v3685
    %v3692 = vpack.c.bf16 %v3688, %v3687
    %3697 = vrot.lane.b32.xlu0 %v1725, 32
    %v3698 = vpop.permute.xlu0 %3697
    %3699 = vrot.lane.b32.xlu0 %v1726, 32
    %v3700 = vpop.permute.xlu0 %3699
    %3701 = vrot.lane.b32.xlu0 %v1727, 32
    %v3702 = vpop.permute.xlu0 %3701
    %3703 = vrot.lane.b32.xlu0 %v1728, 32
    %v3704 = vpop.permute.xlu0 %3703
    %3709 = vrot.lane.b32.xlu0 %v2213, 64
    %v3710 = vpop.permute.xlu0 %3709
    %3711 = vrot.lane.b32.xlu0 %v2214, 64
    %v3712 = vpop.permute.xlu0 %3711
    %3713 = vrot.lane.b32.xlu0 %v2215, 64
    %v3714 = vpop.permute.xlu0 %3713
    %3715 = vrot.lane.b32.xlu0 %v2216, 64
    %v3716 = vpop.permute.xlu0 %3715
    %3721 = vrot.lane.b32.xlu0 %v2713, 96
    %v3722 = vpop.permute.xlu0 %3721
    %3723 = vrot.lane.b32.xlu0 %v2714, 96
    %v3724 = vpop.permute.xlu0 %3723
    %3725 = vrot.lane.b32.xlu0 %v2715, 96
    %v3726 = vpop.permute.xlu0 %3725
    %3727 = vrot.lane.b32.xlu0 %v2716, 96
    %v3728 = vpop.permute.xlu0 %3727
    %3733 = vrot.lane.b32.xlu0 %v3689, 32
    %v3734 = vpop.permute.xlu0 %3733
    %3735 = vrot.lane.b32.xlu0 %v3690, 32
    %v3736 = vpop.permute.xlu0 %3735
    %3737 = vrot.lane.b32.xlu0 %v3691, 32
    %v3738 = vpop.permute.xlu0 %3737
    %3739 = vrot.lane.b32.xlu0 %v3692, 32
    %v3740 = vpop.permute.xlu0 %3739
    %v3743 = vsel %vm742, %v1221, %v3698
    %v3746 = vsel %vm742, %v1222, %v3700
    %v3749 = vsel %vm742, %v1223, %v3702
    %v3752 = vsel %vm742, %v1224, %v3704
    %v3754 = vsel %vm488, %v3743, %v3710
    %v3756 = vsel %vm488, %v3746, %v3712
    %v3758 = vsel %vm488, %v3749, %v3714
    %v3760 = vsel %vm488, %v3752, %v3716
    %vm3761 = vcmask 785408
    %v3763 = vsel %vm3761, %v3754, %v3722
    %v3766 = vsel %vm3761, %v3756, %v3724
    %v3769 = vsel %vm3761, %v3758, %v3726
    %v3772 = vsel %vm3761, %v3760, %v3728
    %v3776 = vsel %vm742, %v3189, %v3734
    %v3779 = vsel %vm742, %v3190, %v3736
    %v3782 = vsel %vm742, %v3191, %v3738
    %v3785 = vsel %vm742, %v3192, %v3740
    %v3786 = vld [vmem:[#allocation7] sm:$0xff]
    %v3787 = vld [vmem:[#allocation7 + $0x8] sm:$0xff]
    %v3788 = vld [vmem:[#allocation7 + $0x10] sm:$0xff]
    %v3789 = vld [vmem:[#allocation7 + $0x18] sm:$0xff]
    %v3790 = vld [vmem:[#allocation7 + $0x20] sm:$0xff]
    %v3791 = vld [vmem:[#allocation7 + $0x28] sm:$0xff]
    %v3792 = vld [vmem:[#allocation7 + $0x30] sm:$0xff]
    %v3793 = vld [vmem:[#allocation7 + $0x38] sm:$0xff]
    %v3794 = vld [vmem:[#allocation7 + $0x40] sm:$0xff]
    %v3795 = vld [vmem:[#allocation7 + $0x48] sm:$0xff]
    %v3796 = vld [vmem:[#allocation7 + $0x50] sm:$0xff]
    %v3797 = vld [vmem:[#allocation7 + $0x58] sm:$0xff]
    %v3798 = vld [vmem:[#allocation7 + $0x60] sm:$0xff]
    %v3799 = vld [vmem:[#allocation7 + $0x68] sm:$0xff]
    %v3800 = vld [vmem:[#allocation7 + $0x70] sm:$0xff]
    %v3801 = vld [vmem:[#allocation7 + $0x78] sm:$0xff]
    %v3802 = vld [vmem:[#allocation7 + $0x80] sm:$0xff]
    %v3803 = vld [vmem:[#allocation7 + $0x88] sm:$0xff]
    %v3804 = vld [vmem:[#allocation7 + $0x90] sm:$0xff]
    %v3805 = vld [vmem:[#allocation7 + $0x98] sm:$0xff]
    %v3806 = vld [vmem:[#allocation7 + $0xa0] sm:$0xff]
    %v3807 = vld [vmem:[#allocation7 + $0xa8] sm:$0xff]
    %v3808 = vld [vmem:[#allocation7 + $0xb0] sm:$0xff]
    %v3809 = vld [vmem:[#allocation7 + $0xb8] sm:$0xff]
    %v3810 = vld [vmem:[%s3] sm:$0x3]
    %v3812 = vlaneseq
    %v3813 = vshrl.u32 %v3812, 7
    %v3814 = vsub.s32 0, %v3813
    %v3815 = vrot.slane %v3810, %v3814
    %v3816 = vlaneseq
    %v3817 = vshrl.u32 %v3816, 7
    %v3818 = vsub.s32 1, %v3817
    %v3819 = vrot.slane %v3810, %v3818
    %v3846 = vunpack.c.l.b16 %v3786
    %v3847 = vunpack.c.h.b16 %v3786
    %v3848 = vunpack.c.l.b16 %v3787
    %v3849 = vunpack.c.h.b16 %v3787
    %v3850 = vunpack.c.l.b16 %v3788
    %v3851 = vunpack.c.h.b16 %v3788
    %v3852 = vunpack.c.l.b16 %v3789
    %v3853 = vunpack.c.h.b16 %v3789
    %v3854 = vunpack.c.l.b16 %v3790
    %v3855 = vunpack.c.h.b16 %v3790
    %v3856 = vunpack.c.l.b16 %v3791
    %v3857 = vunpack.c.h.b16 %v3791
    %v3858 = vunpack.c.l.b16 %v3792
    %v3859 = vunpack.c.h.b16 %v3792
    %v3860 = vunpack.c.l.b16 %v3793
    %v3861 = vunpack.c.h.b16 %v3793
    %v3862 = vunpack.c.l.b16 %v3794
    %v3863 = vunpack.c.h.b16 %v3794
    %v3864 = vunpack.c.l.b16 %v3795
    %v3865 = vunpack.c.h.b16 %v3795
    %v3866 = vunpack.c.l.b16 %v3796
    %v3867 = vunpack.c.h.b16 %v3796
    %v3868 = vunpack.c.l.b16 %v3797
    %v3869 = vunpack.c.h.b16 %v3797
    %v3870 = vunpack.c.l.b16 %v3798
    %v3871 = vunpack.c.h.b16 %v3798
    %v3872 = vunpack.c.l.b16 %v3799
    %v3873 = vunpack.c.h.b16 %v3799
    %v3874 = vunpack.c.l.b16 %v3800
    %v3875 = vunpack.c.h.b16 %v3800
    %v3876 = vunpack.c.l.b16 %v3801
    %v3877 = vunpack.c.h.b16 %v3801
    %v3878 = vunpack.c.l.b16 %v3802
    %v3879 = vunpack.c.h.b16 %v3802
    %v3880 = vunpack.c.l.b16 %v3803
    %v3881 = vunpack.c.h.b16 %v3803
    %v3882 = vunpack.c.l.b16 %v3804
    %v3883 = vunpack.c.h.b16 %v3804
    %v3884 = vunpack.c.l.b16 %v3805
    %v3885 = vunpack.c.h.b16 %v3805
    %v3886 = vunpack.c.l.b16 %v3806
    %v3887 = vunpack.c.h.b16 %v3806
    %v3888 = vunpack.c.l.b16 %v3807
    %v3889 = vunpack.c.h.b16 %v3807
    %v3890 = vunpack.c.l.b16 %v3808
    %v3891 = vunpack.c.h.b16 %v3808
    %v3892 = vunpack.c.l.b16 %v3809
    %v3893 = vunpack.c.h.b16 %v3809
    %v3894 = vpack.c.b16 %v3848, %v3846
    %v3895 = vpack.c.b16 %v3849, %v3847
    %v3896 = vpack.c.b16 %v3852, %v3850
    %v3897 = vpack.c.b16 %v3853, %v3851
    %v3898 = vpack.c.b16 %v3856, %v3854
    %v3899 = vpack.c.b16 %v3857, %v3855
    %v3900 = vpack.c.b16 %v3860, %v3858
    %v3901 = vpack.c.b16 %v3861, %v3859
    %v3902 = vpack.c.b16 %v3864, %v3862
    %v3903 = vpack.c.b16 %v3865, %v3863
    %v3904 = vpack.c.b16 %v3868, %v3866
    %v3905 = vpack.c.b16 %v3869, %v3867
    %v3906 = vpack.c.b16 %v3872, %v3870
    %v3907 = vpack.c.b16 %v3873, %v3871
    %v3908 = vpack.c.b16 %v3876, %v3874
    %v3909 = vpack.c.b16 %v3877, %v3875
    %v3910 = vpack.c.b16 %v3880, %v3878
    %v3911 = vpack.c.b16 %v3881, %v3879
    %v3912 = vpack.c.b16 %v3884, %v3882
    %v3913 = vpack.c.b16 %v3885, %v3883
    %v3914 = vpack.c.b16 %v3888, %v3886
    %v3915 = vpack.c.b16 %v3889, %v3887
    %v3916 = vpack.c.b16 %v3892, %v3890
    %v3917 = vpack.c.b16 %v3893, %v3891
    %v3942 = vsel %vm488, %v3776, 0
    %v3944 = vsel %vm488, %v3779, 0
    %v3946 = vsel %vm488, %v3782, 0
    %v3948 = vsel %vm488, %v3785, 0
    %3950 = vmatprep.subr.bf16.mxu0 %v3895
    %3951 = vmatpush1.bf16.msra.mxu0 %v3894
    %3952 = vmatprep.subr.bf16.mxu0 %v3897
    %3953 = vmatpush1.bf16.msra.mxu0 %v3896
    %3954 = vmatprep.subr.bf16.mxu0 %v3899
    %3955 = vmatpush1.bf16.msra.mxu0 %v3898
    %3956 = vmatprep.subr.bf16.mxu0 %v3901
    %3957 = vmatpush1.bf16.msra.mxu0 %v3900
    %3958 = vmatprep.subr.bf16.mxu0 %v3903
    %3959 = vmatpush1.bf16.msra.mxu0 %v3902
    %3960 = vmatprep.subr.bf16.mxu0 %v3905
    %3961 = vmatpush1.bf16.msra.mxu0 %v3904
    %3962 = vmatprep.subr.bf16.mxu0 %v3907
    %3963 = vmatpush1.bf16.msra.mxu0 %v3906
    %3964 = vmatprep.subr.bf16.mxu0 %v3909
    %3965 = vmatpush1.bf16.msra.mxu0 %v3908
    %3966 = vmatprep.subr.bf16.mxu0 %v3911
    %3967 = vmatpush1.bf16.msra.mxu0 %v3910
    %3968 = vmatprep.subr.bf16.mxu0 %v3913
    %3969 = vmatpush1.bf16.msra.mxu0 %v3912
    %3970 = vmatprep.subr.bf16.mxu0 %v3915
    %3971 = vmatpush1.bf16.msra.mxu0 %v3914
    %3972 = vmatprep.subr.bf16.mxu0 %v3917
    %3973 = vmatpush1.bf16.msra.mxu0 %v3916
    %3974 = vmatprep.subr.bf16.mxu0 0
    %3975 = vmatpush1.bf16.msra.mxu0 0
    %3976 = vmatprep.subr.bf16.mxu0 0
    %3977 = vmatpush1.bf16.msra.mxu0 0
    %3978 = vmatprep.subr.bf16.mxu0 0
    %3979 = vmatpush1.bf16.msra.mxu0 0
    %3980 = vmatprep.subr.bf16.mxu0 0
    %3981 = vmatpush1.bf16.msra.mxu0 0
    %3982 = vmatprep.mubr.bf16.mxu0 %v3942
    %3983 = vmatmul.mubr.bf16.gmra.mrb[0].mxu0 %v3763
    %v3984 = vpop.f32.mrb[0].mxu0
    %v3985 = vadd.f32 %v3815, %v3984
    %v3986 = vpop.f32.mrb[0].mxu0
    %v3987 = vadd.f32 %v3819, %v3986
    %v3988 = vpop.f32.mrb[0].mxu0
    %v3989 = vadd.f32 %v3815, %v3988
    %v3990 = vpop.f32.mrb[0].mxu0
    %v3991 = vadd.f32 %v3819, %v3990
    %3992 = vmatprep.mubr.bf16.mxu0 %v3944
    %3993 = vmatmul.mubr.bf16.gmra.mrb[0].mxu0 %v3766
    %v3994 = vpop.f32.mrb[0].mxu0
    %v3995 = vadd.f32 %v3815, %v3994
    %v3996 = vpop.f32.mrb[0].mxu0
    %v3997 = vadd.f32 %v3819, %v3996
    %v3998 = vpop.f32.mrb[0].mxu0
    %v3999 = vadd.f32 %v3815, %v3998
    %v4000 = vpop.f32.mrb[0].mxu0
    %v4001 = vadd.f32 %v3819, %v4000
    %4002 = vmatprep.mubr.bf16.mxu0 %v3946
    %4003 = vmatmul.mubr.bf16.gmra.mrb[0].mxu0 %v3769
    %v4004 = vpop.f32.mrb[0].mxu0
    %v4005 = vadd.f32 %v3815, %v4004
    %v4006 = vpop.f32.mrb[0].mxu0
    %v4007 = vadd.f32 %v3819, %v4006
    %v4008 = vpop.f32.mrb[0].mxu0
    %v4009 = vadd.f32 %v3815, %v4008
    %v4010 = vpop.f32.mrb[0].mxu0
    %v4011 = vadd.f32 %v3819, %v4010
    %4012 = vmatprep.mubr.bf16.mxu0 %v3948
    %4013 = vmatmul.mubr.bf16.gmra.mrb[0].mxu0 %v3772
    %v4014 = vpop.f32.mrb[0].mxu0
    %v4015 = vadd.f32 %v3815, %v4014
    %v4016 = vpop.f32.mrb[0].mxu0
    %v4017 = vadd.f32 %v3819, %v4016
    %v4018 = vpop.f32.mrb[0].mxu0
    %v4019 = vadd.f32 %v3815, %v4018
    %v4020 = vpop.f32.mrb[0].mxu0
    %v4021 = vadd.f32 %v3819, %v4020
    %4022 = vdwg.mxu0
    %4023 = vst [vmem:[#allocation8] sm:$0xff] %v3985
    %4024 = vst.msk [vmem:[#allocation8 + $0x8] sm:$0xff] %vm488, %v3987
    %4025 = vst [vmem:[#allocation8 + $0x10] sm:$0xff] %v3989
    %4026 = vst.msk [vmem:[#allocation8 + $0x18] sm:$0xff] %vm488, %v3991
    %4027 = vst [vmem:[#allocation8 + $0x20] sm:$0xff] %v3995
    %4028 = vst.msk [vmem:[#allocation8 + $0x28] sm:$0xff] %vm488, %v3997
    %4029 = vst [vmem:[#allocation8 + $0x30] sm:$0xff] %v3999
    %4030 = vst.msk [vmem:[#allocation8 + $0x38] sm:$0xff] %vm488, %v4001
    %4031 = vst [vmem:[#allocation8 + $0x40] sm:$0xff] %v4005
    %4032 = vst.msk [vmem:[#allocation8 + $0x48] sm:$0xff] %vm488, %v4007
    %4033 = vst [vmem:[#allocation8 + $0x50] sm:$0xff] %v4009
    %4034 = vst.msk [vmem:[#allocation8 + $0x58] sm:$0xff] %vm488, %v4011
    %4035 = vst [vmem:[#allocation8 + $0x60] sm:$0xff] %v4015
    %4036 = vst.msk [vmem:[#allocation8 + $0x68] sm:$0xff] %vm488, %v4017
    %4037 = vst [vmem:[#allocation8 + $0x70] sm:$0xff] %v4019
    %4038 = vst.msk [vmem:[#allocation8 + $0x78] sm:$0xff] %vm488, %v4021
    // Predicated region
    $region30: #{tpu_custom_call.1} parent=1 // pred_check
      _
    $region31: #{tpu_custom_call.1} parent=1 // pred_check_branch
      %4040 = sbr.rel (0) target = $region33
    $region32: #{tpu_custom_call.1} parent=1 // pred_region
      %s4042 = ssub.s32 2048, 2048
      %4043 = vsyncadd [#allocation4], %s4042
      %s4044 = sshll.u32 [#allocation8], 4
      %s4045 = int_to_ptr.vmem [resolvable:$true] %s4044
      %4050 = dma.vmem_to_hbm [thread:$0]  %s4045, 2048, %s4, [#allocation4], 256, 256, 16
    $region33: #{tpu_custom_call.1} parent=1 // pred_fallthru
      _
    // Predicated region
    $region34: #{tpu_custom_call.1} parent=1 // pred_check
      _
    $region35: #{tpu_custom_call.1} parent=1 // pred_check_branch
      %4052 = sbr.rel (0) target = $region37
    $region36: #{tpu_custom_call.1} parent=1 // pred_region
      %4053 = dma.done [#allocation4], 2048
    $region37: #{tpu_custom_call.1} parent=1 // pred_fallthru
      _
    %4054 = vsyncpa [#allocation3], 1
    %4055 = vsyncpa [#allocation6], 1
    %4056 = vsyncpa [#allocation4], 1

</llo_original>
